<compile_context>
chip_gen: v7x
topology: tpu7x:2x2x1
jax: 0.10.0
libtpu: 0.0.40
codegen_flags: <defaults>
</compile_context>

<pallas_src>
import functools

import jax
import jax.numpy as jnp
from jax import lax
from jax.experimental import pallas as pl
from jax.experimental.pallas import tpu as pltpu


def _round_up(v, m):
    return (v + m - 1) // m * m


# ---------------------------------------------------------------------------
# Pass 1: channel mean / max, lane-dense over the flattened spatial axis.
# ---------------------------------------------------------------------------
def channel_reduce_kernel(x_ref, o_ref, *, C, Cc, inv_c, mask_last_chunk):
    # x_ref: VMEM f32[1, Cc, HW]   channel chunk of one batch element
    # o_ref: VMEM f32[1, 2, HW]    [running sum -> mean, running max]
    c = pl.program_id(1)
    xb = x_ref[0].astype(jnp.float32)                       # (Cc, HW)

    if mask_last_chunk:                                     # static Python branch
        ch = c * Cc + lax.broadcasted_iota(jnp.int32, xb.shape, 0)
        valid = ch < C
        x_for_sum = jnp.where(valid, xb, 0.0)
        x_for_max = jnp.where(valid, xb, -jnp.inf)
    else:
        x_for_sum = xb
        x_for_max = xb

    csum = jnp.sum(x_for_sum, axis=0, keepdims=True)        # (1, HW)
    cmax = jnp.max(x_for_max, axis=0, keepdims=True)        # (1, HW)

    @pl.when(c == 0)
    def _init():
        o_ref[0, 0:1, :] = csum
        o_ref[0, 1:2, :] = cmax

    @pl.when(c > 0)
    def _accumulate():
        o_ref[0, 0:1, :] = o_ref[0, 0:1, :] + csum
        o_ref[0, 1:2, :] = jnp.maximum(o_ref[0, 1:2, :], cmax)

    @pl.when(c == pl.num_programs(1) - 1)
    def _finalize():
        o_ref[0, 0:1, :] = o_ref[0, 0:1, :] * inv_c          # sum -> mean


# ---------------------------------------------------------------------------
# Pass 2: 7x7 (2 -> 1) SAME conv + sigmoid on one image's [avg, max] maps.
# ---------------------------------------------------------------------------
def conv_sigmoid_kernel(w_ref, f_ref, o_ref, pad_ref, *, H, W, KS, pad, Wpad,
                        strip):
    # w_ref:   SMEM f32[2*KS*KS]        scalar-prefetched Conv2d weight (OIHW flat)
    # f_ref:   VMEM f32[1, 2, H, W]     avg/max maps of one batch element
    # o_ref:   VMEM f32[1, 1, H, W]
    # pad_ref: VMEM f32[2, H+2p, Wpad]  zero-padded feature maps
    pad_ref[...] = jnp.zeros_like(pad_ref)
    for f in range(2):
        # Rows offset by pad (cheap addressed stores), lanes at [0, W) (aligned).
        pad_ref[f, pad:pad + H, :W] = f_ref[0, f].astype(jnp.float32)

    # Hoist all 2*KS*KS SMEM scalar reads out of the strip loop.
    ws = [[[w_ref[f * KS * KS + dy * KS + dx] for dx in range(KS)]
           for dy in range(KS)] for f in range(2)]

    for r0 in range(0, H, strip):                            # 8-row output strips
        sh = min(strip, H - r0)
        src_rows = sh + KS - 1
        accs = [None, None, None, None]
        for f in range(2):
            src = pad_ref[f, r0:r0 + src_rows, :]            # (src_rows, Wpad)
            for dx in range(KS):
                # One lane-roll per (feature, dx), reused by all KS dy taps.
                # Wraparound lands in the zero tail lanes >= W -> SAME padding.
                shift = (pad - dx) % Wpad
                rolled = src if shift == 0 else pltpu.roll(src, shift=shift, axis=1)
                for dy in range(KS):
                    tap = ws[f][dy][dx] * rolled[dy:dy + sh, :]
                    slot = 2 * f + (dx & 1)                  # 4 accumulators (ILP)
                    accs[slot] = tap if accs[slot] is None else accs[slot] + tap
        acc = (accs[0] + accs[1]) + (accs[2] + accs[3])      # (sh, Wpad)
        o_ref[0, 0, r0:r0 + sh, :] = jax.nn.sigmoid(acc[:, :W])


# ---------------------------------------------------------------------------
# Wrapper
# ---------------------------------------------------------------------------
def _pick_c_chunk(C, HW, itemsize, target_bytes=6 * 1024 * 1024):
    """Channel-chunk size, sized by the *padded* VMEM layout of a (Cc, HW) block:
    roundup(Cc, 8) x roundup(HW, 128) x itemsize."""
    lane_bytes = _round_up(max(HW, 128), 128) * itemsize

    def padded_bytes(cc):
        return _round_up(cc, 8) * lane_bytes

    if padded_bytes(C) <= target_bytes:
        return C                                     # whole channel axis at once
    cc_max = max(8, (target_bytes // lane_bytes) // 8 * 8)
    if cc_max >= C:
        return C
    # Prefer a multiple-of-8 divisor of C (no masked remainder) when it is at
    # least half of cc_max; otherwise use cc_max with a masked last chunk.
    for d in range(cc_max, 7, -8):
        if C % d == 0 and 2 * d >= cc_max:
            return d
    return cc_max


_VMEM_LIMIT_BYTES = 40 * 1024 * 1024    # explicit scoped-VMEM budget (fits all gens)


def spatial_attention(x, weight, kernel_size=7):
    """x: (N, C, H, W).  weight: (1, 2, KS, KS) PyTorch Conv2d weight (no bias)."""
    N, C, H, W = x.shape
    KS = kernel_size
    assert KS % 2 == 1, "SpatialAttention assumes an odd kernel_size (SAME padding)"
    assert weight.shape == (1, 2, KS, KS)
    pad = KS // 2
    HW = H * W
    Hp = H + 2 * pad
    Wpad = _round_up(W + 2 * pad, 128)               # lane-dense conv buffer

    itemsize = jnp.dtype(x.dtype).itemsize
    Cc = _pick_c_chunk(C, HW, itemsize)
    num_chunks = pl.cdiv(C, Cc)

    # -------- Pass 1: channel mean / max on lane-dense (Cc, HW) blocks. --------
    xf = x.reshape(N, C, HW)                          # free: NCHW is contiguous
    reduce_kernel = functools.partial(
        channel_reduce_kernel, C=C, Cc=Cc, inv_c=1.0 / C,
        mask_last_chunk=(C % Cc != 0))
    reduced = pl.pallas_call(
        reduce_kernel,
        out_shape=jax.ShapeDtypeStruct((N, 2, HW), jnp.float32),
        grid=(N, num_chunks),
        in_specs=[pl.BlockSpec((1, Cc, HW), lambda n, c: (n, c, 0))],
        out_specs=pl.BlockSpec((1, 2, HW), lambda n, c: (n, 0, 0)),
        compiler_params=pltpu.CompilerParams(
            dimension_semantics=("parallel", "arbitrary"),
            vmem_limit_bytes=_VMEM_LIMIT_BYTES),
    )(xf)

    # -------- Pass 2: 7x7 conv + sigmoid per image (tiny compute). --------
    feat = reduced.reshape(N, 2, H, W)                # free reshape; DMA re-tiles
    w_flat = weight.reshape(-1).astype(jnp.float32)   # (2*KS*KS,) OIHW order
    conv_kernel = functools.partial(
        conv_sigmoid_kernel, H=H, W=W, KS=KS, pad=pad, Wpad=Wpad, strip=8)
    # TODO(synk): for v7x single-image inference (N == 1), add a second "parallel"
    # grid axis over 8-row output strips (with halo rows) so both TensorCores work.
    out = pl.pallas_call(
        conv_kernel,
        out_shape=jax.ShapeDtypeStruct((N, 1, H, W), jnp.float32),
        grid_spec=pltpu.PrefetchScalarGridSpec(
            num_scalar_prefetch=1,                    # conv weight -> SMEM, once
            grid=(N,),
            in_specs=[pl.BlockSpec((1, 2, H, W), lambda n, w: (n, 0, 0, 0))],
            out_specs=pl.BlockSpec((1, 1, H, W), lambda n, w: (n, 0, 0, 0)),
            scratch_shapes=[pltpu.VMEM((2, Hp, Wpad), jnp.float32)]),
        compiler_params=pltpu.CompilerParams(
            dimension_semantics=("parallel",)),
    )(w_flat, feat)
    return out


def spatial_attention_reference(x, weight):
    avg = jnp.mean(x, axis=1, keepdims=True)
    mx = jnp.max(x, axis=1, keepdims=True)
    cat = jnp.concatenate([avg, mx], axis=1)
    conv = lax.conv_general_dilated(
        cat, weight, window_strides=(1, 1), padding="SAME",
        dimension_numbers=("NCHW", "OIHW", "NCHW"))
    return jax.nn.sigmoid(conv)


if __name__ == "__main__":
    key = jax.random.PRNGKey(0)
    kx, kw = jax.random.split(key)

    N, C, H, W = 2, 4, 16, 16
    KS = 7
    x = jax.random.normal(kx, (N, C, H, W), dtype=jnp.float32)

    # Deterministic Conv2d(2, 1, 7, bias=False) weight (kaiming-uniform-like bound).
    fan_in = 2 * KS * KS
    bound = 1.0 / (fan_in ** 0.5)
    weight = jax.random.uniform(kw, (1, 2, KS, KS), jnp.float32, -bound, bound)

    fwd = jax.jit(spatial_attention, static_argnames=("kernel_size",))
    out = jax.block_until_ready(fwd(x, weight, kernel_size=KS))

    ref = spatial_attention_reference(x, weight)
    assert out.shape == (N, 1, H, W)
    assert jnp.allclose(out, ref, atol=1e-5, rtol=1e-5), float(
        jnp.max(jnp.abs(out - ref)))
    print("KERNEL_OK")
</pallas_src>

<mosaic_0001>
module attributes {stable_mosaic.version = 11 : i64} {
  func.func @channel_reduce_kernel(%arg0: i32, %arg1: i32, %arg2: memref<1x4x256xf32, #tpu.memory_space<vmem>>, %arg3: memref<1x2x256xf32, #tpu.memory_space<vmem>>) attributes {dimension_semantics = [#tpu.dimension_semantics<parallel>, #tpu.dimension_semantics<arbitrary>], iteration_bounds = array<i64: 2, 1>, scalar_prefetch = 0 : i64, scratch_operands = 0 : i64, tpu.core_type = #tpu.core_type<tc>, window_params = [{transform_indices = @transform_0, window_bounds = array<i64: 1, 4, 256>}, {transform_indices = @transform_1, window_bounds = array<i64: 1, 2, 256>}]} {
    %c0 = arith.constant 0 : index
    %c0_0 = arith.constant 0 : index
    %c0_1 = arith.constant 0 : index
    %0 = vector.load %arg2[%c0, %c0_0, %c0_1] : memref<1x4x256xf32, #tpu.memory_space<vmem>>, vector<1x4x256xf32>
    %1 = vector.shape_cast %0 : vector<1x4x256xf32> to vector<4x256xf32>
    %cst = arith.constant dense<0.000000e+00> : vector<256xf32>
    %2 = vector.multi_reduction <add>, %1, %cst [0] : vector<4x256xf32> to vector<256xf32>
    %3 = vector.shape_cast %2 : vector<256xf32> to vector<1x256xf32>
    %cst_2 = arith.constant dense<0xFF800000> : vector<256xf32>
    %4 = vector.multi_reduction <maximumf>, %1, %cst_2 [0] : vector<4x256xf32> to vector<256xf32>
    %5 = vector.shape_cast %4 : vector<256xf32> to vector<1x256xf32>
    %c0_i32 = arith.constant 0 : i32
    %6 = arith.cmpi eq, %arg1, %c0_i32 : i32
    %7 = arith.extui %6 : i1 to i32
    %c0_i32_3 = arith.constant 0 : i32
    %8 = arith.cmpi ne, %7, %c0_i32_3 : i32
    scf.if %8 {
      %c0_8 = arith.constant 0 : index
      %c0_9 = arith.constant 0 : index
      %c0_10 = arith.constant 0 : index
      %15 = vector.load %arg3[%c0_8, %c0_9, %c0_10] : memref<1x2x256xf32, #tpu.memory_space<vmem>>, vector<1x1x256xf32>
      %16 = vector.shape_cast %15 : vector<1x1x256xf32> to vector<1x256xf32>
      %17 = vector.shape_cast %3 : vector<1x256xf32> to vector<1x1x256xf32>
      tpu.vector_store %arg3[%c0_8, %c0_9, %c0_10], %17 {strides = array<i32>} : memref<1x2x256xf32, #tpu.memory_space<vmem>>, vector<1x1x256xf32>,
      %c0_11 = arith.constant 0 : index
      %c1 = arith.constant 1 : index
      %c0_12 = arith.constant 0 : index
      %18 = vector.load %arg3[%c0_11, %c1, %c0_12] : memref<1x2x256xf32, #tpu.memory_space<vmem>>, vector<1x1x256xf32>
      %19 = vector.shape_cast %18 : vector<1x1x256xf32> to vector<1x256xf32>
      %20 = vector.shape_cast %5 : vector<1x256xf32> to vector<1x1x256xf32>
      tpu.vector_store %arg3[%c0_11, %c1, %c0_12], %20 {strides = array<i32>} : memref<1x2x256xf32, #tpu.memory_space<vmem>>, vector<1x1x256xf32>,
    } else {
    }
    %c0_i32_4 = arith.constant 0 : i32
    %9 = arith.cmpi sgt, %arg1, %c0_i32_4 : i32
    %10 = arith.extui %9 : i1 to i32
    %c0_i32_5 = arith.constant 0 : i32
    %11 = arith.cmpi ne, %10, %c0_i32_5 : i32
    scf.if %11 {
      %c0_8 = arith.constant 0 : index
      %c0_9 = arith.constant 0 : index
      %c0_10 = arith.constant 0 : index
      %15 = vector.load %arg3[%c0_8, %c0_9, %c0_10] : memref<1x2x256xf32, #tpu.memory_space<vmem>>, vector<1x1x256xf32>
      %16 = vector.shape_cast %15 : vector<1x1x256xf32> to vector<1x256xf32>
      %17 = arith.addf %16, %3 : vector<1x256xf32>
      %c0_11 = arith.constant 0 : index
      %c0_12 = arith.constant 0 : index
      %c0_13 = arith.constant 0 : index
      %18 = vector.load %arg3[%c0_11, %c0_12, %c0_13] : memref<1x2x256xf32, #tpu.memory_space<vmem>>, vector<1x1x256xf32>
      %19 = vector.shape_cast %18 : vector<1x1x256xf32> to vector<1x256xf32>
      %20 = vector.shape_cast %17 : vector<1x256xf32> to vector<1x1x256xf32>
      tpu.vector_store %arg3[%c0_11, %c0_12, %c0_13], %20 {strides = array<i32>} : memref<1x2x256xf32, #tpu.memory_space<vmem>>, vector<1x1x256xf32>,
      %c0_14 = arith.constant 0 : index
      %c1 = arith.constant 1 : index
      %c0_15 = arith.constant 0 : index
      %21 = vector.load %arg3[%c0_14, %c1, %c0_15] : memref<1x2x256xf32, #tpu.memory_space<vmem>>, vector<1x1x256xf32>
      %22 = vector.shape_cast %21 : vector<1x1x256xf32> to vector<1x256xf32>
      %23 = arith.maximumf %22, %5 : vector<1x256xf32>
      %c0_16 = arith.constant 0 : index
      %c1_17 = arith.constant 1 : index
      %c0_18 = arith.constant 0 : index
      %24 = vector.load %arg3[%c0_16, %c1_17, %c0_18] : memref<1x2x256xf32, #tpu.memory_space<vmem>>, vector<1x1x256xf32>
      %25 = vector.shape_cast %24 : vector<1x1x256xf32> to vector<1x256xf32>
      %26 = vector.shape_cast %23 : vector<1x256xf32> to vector<1x1x256xf32>
      tpu.vector_store %arg3[%c0_16, %c1_17, %c0_18], %26 {strides = array<i32>} : memref<1x2x256xf32, #tpu.memory_space<vmem>>, vector<1x1x256xf32>,
    } else {
    }
    %c0_i32_6 = arith.constant 0 : i32
    %12 = arith.cmpi eq, %arg1, %c0_i32_6 : i32
    %13 = arith.extui %12 : i1 to i32
    %c0_i32_7 = arith.constant 0 : i32
    %14 = arith.cmpi ne, %13, %c0_i32_7 : i32
    scf.if %14 {
      %c0_8 = arith.constant 0 : index
      %c0_9 = arith.constant 0 : index
      %c0_10 = arith.constant 0 : index
      %15 = vector.load %arg3[%c0_8, %c0_9, %c0_10] : memref<1x2x256xf32, #tpu.memory_space<vmem>>, vector<1x1x256xf32>
      %16 = vector.shape_cast %15 : vector<1x1x256xf32> to vector<1x256xf32>
      %cst_11 = arith.constant 2.500000e-01 : f32
      %17 = vector.broadcast %cst_11 : f32 to vector<1x256xf32>
      %18 = arith.mulf %16, %17 : vector<1x256xf32>
      %c0_12 = arith.constant 0 : index
      %c0_13 = arith.constant 0 : index
      %c0_14 = arith.constant 0 : index
      %19 = vector.load %arg3[%c0_12, %c0_13, %c0_14] : memref<1x2x256xf32, #tpu.memory_space<vmem>>, vector<1x1x256xf32>
      %20 = vector.shape_cast %19 : vector<1x1x256xf32> to vector<1x256xf32>
      %21 = vector.shape_cast %18 : vector<1x256xf32> to vector<1x1x256xf32>
      tpu.vector_store %arg3[%c0_12, %c0_13, %c0_14], %21 {strides = array<i32>} : memref<1x2x256xf32, #tpu.memory_space<vmem>>, vector<1x1x256xf32>,
    } else {
    }
    return
  }
  func.func @transform_0(%arg0: i32, %arg1: i32) -> (i32, i32, i32) {
    %c0_i32 = arith.constant 0 : i32
    %c0_i32_0 = arith.constant 0 : i32
    return %arg0, %arg1, %c0_i32 : i32, i32, i32
  }
  func.func @transform_1(%arg0: i32, %arg1: i32) -> (i32, i32, i32) {
    %c0_i32 = arith.constant 0 : i32
    %c0_i32_0 = arith.constant 0 : i32
    %c0_i32_1 = arith.constant 0 : i32
    return %arg0, %c0_i32, %c0_i32_0 : i32, i32, i32
  }
}

module attributes {stable_mosaic.version = 11 : i64} {
  func.func @conv_sigmoid_kernel(%arg0: i32, %arg1: memref<98xf32, #tpu.memory_space<smem>>, %arg2: memref<1x2x16x16xf32, #tpu.memory_space<vmem>>, %arg3: memref<1x1x16x16xf32, #tpu.memory_space<vmem>>, %arg4: memref<2x22x128xf32, #tpu.memory_space<vmem>>) attributes {dimension_semantics = [#tpu.dimension_semantics<parallel>], iteration_bounds = array<i64: 2>, scalar_prefetch = 1 : i64, scratch_operands = 1 : i64, tpu.core_type = #tpu.core_type<tc>, window_params = [{transform_indices = @transform_0, window_bounds = array<i64: 1, 2, 16, 16>}, {transform_indices = @transform_1, window_bounds = array<i64: 1, 1, 16, 16>}]} {
    %cst = arith.constant 0.000000e+00 : f32
    %0 = vector.broadcast %cst : f32 to vector<2x22x128xf32>
    %c0 = arith.constant 0 : index
    %c0_0 = arith.constant 0 : index
    %c0_1 = arith.constant 0 : index
    %1 = vector.load %arg4[%c0, %c0_0, %c0_1] : memref<2x22x128xf32, #tpu.memory_space<vmem>>, vector<2x22x128xf32>
    tpu.vector_store %arg4[%c0, %c0_0, %c0_1], %0 {strides = array<i32>} : memref<2x22x128xf32, #tpu.memory_space<vmem>>, vector<2x22x128xf32>,
    %c0_2 = arith.constant 0 : index
    %c0_3 = arith.constant 0 : index
    %c0_4 = arith.constant 0 : index
    %c0_5 = arith.constant 0 : index
    %2 = vector.load %arg2[%c0_2, %c0_3, %c0_4, %c0_5] : memref<1x2x16x16xf32, #tpu.memory_space<vmem>>, vector<1x1x16x16xf32>
    %3 = vector.shape_cast %2 : vector<1x1x16x16xf32> to vector<16x16xf32>
    %c0_6 = arith.constant 0 : index
    %c3 = arith.constant 3 : index
    %c0_7 = arith.constant 0 : index
    %4 = vector.load %arg4[%c0_6, %c3, %c0_7] : memref<2x22x128xf32, #tpu.memory_space<vmem>>, vector<1x16x16xf32>
    %5 = vector.shape_cast %4 : vector<1x16x16xf32> to vector<16x16xf32>
    %6 = vector.shape_cast %3 : vector<16x16xf32> to vector<1x16x16xf32>
    tpu.vector_store %arg4[%c0_6, %c3, %c0_7], %6 {strides = array<i32>} : memref<2x22x128xf32, #tpu.memory_space<vmem>>, vector<1x16x16xf32>,
    %c0_8 = arith.constant 0 : index
    %c1 = arith.constant 1 : index
    %c0_9 = arith.constant 0 : index
    %c0_10 = arith.constant 0 : index
    %7 = vector.load %arg2[%c0_8, %c1, %c0_9, %c0_10] : memref<1x2x16x16xf32, #tpu.memory_space<vmem>>, vector<1x1x16x16xf32>
    %8 = vector.shape_cast %7 : vector<1x1x16x16xf32> to vector<16x16xf32>
    %c1_11 = arith.constant 1 : index
    %c3_12 = arith.constant 3 : index
    %c0_13 = arith.constant 0 : index
    %9 = vector.load %arg4[%c1_11, %c3_12, %c0_13] : memref<2x22x128xf32, #tpu.memory_space<vmem>>, vector<1x16x16xf32>
    %10 = vector.shape_cast %9 : vector<1x16x16xf32> to vector<16x16xf32>
    %11 = vector.shape_cast %8 : vector<16x16xf32> to vector<1x16x16xf32>
    tpu.vector_store %arg4[%c1_11, %c3_12, %c0_13], %11 {strides = array<i32>} : memref<2x22x128xf32, #tpu.memory_space<vmem>>, vector<1x16x16xf32>,
    %c0_14 = arith.constant 0 : index
    %12 = memref.load %arg1[%c0_14] : memref<98xf32, #tpu.memory_space<smem>>
    %c1_15 = arith.constant 1 : index
    %13 = memref.load %arg1[%c1_15] : memref<98xf32, #tpu.memory_space<smem>>
    %c2 = arith.constant 2 : index
    %14 = memref.load %arg1[%c2] : memref<98xf32, #tpu.memory_space<smem>>
    %c3_16 = arith.constant 3 : index
    %15 = memref.load %arg1[%c3_16] : memref<98xf32, #tpu.memory_space<smem>>
    %c4 = arith.constant 4 : index
    %16 = memref.load %arg1[%c4] : memref<98xf32, #tpu.memory_space<smem>>
    %c5 = arith.constant 5 : index
    %17 = memref.load %arg1[%c5] : memref<98xf32, #tpu.memory_space<smem>>
    %c6 = arith.constant 6 : index
    %18 = memref.load %arg1[%c6] : memref<98xf32, #tpu.memory_space<smem>>
    %c7 = arith.constant 7 : index
    %19 = memref.load %arg1[%c7] : memref<98xf32, #tpu.memory_space<smem>>
    %c8 = arith.constant 8 : index
    %20 = memref.load %arg1[%c8] : memref<98xf32, #tpu.memory_space<smem>>
    %c9 = arith.constant 9 : index
    %21 = memref.load %arg1[%c9] : memref<98xf32, #tpu.memory_space<smem>>
    %c10 = arith.constant 10 : index
    %22 = memref.load %arg1[%c10] : memref<98xf32, #tpu.memory_space<smem>>
    %c11 = arith.constant 11 : index
    %23 = memref.load %arg1[%c11] : memref<98xf32, #tpu.memory_space<smem>>
    %c12 = arith.constant 12 : index
    %24 = memref.load %arg1[%c12] : memref<98xf32, #tpu.memory_space<smem>>
    %c13 = arith.constant 13 : index
    %25 = memref.load %arg1[%c13] : memref<98xf32, #tpu.memory_space<smem>>
    %c14 = arith.constant 14 : index
    %26 = memref.load %arg1[%c14] : memref<98xf32, #tpu.memory_space<smem>>
    %c15 = arith.constant 15 : index
    %27 = memref.load %arg1[%c15] : memref<98xf32, #tpu.memory_space<smem>>
    %c16 = arith.constant 16 : index
    %28 = memref.load %arg1[%c16] : memref<98xf32, #tpu.memory_space<smem>>
    %c17 = arith.constant 17 : index
    %29 = memref.load %arg1[%c17] : memref<98xf32, #tpu.memory_space<smem>>
    %c18 = arith.constant 18 : index
    %30 = memref.load %arg1[%c18] : memref<98xf32, #tpu.memory_space<smem>>
    %c19 = arith.constant 19 : index
    %31 = memref.load %arg1[%c19] : memref<98xf32, #tpu.memory_space<smem>>
    %c20 = arith.constant 20 : index
    %32 = memref.load %arg1[%c20] : memref<98xf32, #tpu.memory_space<smem>>
    %c21 = arith.constant 21 : index
    %33 = memref.load %arg1[%c21] : memref<98xf32, #tpu.memory_space<smem>>
    %c22 = arith.constant 22 : index
    %34 = memref.load %arg1[%c22] : memref<98xf32, #tpu.memory_space<smem>>
    %c23 = arith.constant 23 : index
    %35 = memref.load %arg1[%c23] : memref<98xf32, #tpu.memory_space<smem>>
    %c24 = arith.constant 24 : index
    %36 = memref.load %arg1[%c24] : memref<98xf32, #tpu.memory_space<smem>>
    %c25 = arith.constant 25 : index
    %37 = memref.load %arg1[%c25] : memref<98xf32, #tpu.memory_space<smem>>
    %c26 = arith.constant 26 : index
    %38 = memref.load %arg1[%c26] : memref<98xf32, #tpu.memory_space<smem>>
    %c27 = arith.constant 27 : index
    %39 = memref.load %arg1[%c27] : memref<98xf32, #tpu.memory_space<smem>>
    %c28 = arith.constant 28 : index
    %40 = memref.load %arg1[%c28] : memref<98xf32, #tpu.memory_space<smem>>
    %c29 = arith.constant 29 : index
    %41 = memref.load %arg1[%c29] : memref<98xf32, #tpu.memory_space<smem>>
    %c30 = arith.constant 30 : index
    %42 = memref.load %arg1[%c30] : memref<98xf32, #tpu.memory_space<smem>>
    %c31 = arith.constant 31 : index
    %43 = memref.load %arg1[%c31] : memref<98xf32, #tpu.memory_space<smem>>
    %c32 = arith.constant 32 : index
    %44 = memref.load %arg1[%c32] : memref<98xf32, #tpu.memory_space<smem>>
    %c33 = arith.constant 33 : index
    %45 = memref.load %arg1[%c33] : memref<98xf32, #tpu.memory_space<smem>>
    %c34 = arith.constant 34 : index
    %46 = memref.load %arg1[%c34] : memref<98xf32, #tpu.memory_space<smem>>
    %c35 = arith.constant 35 : index
    %47 = memref.load %arg1[%c35] : memref<98xf32, #tpu.memory_space<smem>>
    %c36 = arith.constant 36 : index
    %48 = memref.load %arg1[%c36] : memref<98xf32, #tpu.memory_space<smem>>
    %c37 = arith.constant 37 : index
    %49 = memref.load %arg1[%c37] : memref<98xf32, #tpu.memory_space<smem>>
    %c38 = arith.constant 38 : index
    %50 = memref.load %arg1[%c38] : memref<98xf32, #tpu.memory_space<smem>>
    %c39 = arith.constant 39 : index
    %51 = memref.load %arg1[%c39] : memref<98xf32, #tpu.memory_space<smem>>
    %c40 = arith.constant 40 : index
    %52 = memref.load %arg1[%c40] : memref<98xf32, #tpu.memory_space<smem>>
    %c41 = arith.constant 41 : index
    %53 = memref.load %arg1[%c41] : memref<98xf32, #tpu.memory_space<smem>>
    %c42 = arith.constant 42 : index
    %54 = memref.load %arg1[%c42] : memref<98xf32, #tpu.memory_space<smem>>
    %c43 = arith.constant 43 : index
    %55 = memref.load %arg1[%c43] : memref<98xf32, #tpu.memory_space<smem>>
    %c44 = arith.constant 44 : index
    %56 = memref.load %arg1[%c44] : memref<98xf32, #tpu.memory_space<smem>>
    %c45 = arith.constant 45 : index
    %57 = memref.load %arg1[%c45] : memref<98xf32, #tpu.memory_space<smem>>
    %c46 = arith.constant 46 : index
    %58 = memref.load %arg1[%c46] : memref<98xf32, #tpu.memory_space<smem>>
    %c47 = arith.constant 47 : index
    %59 = memref.load %arg1[%c47] : memref<98xf32, #tpu.memory_space<smem>>
    %c48 = arith.constant 48 : index
    %60 = memref.load %arg1[%c48] : memref<98xf32, #tpu.memory_space<smem>>
    %c49 = arith.constant 49 : index
    %61 = memref.load %arg1[%c49] : memref<98xf32, #tpu.memory_space<smem>>
    %c50 = arith.constant 50 : index
    %62 = memref.load %arg1[%c50] : memref<98xf32, #tpu.memory_space<smem>>
    %c51 = arith.constant 51 : index
    %63 = memref.load %arg1[%c51] : memref<98xf32, #tpu.memory_space<smem>>
    %c52 = arith.constant 52 : index
    %64 = memref.load %arg1[%c52] : memref<98xf32, #tpu.memory_space<smem>>
    %c53 = arith.constant 53 : index
    %65 = memref.load %arg1[%c53] : memref<98xf32, #tpu.memory_space<smem>>
    %c54 = arith.constant 54 : index
    %66 = memref.load %arg1[%c54] : memref<98xf32, #tpu.memory_space<smem>>
    %c55 = arith.constant 55 : index
    %67 = memref.load %arg1[%c55] : memref<98xf32, #tpu.memory_space<smem>>
    %c56 = arith.constant 56 : index
    %68 = memref.load %arg1[%c56] : memref<98xf32, #tpu.memory_space<smem>>
    %c57 = arith.constant 57 : index
    %69 = memref.load %arg1[%c57] : memref<98xf32, #tpu.memory_space<smem>>
    %c58 = arith.constant 58 : index
    %70 = memref.load %arg1[%c58] : memref<98xf32, #tpu.memory_space<smem>>
    %c59 = arith.constant 59 : index
    %71 = memref.load %arg1[%c59] : memref<98xf32, #tpu.memory_space<smem>>
    %c60 = arith.constant 60 : index
    %72 = memref.load %arg1[%c60] : memref<98xf32, #tpu.memory_space<smem>>
    %c61 = arith.constant 61 : index
    %73 = memref.load %arg1[%c61] : memref<98xf32, #tpu.memory_space<smem>>
    %c62 = arith.constant 62 : index
    %74 = memref.load %arg1[%c62] : memref<98xf32, #tpu.memory_space<smem>>
    %c63 = arith.constant 63 : index
    %75 = memref.load %arg1[%c63] : memref<98xf32, #tpu.memory_space<smem>>
    %c64 = arith.constant 64 : index
    %76 = memref.load %arg1[%c64] : memref<98xf32, #tpu.memory_space<smem>>
    %c65 = arith.constant 65 : index
    %77 = memref.load %arg1[%c65] : memref<98xf32, #tpu.memory_space<smem>>
    %c66 = arith.constant 66 : index
    %78 = memref.load %arg1[%c66] : memref<98xf32, #tpu.memory_space<smem>>
    %c67 = arith.constant 67 : index
    %79 = memref.load %arg1[%c67] : memref<98xf32, #tpu.memory_space<smem>>
    %c68 = arith.constant 68 : index
    %80 = memref.load %arg1[%c68] : memref<98xf32, #tpu.memory_space<smem>>
    %c69 = arith.constant 69 : index
    %81 = memref.load %arg1[%c69] : memref<98xf32, #tpu.memory_space<smem>>
    %c70 = arith.constant 70 : index
    %82 = memref.load %arg1[%c70] : memref<98xf32, #tpu.memory_space<smem>>
    %c71 = arith.constant 71 : index
    %83 = memref.load %arg1[%c71] : memref<98xf32, #tpu.memory_space<smem>>
    %c72 = arith.constant 72 : index
    %84 = memref.load %arg1[%c72] : memref<98xf32, #tpu.memory_space<smem>>
    %c73 = arith.constant 73 : index
    %85 = memref.load %arg1[%c73] : memref<98xf32, #tpu.memory_space<smem>>
    %c74 = arith.constant 74 : index
    %86 = memref.load %arg1[%c74] : memref<98xf32, #tpu.memory_space<smem>>
    %c75 = arith.constant 75 : index
    %87 = memref.load %arg1[%c75] : memref<98xf32, #tpu.memory_space<smem>>
    %c76 = arith.constant 76 : index
    %88 = memref.load %arg1[%c76] : memref<98xf32, #tpu.memory_space<smem>>
    %c77 = arith.constant 77 : index
    %89 = memref.load %arg1[%c77] : memref<98xf32, #tpu.memory_space<smem>>
    %c78 = arith.constant 78 : index
    %90 = memref.load %arg1[%c78] : memref<98xf32, #tpu.memory_space<smem>>
    %c79 = arith.constant 79 : index
    %91 = memref.load %arg1[%c79] : memref<98xf32, #tpu.memory_space<smem>>
    %c80 = arith.constant 80 : index
    %92 = memref.load %arg1[%c80] : memref<98xf32, #tpu.memory_space<smem>>
    %c81 = arith.constant 81 : index
    %93 = memref.load %arg1[%c81] : memref<98xf32, #tpu.memory_space<smem>>
    %c82 = arith.constant 82 : index
    %94 = memref.load %arg1[%c82] : memref<98xf32, #tpu.memory_space<smem>>
    %c83 = arith.constant 83 : index
    %95 = memref.load %arg1[%c83] : memref<98xf32, #tpu.memory_space<smem>>
    %c84 = arith.constant 84 : index
    %96 = memref.load %arg1[%c84] : memref<98xf32, #tpu.memory_space<smem>>
    %c85 = arith.constant 85 : index
    %97 = memref.load %arg1[%c85] : memref<98xf32, #tpu.memory_space<smem>>
    %c86 = arith.constant 86 : index
    %98 = memref.load %arg1[%c86] : memref<98xf32, #tpu.memory_space<smem>>
    %c87 = arith.constant 87 : index
    %99 = memref.load %arg1[%c87] : memref<98xf32, #tpu.memory_space<smem>>
    %c88 = arith.constant 88 : index
    %100 = memref.load %arg1[%c88] : memref<98xf32, #tpu.memory_space<smem>>
    %c89 = arith.constant 89 : index
    %101 = memref.load %arg1[%c89] : memref<98xf32, #tpu.memory_space<smem>>
    %c90 = arith.constant 90 : index
    %102 = memref.load %arg1[%c90] : memref<98xf32, #tpu.memory_space<smem>>
    %c91 = arith.constant 91 : index
    %103 = memref.load %arg1[%c91] : memref<98xf32, #tpu.memory_space<smem>>
    %c92 = arith.constant 92 : index
    %104 = memref.load %arg1[%c92] : memref<98xf32, #tpu.memory_space<smem>>
    %c93 = arith.constant 93 : index
    %105 = memref.load %arg1[%c93] : memref<98xf32, #tpu.memory_space<smem>>
    %c94 = arith.constant 94 : index
    %106 = memref.load %arg1[%c94] : memref<98xf32, #tpu.memory_space<smem>>
    %c95 = arith.constant 95 : index
    %107 = memref.load %arg1[%c95] : memref<98xf32, #tpu.memory_space<smem>>
    %c96 = arith.constant 96 : index
    %108 = memref.load %arg1[%c96] : memref<98xf32, #tpu.memory_space<smem>>
    %c97 = arith.constant 97 : index
    %109 = memref.load %arg1[%c97] : memref<98xf32, #tpu.memory_space<smem>>
    %c0_17 = arith.constant 0 : index
    %c0_18 = arith.constant 0 : index
    %c0_19 = arith.constant 0 : index
    %110 = vector.load %arg4[%c0_17, %c0_18, %c0_19] : memref<2x22x128xf32, #tpu.memory_space<vmem>>, vector<1x14x128xf32>
    %111 = vector.shape_cast %110 : vector<1x14x128xf32> to vector<14x128xf32>
    %c3_i32 = arith.constant 3 : i32
    %112 = tpu.dynamic_rotate %111 by %c3_i32 dim 1 : vector<14x128xf32>, i32 -> vector<14x128xf32>
    %113 = vector.extract_strided_slice %112 {offsets = [0, 0], sizes = [8, 128], strides = [1, 1]} : vector<14x128xf32> to vector<8x128xf32>
    %114 = vector.broadcast %12 : f32 to vector<8x128xf32>
    %115 = arith.mulf %114, %113 : vector<8x128xf32>
    %116 = vector.extract_strided_slice %112 {offsets = [1, 0], sizes = [8, 128], strides = [1, 1]} : vector<14x128xf32> to vector<8x128xf32>
    %117 = vector.broadcast %19 : f32 to vector<8x128xf32>
    %118 = arith.mulf %117, %116 : vector<8x128xf32>
    %119 = arith.addf %115, %118 : vector<8x128xf32>
    %120 = vector.extract_strided_slice %112 {offsets = [2, 0], sizes = [8, 128], strides = [1, 1]} : vector<14x128xf32> to vector<8x128xf32>
    %121 = vector.broadcast %26 : f32 to vector<8x128xf32>
    %122 = arith.mulf %121, %120 : vector<8x128xf32>
    %123 = arith.addf %119, %122 : vector<8x128xf32>
    %124 = vector.extract_strided_slice %112 {offsets = [3, 0], sizes = [8, 128], strides = [1, 1]} : vector<14x128xf32> to vector<8x128xf32>
    %125 = vector.broadcast %33 : f32 to vector<8x128xf32>
    %126 = arith.mulf %125, %124 : vector<8x128xf32>
    %127 = arith.addf %123, %126 : vector<8x128xf32>
    %128 = vector.extract_strided_slice %112 {offsets = [4, 0], sizes = [8, 128], strides = [1, 1]} : vector<14x128xf32> to vector<8x128xf32>
    %129 = vector.broadcast %40 : f32 to vector<8x128xf32>
    %130 = arith.mulf %129, %128 : vector<8x128xf32>
    %131 = arith.addf %127, %130 : vector<8x128xf32>
    %132 = vector.extract_strided_slice %112 {offsets = [5, 0], sizes = [8, 128], strides = [1, 1]} : vector<14x128xf32> to vector<8x128xf32>
    %133 = vector.broadcast %47 : f32 to vector<8x128xf32>
    %134 = arith.mulf %133, %132 : vector<8x128xf32>
    %135 = arith.addf %131, %134 : vector<8x128xf32>
    %136 = vector.extract_strided_slice %112 {offsets = [6, 0], sizes = [8, 128], strides = [1, 1]} : vector<14x128xf32> to vector<8x128xf32>
    %137 = vector.broadcast %54 : f32 to vector<8x128xf32>
    %138 = arith.mulf %137, %136 : vector<8x128xf32>
    %139 = arith.addf %135, %138 : vector<8x128xf32>
    %c2_i32 = arith.constant 2 : i32
    %140 = tpu.dynamic_rotate %111 by %c2_i32 dim 1 : vector<14x128xf32>, i32 -> vector<14x128xf32>
    %141 = vector.extract_strided_slice %140 {offsets = [0, 0], sizes = [8, 128], strides = [1, 1]} : vector<14x128xf32> to vector<8x128xf32>
    %142 = vector.broadcast %13 : f32 to vector<8x128xf32>
    %143 = arith.mulf %142, %141 : vector<8x128xf32>
    %144 = vector.extract_strided_slice %140 {offsets = [1, 0], sizes = [8, 128], strides = [1, 1]} : vector<14x128xf32> to vector<8x128xf32>
    %145 = vector.broadcast %20 : f32 to vector<8x128xf32>
    %146 = arith.mulf %145, %144 : vector<8x128xf32>
    %147 = arith.addf %143, %146 : vector<8x128xf32>
    %148 = vector.extract_strided_slice %140 {offsets = [2, 0], sizes = [8, 128], strides = [1, 1]} : vector<14x128xf32> to vector<8x128xf32>
    %149 = vector.broadcast %27 : f32 to vector<8x128xf32>
    %150 = arith.mulf %149, %148 : vector<8x128xf32>
    %151 = arith.addf %147, %150 : vector<8x128xf32>
    %152 = vector.extract_strided_slice %140 {offsets = [3, 0], sizes = [8, 128], strides = [1, 1]} : vector<14x128xf32> to vector<8x128xf32>
    %153 = vector.broadcast %34 : f32 to vector<8x128xf32>
    %154 = arith.mulf %153, %152 : vector<8x128xf32>
    %155 = arith.addf %151, %154 : vector<8x128xf32>
    %156 = vector.extract_strided_slice %140 {offsets = [4, 0], sizes = [8, 128], strides = [1, 1]} : vector<14x128xf32> to vector<8x128xf32>
    %157 = vector.broadcast %41 : f32 to vector<8x128xf32>
    %158 = arith.mulf %157, %156 : vector<8x128xf32>
    %159 = arith.addf %155, %158 : vector<8x128xf32>
    %160 = vector.extract_strided_slice %140 {offsets = [5, 0], sizes = [8, 128], strides = [1, 1]} : vector<14x128xf32> to vector<8x128xf32>
    %161 = vector.broadcast %48 : f32 to vector<8x128xf32>
    %162 = arith.mulf %161, %160 : vector<8x128xf32>
    %163 = arith.addf %159, %162 : vector<8x128xf32>
    %164 = vector.extract_strided_slice %140 {offsets = [6, 0], sizes = [8, 128], strides = [1, 1]} : vector<14x128xf32> to vector<8x128xf32>
    %165 = vector.broadcast %55 : f32 to vector<8x128xf32>
    %166 = arith.mulf %165, %164 : vector<8x128xf32>
    %167 = arith.addf %163, %166 : vector<8x128xf32>
    %c1_i32 = arith.constant 1 : i32
    %168 = tpu.dynamic_rotate %111 by %c1_i32 dim 1 : vector<14x128xf32>, i32 -> vector<14x128xf32>
    %169 = vector.extract_strided_slice %168 {offsets = [0, 0], sizes = [8, 128], strides = [1, 1]} : vector<14x128xf32> to vector<8x128xf32>
    %170 = vector.broadcast %14 : f32 to vector<8x128xf32>
    %171 = arith.mulf %170, %169 : vector<8x128xf32>
    %172 = arith.addf %139, %171 : vector<8x128xf32>
    %173 = vector.extract_strided_slice %168 {offsets = [1, 0], sizes = [8, 128], strides = [1, 1]} : vector<14x128xf32> to vector<8x128xf32>
    %174 = vector.broadcast %21 : f32 to vector<8x128xf32>
    %175 = arith.mulf %174, %173 : vector<8x128xf32>
    %176 = arith.addf %172, %175 : vector<8x128xf32>
    %177 = vector.extract_strided_slice %168 {offsets = [2, 0], sizes = [8, 128], strides = [1, 1]} : vector<14x128xf32> to vector<8x128xf32>
    %178 = vector.broadcast %28 : f32 to vector<8x128xf32>
    %179 = arith.mulf %178, %177 : vector<8x128xf32>
    %180 = arith.addf %176, %179 : vector<8x128xf32>
    %181 = vector.extract_strided_slice %168 {offsets = [3, 0], sizes = [8, 128], strides = [1, 1]} : vector<14x128xf32> to vector<8x128xf32>
    %182 = vector.broadcast %35 : f32 to vector<8x128xf32>
    %183 = arith.mulf %182, %181 : vector<8x128xf32>
    %184 = arith.addf %180, %183 : vector<8x128xf32>
    %185 = vector.extract_strided_slice %168 {offsets = [4, 0], sizes = [8, 128], strides = [1, 1]} : vector<14x128xf32> to vector<8x128xf32>
    %186 = vector.broadcast %42 : f32 to vector<8x128xf32>
    %187 = arith.mulf %186, %185 : vector<8x128xf32>
    %188 = arith.addf %184, %187 : vector<8x128xf32>
    %189 = vector.extract_strided_slice %168 {offsets = [5, 0], sizes = [8, 128], strides = [1, 1]} : vector<14x128xf32> to vector<8x128xf32>
    %190 = vector.broadcast %49 : f32 to vector<8x128xf32>
    %191 = arith.mulf %190, %189 : vector<8x128xf32>
    %192 = arith.addf %188, %191 : vector<8x128xf32>
    %193 = vector.extract_strided_slice %168 {offsets = [6, 0], sizes = [8, 128], strides = [1, 1]} : vector<14x128xf32> to vector<8x128xf32>
    %194 = vector.broadcast %56 : f32 to vector<8x128xf32>
    %195 = arith.mulf %194, %193 : vector<8x128xf32>
    %196 = arith.addf %192, %195 : vector<8x128xf32>
    %197 = vector.extract_strided_slice %111 {offsets = [0, 0], sizes = [8, 128], strides = [1, 1]} : vector<14x128xf32> to vector<8x128xf32>
    %198 = vector.broadcast %15 : f32 to vector<8x128xf32>
    %199 = arith.mulf %198, %197 : vector<8x128xf32>
    %200 = arith.addf %167, %199 : vector<8x128xf32>
    %201 = vector.extract_strided_slice %111 {offsets = [1, 0], sizes = [8, 128], strides = [1, 1]} : vector<14x128xf32> to vector<8x128xf32>
    %202 = vector.broadcast %22 : f32 to vector<8x128xf32>
    %203 = arith.mulf %202, %201 : vector<8x128xf32>
    %204 = arith.addf %200, %203 : vector<8x128xf32>
    %205 = vector.extract_strided_slice %111 {offsets = [2, 0], sizes = [8, 128], strides = [1, 1]} : vector<14x128xf32> to vector<8x128xf32>
    %206 = vector.broadcast %29 : f32 to vector<8x128xf32>
    %207 = arith.mulf %206, %205 : vector<8x128xf32>
    %208 = arith.addf %204, %207 : vector<8x128xf32>
    %209 = vector.extract_strided_slice %111 {offsets = [3, 0], sizes = [8, 128], strides = [1, 1]} : vector<14x128xf32> to vector<8x128xf32>
    %210 = vector.broadcast %36 : f32 to vector<8x128xf32>
    %211 = arith.mulf %210, %209 : vector<8x128xf32>
    %212 = arith.addf %208, %211 : vector<8x128xf32>
    %213 = vector.extract_strided_slice %111 {offsets = [4, 0], sizes = [8, 128], strides = [1, 1]} : vector<14x128xf32> to vector<8x128xf32>
    %214 = vector.broadcast %43 : f32 to vector<8x128xf32>
    %215 = arith.mulf %214, %213 : vector<8x128xf32>
    %216 = arith.addf %212, %215 : vector<8x128xf32>
    %217 = vector.extract_strided_slice %111 {offsets = [5, 0], sizes = [8, 128], strides = [1, 1]} : vector<14x128xf32> to vector<8x128xf32>
    %218 = vector.broadcast %50 : f32 to vector<8x128xf32>
    %219 = arith.mulf %218, %217 : vector<8x128xf32>
    %220 = arith.addf %216, %219 : vector<8x128xf32>
    %221 = vector.extract_strided_slice %111 {offsets = [6, 0], sizes = [8, 128], strides = [1, 1]} : vector<14x128xf32> to vector<8x128xf32>
    %222 = vector.broadcast %57 : f32 to vector<8x128xf32>
    %223 = arith.mulf %222, %221 : vector<8x128xf32>
    %224 = arith.addf %220, %223 : vector<8x128xf32>
    %c127_i32 = arith.constant 127 : i32
    %225 = tpu.dynamic_rotate %111 by %c127_i32 dim 1 : vector<14x128xf32>, i32 -> vector<14x128xf32>
    %226 = vector.extract_strided_slice %225 {offsets = [0, 0], sizes = [8, 128], strides = [1, 1]} : vector<14x128xf32> to vector<8x128xf32>
    %227 = vector.broadcast %16 : f32 to vector<8x128xf32>
    %228 = arith.mulf %227, %226 : vector<8x128xf32>
    %229 = arith.addf %196, %228 : vector<8x128xf32>
    %230 = vector.extract_strided_slice %225 {offsets = [1, 0], sizes = [8, 128], strides = [1, 1]} : vector<14x128xf32> to vector<8x128xf32>
    %231 = vector.broadcast %23 : f32 to vector<8x128xf32>
    %232 = arith.mulf %231, %230 : vector<8x128xf32>
    %233 = arith.addf %229, %232 : vector<8x128xf32>
    %234 = vector.extract_strided_slice %225 {offsets = [2, 0], sizes = [8, 128], strides = [1, 1]} : vector<14x128xf32> to vector<8x128xf32>
    %235 = vector.broadcast %30 : f32 to vector<8x128xf32>
    %236 = arith.mulf %235, %234 : vector<8x128xf32>
    %237 = arith.addf %233, %236 : vector<8x128xf32>
    %238 = vector.extract_strided_slice %225 {offsets = [3, 0], sizes = [8, 128], strides = [1, 1]} : vector<14x128xf32> to vector<8x128xf32>
    %239 = vector.broadcast %37 : f32 to vector<8x128xf32>
    %240 = arith.mulf %239, %238 : vector<8x128xf32>
    %241 = arith.addf %237, %240 : vector<8x128xf32>
    %242 = vector.extract_strided_slice %225 {offsets = [4, 0], sizes = [8, 128], strides = [1, 1]} : vector<14x128xf32> to vector<8x128xf32>
    %243 = vector.broadcast %44 : f32 to vector<8x128xf32>
    %244 = arith.mulf %243, %242 : vector<8x128xf32>
    %245 = arith.addf %241, %244 : vector<8x128xf32>
    %246 = vector.extract_strided_slice %225 {offsets = [5, 0], sizes = [8, 128], strides = [1, 1]} : vector<14x128xf32> to vector<8x128xf32>
    %247 = vector.broadcast %51 : f32 to vector<8x128xf32>
    %248 = arith.mulf %247, %246 : vector<8x128xf32>
    %249 = arith.addf %245, %248 : vector<8x128xf32>
    %250 = vector.extract_strided_slice %225 {offsets = [6, 0], sizes = [8, 128], strides = [1, 1]} : vector<14x128xf32> to vector<8x128xf32>
    %251 = vector.broadcast %58 : f32 to vector<8x128xf32>
    %252 = arith.mulf %251, %250 : vector<8x128xf32>
    %253 = arith.addf %249, %252 : vector<8x128xf32>
    %c126_i32 = arith.constant 126 : i32
    %254 = tpu.dynamic_rotate %111 by %c126_i32 dim 1 : vector<14x128xf32>, i32 -> vector<14x128xf32>
    %255 = vector.extract_strided_slice %254 {offsets = [0, 0], sizes = [8, 128], strides = [1, 1]} : vector<14x128xf32> to vector<8x128xf32>
    %256 = vector.broadcast %17 : f32 to vector<8x128xf32>
    %257 = arith.mulf %256, %255 : vector<8x128xf32>
    %258 = arith.addf %224, %257 : vector<8x128xf32>
    %259 = vector.extract_strided_slice %254 {offsets = [1, 0], sizes = [8, 128], strides = [1, 1]} : vector<14x128xf32> to vector<8x128xf32>
    %260 = vector.broadcast %24 : f32 to vector<8x128xf32>
    %261 = arith.mulf %260, %259 : vector<8x128xf32>
    %262 = arith.addf %258, %261 : vector<8x128xf32>
    %263 = vector.extract_strided_slice %254 {offsets = [2, 0], sizes = [8, 128], strides = [1, 1]} : vector<14x128xf32> to vector<8x128xf32>
    %264 = vector.broadcast %31 : f32 to vector<8x128xf32>
    %265 = arith.mulf %264, %263 : vector<8x128xf32>
    %266 = arith.addf %262, %265 : vector<8x128xf32>
    %267 = vector.extract_strided_slice %254 {offsets = [3, 0], sizes = [8, 128], strides = [1, 1]} : vector<14x128xf32> to vector<8x128xf32>
    %268 = vector.broadcast %38 : f32 to vector<8x128xf32>
    %269 = arith.mulf %268, %267 : vector<8x128xf32>
    %270 = arith.addf %266, %269 : vector<8x128xf32>
    %271 = vector.extract_strided_slice %254 {offsets = [4, 0], sizes = [8, 128], strides = [1, 1]} : vector<14x128xf32> to vector<8x128xf32>
    %272 = vector.broadcast %45 : f32 to vector<8x128xf32>
    %273 = arith.mulf %272, %271 : vector<8x128xf32>
    %274 = arith.addf %270, %273 : vector<8x128xf32>
    %275 = vector.extract_strided_slice %254 {offsets = [5, 0], sizes = [8, 128], strides = [1, 1]} : vector<14x128xf32> to vector<8x128xf32>
    %276 = vector.broadcast %52 : f32 to vector<8x128xf32>
    %277 = arith.mulf %276, %275 : vector<8x128xf32>
    %278 = arith.addf %274, %277 : vector<8x128xf32>
    %279 = vector.extract_strided_slice %254 {offsets = [6, 0], sizes = [8, 128], strides = [1, 1]} : vector<14x128xf32> to vector<8x128xf32>
    %280 = vector.broadcast %59 : f32 to vector<8x128xf32>
    %281 = arith.mulf %280, %279 : vector<8x128xf32>
    %282 = arith.addf %278, %281 : vector<8x128xf32>
    %c125_i32 = arith.constant 125 : i32
    %283 = tpu.dynamic_rotate %111 by %c125_i32 dim 1 : vector<14x128xf32>, i32 -> vector<14x128xf32>
    %284 = vector.extract_strided_slice %283 {offsets = [0, 0], sizes = [8, 128], strides = [1, 1]} : vector<14x128xf32> to vector<8x128xf32>
    %285 = vector.broadcast %18 : f32 to vector<8x128xf32>
    %286 = arith.mulf %285, %284 : vector<8x128xf32>
    %287 = arith.addf %253, %286 : vector<8x128xf32>
    %288 = vector.extract_strided_slice %283 {offsets = [1, 0], sizes = [8, 128], strides = [1, 1]} : vector<14x128xf32> to vector<8x128xf32>
    %289 = vector.broadcast %25 : f32 to vector<8x128xf32>
    %290 = arith.mulf %289, %288 : vector<8x128xf32>
    %291 = arith.addf %287, %290 : vector<8x128xf32>
    %292 = vector.extract_strided_slice %283 {offsets = [2, 0], sizes = [8, 128], strides = [1, 1]} : vector<14x128xf32> to vector<8x128xf32>
    %293 = vector.broadcast %32 : f32 to vector<8x128xf32>
    %294 = arith.mulf %293, %292 : vector<8x128xf32>
    %295 = arith.addf %291, %294 : vector<8x128xf32>
    %296 = vector.extract_strided_slice %283 {offsets = [3, 0], sizes = [8, 128], strides = [1, 1]} : vector<14x128xf32> to vector<8x128xf32>
    %297 = vector.broadcast %39 : f32 to vector<8x128xf32>
    %298 = arith.mulf %297, %296 : vector<8x128xf32>
    %299 = arith.addf %295, %298 : vector<8x128xf32>
    %300 = vector.extract_strided_slice %283 {offsets = [4, 0], sizes = [8, 128], strides = [1, 1]} : vector<14x128xf32> to vector<8x128xf32>
    %301 = vector.broadcast %46 : f32 to vector<8x128xf32>
    %302 = arith.mulf %301, %300 : vector<8x128xf32>
    %303 = arith.addf %299, %302 : vector<8x128xf32>
    %304 = vector.extract_strided_slice %283 {offsets = [5, 0], sizes = [8, 128], strides = [1, 1]} : vector<14x128xf32> to vector<8x128xf32>
    %305 = vector.broadcast %53 : f32 to vector<8x128xf32>
    %306 = arith.mulf %305, %304 : vector<8x128xf32>
    %307 = arith.addf %303, %306 : vector<8x128xf32>
    %308 = vector.extract_strided_slice %283 {offsets = [6, 0], sizes = [8, 128], strides = [1, 1]} : vector<14x128xf32> to vector<8x128xf32>
    %309 = vector.broadcast %60 : f32 to vector<8x128xf32>
    %310 = arith.mulf %309, %308 : vector<8x128xf32>
    %311 = arith.addf %307, %310 : vector<8x128xf32>
    %c1_20 = arith.constant 1 : index
    %c0_21 = arith.constant 0 : index
    %c0_22 = arith.constant 0 : index
    %312 = vector.load %arg4[%c1_20, %c0_21, %c0_22] : memref<2x22x128xf32, #tpu.memory_space<vmem>>, vector<1x14x128xf32>
    %313 = vector.shape_cast %312 : vector<1x14x128xf32> to vector<14x128xf32>
    %c3_i32_23 = arith.constant 3 : i32
    %314 = tpu.dynamic_rotate %313 by %c3_i32_23 dim 1 : vector<14x128xf32>, i32 -> vector<14x128xf32>
    %315 = vector.extract_strided_slice %314 {offsets = [0, 0], sizes = [8, 128], strides = [1, 1]} : vector<14x128xf32> to vector<8x128xf32>
    %316 = vector.broadcast %61 : f32 to vector<8x128xf32>
    %317 = arith.mulf %316, %315 : vector<8x128xf32>
    %318 = vector.extract_strided_slice %314 {offsets = [1, 0], sizes = [8, 128], strides = [1, 1]} : vector<14x128xf32> to vector<8x128xf32>
    %319 = vector.broadcast %68 : f32 to vector<8x128xf32>
    %320 = arith.mulf %319, %318 : vector<8x128xf32>
    %321 = arith.addf %317, %320 : vector<8x128xf32>
    %322 = vector.extract_strided_slice %314 {offsets = [2, 0], sizes = [8, 128], strides = [1, 1]} : vector<14x128xf32> to vector<8x128xf32>
    %323 = vector.broadcast %75 : f32 to vector<8x128xf32>
    %324 = arith.mulf %323, %322 : vector<8x128xf32>
    %325 = arith.addf %321, %324 : vector<8x128xf32>
    %326 = vector.extract_strided_slice %314 {offsets = [3, 0], sizes = [8, 128], strides = [1, 1]} : vector<14x128xf32> to vector<8x128xf32>
    %327 = vector.broadcast %82 : f32 to vector<8x128xf32>
    %328 = arith.mulf %327, %326 : vector<8x128xf32>
    %329 = arith.addf %325, %328 : vector<8x128xf32>
    %330 = vector.extract_strided_slice %314 {offsets = [4, 0], sizes = [8, 128], strides = [1, 1]} : vector<14x128xf32> to vector<8x128xf32>
    %331 = vector.broadcast %89 : f32 to vector<8x128xf32>
    %332 = arith.mulf %331, %330 : vector<8x128xf32>
    %333 = arith.addf %329, %332 : vector<8x128xf32>
    %334 = vector.extract_strided_slice %314 {offsets = [5, 0], sizes = [8, 128], strides = [1, 1]} : vector<14x128xf32> to vector<8x128xf32>
    %335 = vector.broadcast %96 : f32 to vector<8x128xf32>
    %336 = arith.mulf %335, %334 : vector<8x128xf32>
    %337 = arith.addf %333, %336 : vector<8x128xf32>
    %338 = vector.extract_strided_slice %314 {offsets = [6, 0], sizes = [8, 128], strides = [1, 1]} : vector<14x128xf32> to vector<8x128xf32>
    %339 = vector.broadcast %103 : f32 to vector<8x128xf32>
    %340 = arith.mulf %339, %338 : vector<8x128xf32>
    %341 = arith.addf %337, %340 : vector<8x128xf32>
    %c2_i32_24 = arith.constant 2 : i32
    %342 = tpu.dynamic_rotate %313 by %c2_i32_24 dim 1 : vector<14x128xf32>, i32 -> vector<14x128xf32>
    %343 = vector.extract_strided_slice %342 {offsets = [0, 0], sizes = [8, 128], strides = [1, 1]} : vector<14x128xf32> to vector<8x128xf32>
    %344 = vector.broadcast %62 : f32 to vector<8x128xf32>
    %345 = arith.mulf %344, %343 : vector<8x128xf32>
    %346 = vector.extract_strided_slice %342 {offsets = [1, 0], sizes = [8, 128], strides = [1, 1]} : vector<14x128xf32> to vector<8x128xf32>
    %347 = vector.broadcast %69 : f32 to vector<8x128xf32>
    %348 = arith.mulf %347, %346 : vector<8x128xf32>
    %349 = arith.addf %345, %348 : vector<8x128xf32>
    %350 = vector.extract_strided_slice %342 {offsets = [2, 0], sizes = [8, 128], strides = [1, 1]} : vector<14x128xf32> to vector<8x128xf32>
    %351 = vector.broadcast %76 : f32 to vector<8x128xf32>
    %352 = arith.mulf %351, %350 : vector<8x128xf32>
    %353 = arith.addf %349, %352 : vector<8x128xf32>
    %354 = vector.extract_strided_slice %342 {offsets = [3, 0], sizes = [8, 128], strides = [1, 1]} : vector<14x128xf32> to vector<8x128xf32>
    %355 = vector.broadcast %83 : f32 to vector<8x128xf32>
    %356 = arith.mulf %355, %354 : vector<8x128xf32>
    %357 = arith.addf %353, %356 : vector<8x128xf32>
    %358 = vector.extract_strided_slice %342 {offsets = [4, 0], sizes = [8, 128], strides = [1, 1]} : vector<14x128xf32> to vector<8x128xf32>
    %359 = vector.broadcast %90 : f32 to vector<8x128xf32>
    %360 = arith.mulf %359, %358 : vector<8x128xf32>
    %361 = arith.addf %357, %360 : vector<8x128xf32>
    %362 = vector.extract_strided_slice %342 {offsets = [5, 0], sizes = [8, 128], strides = [1, 1]} : vector<14x128xf32> to vector<8x128xf32>
    %363 = vector.broadcast %97 : f32 to vector<8x128xf32>
    %364 = arith.mulf %363, %362 : vector<8x128xf32>
    %365 = arith.addf %361, %364 : vector<8x128xf32>
    %366 = vector.extract_strided_slice %342 {offsets = [6, 0], sizes = [8, 128], strides = [1, 1]} : vector<14x128xf32> to vector<8x128xf32>
    %367 = vector.broadcast %104 : f32 to vector<8x128xf32>
    %368 = arith.mulf %367, %366 : vector<8x128xf32>
    %369 = arith.addf %365, %368 : vector<8x128xf32>
    %c1_i32_25 = arith.constant 1 : i32
    %370 = tpu.dynamic_rotate %313 by %c1_i32_25 dim 1 : vector<14x128xf32>, i32 -> vector<14x128xf32>
    %371 = vector.extract_strided_slice %370 {offsets = [0, 0], sizes = [8, 128], strides = [1, 1]} : vector<14x128xf32> to vector<8x128xf32>
    %372 = vector.broadcast %63 : f32 to vector<8x128xf32>
    %373 = arith.mulf %372, %371 : vector<8x128xf32>
    %374 = arith.addf %341, %373 : vector<8x128xf32>
    %375 = vector.extract_strided_slice %370 {offsets = [1, 0], sizes = [8, 128], strides = [1, 1]} : vector<14x128xf32> to vector<8x128xf32>
    %376 = vector.broadcast %70 : f32 to vector<8x128xf32>
    %377 = arith.mulf %376, %375 : vector<8x128xf32>
    %378 = arith.addf %374, %377 : vector<8x128xf32>
    %379 = vector.extract_strided_slice %370 {offsets = [2, 0], sizes = [8, 128], strides = [1, 1]} : vector<14x128xf32> to vector<8x128xf32>
    %380 = vector.broadcast %77 : f32 to vector<8x128xf32>
    %381 = arith.mulf %380, %379 : vector<8x128xf32>
    %382 = arith.addf %378, %381 : vector<8x128xf32>
    %383 = vector.extract_strided_slice %370 {offsets = [3, 0], sizes = [8, 128], strides = [1, 1]} : vector<14x128xf32> to vector<8x128xf32>
    %384 = vector.broadcast %84 : f32 to vector<8x128xf32>
    %385 = arith.mulf %384, %383 : vector<8x128xf32>
    %386 = arith.addf %382, %385 : vector<8x128xf32>
    %387 = vector.extract_strided_slice %370 {offsets = [4, 0], sizes = [8, 128], strides = [1, 1]} : vector<14x128xf32> to vector<8x128xf32>
    %388 = vector.broadcast %91 : f32 to vector<8x128xf32>
    %389 = arith.mulf %388, %387 : vector<8x128xf32>
    %390 = arith.addf %386, %389 : vector<8x128xf32>
    %391 = vector.extract_strided_slice %370 {offsets = [5, 0], sizes = [8, 128], strides = [1, 1]} : vector<14x128xf32> to vector<8x128xf32>
    %392 = vector.broadcast %98 : f32 to vector<8x128xf32>
    %393 = arith.mulf %392, %391 : vector<8x128xf32>
    %394 = arith.addf %390, %393 : vector<8x128xf32>
    %395 = vector.extract_strided_slice %370 {offsets = [6, 0], sizes = [8, 128], strides = [1, 1]} : vector<14x128xf32> to vector<8x128xf32>
    %396 = vector.broadcast %105 : f32 to vector<8x128xf32>
    %397 = arith.mulf %396, %395 : vector<8x128xf32>
    %398 = arith.addf %394, %397 : vector<8x128xf32>
    %399 = vector.extract_strided_slice %313 {offsets = [0, 0], sizes = [8, 128], strides = [1, 1]} : vector<14x128xf32> to vector<8x128xf32>
    %400 = vector.broadcast %64 : f32 to vector<8x128xf32>
    %401 = arith.mulf %400, %399 : vector<8x128xf32>
    %402 = arith.addf %369, %401 : vector<8x128xf32>
    %403 = vector.extract_strided_slice %313 {offsets = [1, 0], sizes = [8, 128], strides = [1, 1]} : vector<14x128xf32> to vector<8x128xf32>
    %404 = vector.broadcast %71 : f32 to vector<8x128xf32>
    %405 = arith.mulf %404, %403 : vector<8x128xf32>
    %406 = arith.addf %402, %405 : vector<8x128xf32>
    %407 = vector.extract_strided_slice %313 {offsets = [2, 0], sizes = [8, 128], strides = [1, 1]} : vector<14x128xf32> to vector<8x128xf32>
    %408 = vector.broadcast %78 : f32 to vector<8x128xf32>
    %409 = arith.mulf %408, %407 : vector<8x128xf32>
    %410 = arith.addf %406, %409 : vector<8x128xf32>
    %411 = vector.extract_strided_slice %313 {offsets = [3, 0], sizes = [8, 128], strides = [1, 1]} : vector<14x128xf32> to vector<8x128xf32>
    %412 = vector.broadcast %85 : f32 to vector<8x128xf32>
    %413 = arith.mulf %412, %411 : vector<8x128xf32>
    %414 = arith.addf %410, %413 : vector<8x128xf32>
    %415 = vector.extract_strided_slice %313 {offsets = [4, 0], sizes = [8, 128], strides = [1, 1]} : vector<14x128xf32> to vector<8x128xf32>
    %416 = vector.broadcast %92 : f32 to vector<8x128xf32>
    %417 = arith.mulf %416, %415 : vector<8x128xf32>
    %418 = arith.addf %414, %417 : vector<8x128xf32>
    %419 = vector.extract_strided_slice %313 {offsets = [5, 0], sizes = [8, 128], strides = [1, 1]} : vector<14x128xf32> to vector<8x128xf32>
    %420 = vector.broadcast %99 : f32 to vector<8x128xf32>
    %421 = arith.mulf %420, %419 : vector<8x128xf32>
    %422 = arith.addf %418, %421 : vector<8x128xf32>
    %423 = vector.extract_strided_slice %313 {offsets = [6, 0], sizes = [8, 128], strides = [1, 1]} : vector<14x128xf32> to vector<8x128xf32>
    %424 = vector.broadcast %106 : f32 to vector<8x128xf32>
    %425 = arith.mulf %424, %423 : vector<8x128xf32>
    %426 = arith.addf %422, %425 : vector<8x128xf32>
    %c127_i32_26 = arith.constant 127 : i32
    %427 = tpu.dynamic_rotate %313 by %c127_i32_26 dim 1 : vector<14x128xf32>, i32 -> vector<14x128xf32>
    %428 = vector.extract_strided_slice %427 {offsets = [0, 0], sizes = [8, 128], strides = [1, 1]} : vector<14x128xf32> to vector<8x128xf32>
    %429 = vector.broadcast %65 : f32 to vector<8x128xf32>
    %430 = arith.mulf %429, %428 : vector<8x128xf32>
    %431 = arith.addf %398, %430 : vector<8x128xf32>
    %432 = vector.extract_strided_slice %427 {offsets = [1, 0], sizes = [8, 128], strides = [1, 1]} : vector<14x128xf32> to vector<8x128xf32>
    %433 = vector.broadcast %72 : f32 to vector<8x128xf32>
    %434 = arith.mulf %433, %432 : vector<8x128xf32>
    %435 = arith.addf %431, %434 : vector<8x128xf32>
    %436 = vector.extract_strided_slice %427 {offsets = [2, 0], sizes = [8, 128], strides = [1, 1]} : vector<14x128xf32> to vector<8x128xf32>
    %437 = vector.broadcast %79 : f32 to vector<8x128xf32>
    %438 = arith.mulf %437, %436 : vector<8x128xf32>
    %439 = arith.addf %435, %438 : vector<8x128xf32>
    %440 = vector.extract_strided_slice %427 {offsets = [3, 0], sizes = [8, 128], strides = [1, 1]} : vector<14x128xf32> to vector<8x128xf32>
    %441 = vector.broadcast %86 : f32 to vector<8x128xf32>
    %442 = arith.mulf %441, %440 : vector<8x128xf32>
    %443 = arith.addf %439, %442 : vector<8x128xf32>
    %444 = vector.extract_strided_slice %427 {offsets = [4, 0], sizes = [8, 128], strides = [1, 1]} : vector<14x128xf32> to vector<8x128xf32>
    %445 = vector.broadcast %93 : f32 to vector<8x128xf32>
    %446 = arith.mulf %445, %444 : vector<8x128xf32>
    %447 = arith.addf %443, %446 : vector<8x128xf32>
    %448 = vector.extract_strided_slice %427 {offsets = [5, 0], sizes = [8, 128], strides = [1, 1]} : vector<14x128xf32> to vector<8x128xf32>
    %449 = vector.broadcast %100 : f32 to vector<8x128xf32>
    %450 = arith.mulf %449, %448 : vector<8x128xf32>
    %451 = arith.addf %447, %450 : vector<8x128xf32>
    %452 = vector.extract_strided_slice %427 {offsets = [6, 0], sizes = [8, 128], strides = [1, 1]} : vector<14x128xf32> to vector<8x128xf32>
    %453 = vector.broadcast %107 : f32 to vector<8x128xf32>
    %454 = arith.mulf %453, %452 : vector<8x128xf32>
    %455 = arith.addf %451, %454 : vector<8x128xf32>
    %c126_i32_27 = arith.constant 126 : i32
    %456 = tpu.dynamic_rotate %313 by %c126_i32_27 dim 1 : vector<14x128xf32>, i32 -> vector<14x128xf32>
    %457 = vector.extract_strided_slice %456 {offsets = [0, 0], sizes = [8, 128], strides = [1, 1]} : vector<14x128xf32> to vector<8x128xf32>
    %458 = vector.broadcast %66 : f32 to vector<8x128xf32>
    %459 = arith.mulf %458, %457 : vector<8x128xf32>
    %460 = arith.addf %426, %459 : vector<8x128xf32>
    %461 = vector.extract_strided_slice %456 {offsets = [1, 0], sizes = [8, 128], strides = [1, 1]} : vector<14x128xf32> to vector<8x128xf32>
    %462 = vector.broadcast %73 : f32 to vector<8x128xf32>
    %463 = arith.mulf %462, %461 : vector<8x128xf32>
    %464 = arith.addf %460, %463 : vector<8x128xf32>
    %465 = vector.extract_strided_slice %456 {offsets = [2, 0], sizes = [8, 128], strides = [1, 1]} : vector<14x128xf32> to vector<8x128xf32>
    %466 = vector.broadcast %80 : f32 to vector<8x128xf32>
    %467 = arith.mulf %466, %465 : vector<8x128xf32>
    %468 = arith.addf %464, %467 : vector<8x128xf32>
    %469 = vector.extract_strided_slice %456 {offsets = [3, 0], sizes = [8, 128], strides = [1, 1]} : vector<14x128xf32> to vector<8x128xf32>
    %470 = vector.broadcast %87 : f32 to vector<8x128xf32>
    %471 = arith.mulf %470, %469 : vector<8x128xf32>
    %472 = arith.addf %468, %471 : vector<8x128xf32>
    %473 = vector.extract_strided_slice %456 {offsets = [4, 0], sizes = [8, 128], strides = [1, 1]} : vector<14x128xf32> to vector<8x128xf32>
    %474 = vector.broadcast %94 : f32 to vector<8x128xf32>
    %475 = arith.mulf %474, %473 : vector<8x128xf32>
    %476 = arith.addf %472, %475 : vector<8x128xf32>
    %477 = vector.extract_strided_slice %456 {offsets = [5, 0], sizes = [8, 128], strides = [1, 1]} : vector<14x128xf32> to vector<8x128xf32>
    %478 = vector.broadcast %101 : f32 to vector<8x128xf32>
    %479 = arith.mulf %478, %477 : vector<8x128xf32>
    %480 = arith.addf %476, %479 : vector<8x128xf32>
    %481 = vector.extract_strided_slice %456 {offsets = [6, 0], sizes = [8, 128], strides = [1, 1]} : vector<14x128xf32> to vector<8x128xf32>
    %482 = vector.broadcast %108 : f32 to vector<8x128xf32>
    %483 = arith.mulf %482, %481 : vector<8x128xf32>
    %484 = arith.addf %480, %483 : vector<8x128xf32>
    %c125_i32_28 = arith.constant 125 : i32
    %485 = tpu.dynamic_rotate %313 by %c125_i32_28 dim 1 : vector<14x128xf32>, i32 -> vector<14x128xf32>
    %486 = vector.extract_strided_slice %485 {offsets = [0, 0], sizes = [8, 128], strides = [1, 1]} : vector<14x128xf32> to vector<8x128xf32>
    %487 = vector.broadcast %67 : f32 to vector<8x128xf32>
    %488 = arith.mulf %487, %486 : vector<8x128xf32>
    %489 = arith.addf %455, %488 : vector<8x128xf32>
    %490 = vector.extract_strided_slice %485 {offsets = [1, 0], sizes = [8, 128], strides = [1, 1]} : vector<14x128xf32> to vector<8x128xf32>
    %491 = vector.broadcast %74 : f32 to vector<8x128xf32>
    %492 = arith.mulf %491, %490 : vector<8x128xf32>
    %493 = arith.addf %489, %492 : vector<8x128xf32>
    %494 = vector.extract_strided_slice %485 {offsets = [2, 0], sizes = [8, 128], strides = [1, 1]} : vector<14x128xf32> to vector<8x128xf32>
    %495 = vector.broadcast %81 : f32 to vector<8x128xf32>
    %496 = arith.mulf %495, %494 : vector<8x128xf32>
    %497 = arith.addf %493, %496 : vector<8x128xf32>
    %498 = vector.extract_strided_slice %485 {offsets = [3, 0], sizes = [8, 128], strides = [1, 1]} : vector<14x128xf32> to vector<8x128xf32>
    %499 = vector.broadcast %88 : f32 to vector<8x128xf32>
    %500 = arith.mulf %499, %498 : vector<8x128xf32>
    %501 = arith.addf %497, %500 : vector<8x128xf32>
    %502 = vector.extract_strided_slice %485 {offsets = [4, 0], sizes = [8, 128], strides = [1, 1]} : vector<14x128xf32> to vector<8x128xf32>
    %503 = vector.broadcast %95 : f32 to vector<8x128xf32>
    %504 = arith.mulf %503, %502 : vector<8x128xf32>
    %505 = arith.addf %501, %504 : vector<8x128xf32>
    %506 = vector.extract_strided_slice %485 {offsets = [5, 0], sizes = [8, 128], strides = [1, 1]} : vector<14x128xf32> to vector<8x128xf32>
    %507 = vector.broadcast %102 : f32 to vector<8x128xf32>
    %508 = arith.mulf %507, %506 : vector<8x128xf32>
    %509 = arith.addf %505, %508 : vector<8x128xf32>
    %510 = vector.extract_strided_slice %485 {offsets = [6, 0], sizes = [8, 128], strides = [1, 1]} : vector<14x128xf32> to vector<8x128xf32>
    %511 = vector.broadcast %109 : f32 to vector<8x128xf32>
    %512 = arith.mulf %511, %510 : vector<8x128xf32>
    %513 = arith.addf %509, %512 : vector<8x128xf32>
    %514 = arith.addf %311, %282 : vector<8x128xf32>
    %515 = arith.addf %513, %484 : vector<8x128xf32>
    %516 = arith.addf %514, %515 : vector<8x128xf32>
    %517 = vector.extract_strided_slice %516 {offsets = [0, 0], sizes = [8, 16], strides = [1, 1]} : vector<8x128xf32> to vector<8x16xf32>
    %518 = arith.negf %517 : vector<8x16xf32>
    %519 = math.exp %518 : vector<8x16xf32>
    %cst_29 = arith.constant 1.000000e+00 : f32
    %520 = vector.broadcast %cst_29 : f32 to vector<8x16xf32>
    %521 = arith.addf %520, %519 : vector<8x16xf32>
    %522 = arith.divf %520, %521 : vector<8x16xf32>
    %c0_30 = arith.constant 0 : index
    %c0_31 = arith.constant 0 : index
    %c0_32 = arith.constant 0 : index
    %c0_33 = arith.constant 0 : index
    %523 = vector.load %arg3[%c0_30, %c0_31, %c0_32, %c0_33] : memref<1x1x16x16xf32, #tpu.memory_space<vmem>>, vector<1x1x8x16xf32>
    %524 = vector.shape_cast %523 : vector<1x1x8x16xf32> to vector<8x16xf32>
    %525 = vector.shape_cast %522 : vector<8x16xf32> to vector<1x1x8x16xf32>
    tpu.vector_store %arg3[%c0_30, %c0_31, %c0_32, %c0_33], %525 {strides = array<i32>} : memref<1x1x16x16xf32, #tpu.memory_space<vmem>>, vector<1x1x8x16xf32>,
    %c0_34 = arith.constant 0 : index
    %c8_35 = arith.constant 8 : index
    %c0_36 = arith.constant 0 : index
    %526 = vector.load %arg4[%c0_34, %c8_35, %c0_36] : memref<2x22x128xf32, #tpu.memory_space<vmem>>, vector<1x14x128xf32>
    %527 = vector.shape_cast %526 : vector<1x14x128xf32> to vector<14x128xf32>
    %c3_i32_37 = arith.constant 3 : i32
    %528 = tpu.dynamic_rotate %527 by %c3_i32_37 dim 1 : vector<14x128xf32>, i32 -> vector<14x128xf32>
    %529 = vector.extract_strided_slice %528 {offsets = [0, 0], sizes = [8, 128], strides = [1, 1]} : vector<14x128xf32> to vector<8x128xf32>
    %530 = vector.broadcast %12 : f32 to vector<8x128xf32>
    %531 = arith.mulf %530, %529 : vector<8x128xf32>
    %532 = vector.extract_strided_slice %528 {offsets = [1, 0], sizes = [8, 128], strides = [1, 1]} : vector<14x128xf32> to vector<8x128xf32>
    %533 = vector.broadcast %19 : f32 to vector<8x128xf32>
    %534 = arith.mulf %533, %532 : vector<8x128xf32>
    %535 = arith.addf %531, %534 : vector<8x128xf32>
    %536 = vector.extract_strided_slice %528 {offsets = [2, 0], sizes = [8, 128], strides = [1, 1]} : vector<14x128xf32> to vector<8x128xf32>
    %537 = vector.broadcast %26 : f32 to vector<8x128xf32>
    %538 = arith.mulf %537, %536 : vector<8x128xf32>
    %539 = arith.addf %535, %538 : vector<8x128xf32>
    %540 = vector.extract_strided_slice %528 {offsets = [3, 0], sizes = [8, 128], strides = [1, 1]} : vector<14x128xf32> to vector<8x128xf32>
    %541 = vector.broadcast %33 : f32 to vector<8x128xf32>
    %542 = arith.mulf %541, %540 : vector<8x128xf32>
    %543 = arith.addf %539, %542 : vector<8x128xf32>
    %544 = vector.extract_strided_slice %528 {offsets = [4, 0], sizes = [8, 128], strides = [1, 1]} : vector<14x128xf32> to vector<8x128xf32>
    %545 = vector.broadcast %40 : f32 to vector<8x128xf32>
    %546 = arith.mulf %545, %544 : vector<8x128xf32>
    %547 = arith.addf %543, %546 : vector<8x128xf32>
    %548 = vector.extract_strided_slice %528 {offsets = [5, 0], sizes = [8, 128], strides = [1, 1]} : vector<14x128xf32> to vector<8x128xf32>
    %549 = vector.broadcast %47 : f32 to vector<8x128xf32>
    %550 = arith.mulf %549, %548 : vector<8x128xf32>
    %551 = arith.addf %547, %550 : vector<8x128xf32>
    %552 = vector.extract_strided_slice %528 {offsets = [6, 0], sizes = [8, 128], strides = [1, 1]} : vector<14x128xf32> to vector<8x128xf32>
    %553 = vector.broadcast %54 : f32 to vector<8x128xf32>
    %554 = arith.mulf %553, %552 : vector<8x128xf32>
    %555 = arith.addf %551, %554 : vector<8x128xf32>
    %c2_i32_38 = arith.constant 2 : i32
    %556 = tpu.dynamic_rotate %527 by %c2_i32_38 dim 1 : vector<14x128xf32>, i32 -> vector<14x128xf32>
    %557 = vector.extract_strided_slice %556 {offsets = [0, 0], sizes = [8, 128], strides = [1, 1]} : vector<14x128xf32> to vector<8x128xf32>
    %558 = vector.broadcast %13 : f32 to vector<8x128xf32>
    %559 = arith.mulf %558, %557 : vector<8x128xf32>
    %560 = vector.extract_strided_slice %556 {offsets = [1, 0], sizes = [8, 128], strides = [1, 1]} : vector<14x128xf32> to vector<8x128xf32>
    %561 = vector.broadcast %20 : f32 to vector<8x128xf32>
    %562 = arith.mulf %561, %560 : vector<8x128xf32>
    %563 = arith.addf %559, %562 : vector<8x128xf32>
    %564 = vector.extract_strided_slice %556 {offsets = [2, 0], sizes = [8, 128], strides = [1, 1]} : vector<14x128xf32> to vector<8x128xf32>
    %565 = vector.broadcast %27 : f32 to vector<8x128xf32>
    %566 = arith.mulf %565, %564 : vector<8x128xf32>
    %567 = arith.addf %563, %566 : vector<8x128xf32>
    %568 = vector.extract_strided_slice %556 {offsets = [3, 0], sizes = [8, 128], strides = [1, 1]} : vector<14x128xf32> to vector<8x128xf32>
    %569 = vector.broadcast %34 : f32 to vector<8x128xf32>
    %570 = arith.mulf %569, %568 : vector<8x128xf32>
    %571 = arith.addf %567, %570 : vector<8x128xf32>
    %572 = vector.extract_strided_slice %556 {offsets = [4, 0], sizes = [8, 128], strides = [1, 1]} : vector<14x128xf32> to vector<8x128xf32>
    %573 = vector.broadcast %41 : f32 to vector<8x128xf32>
    %574 = arith.mulf %573, %572 : vector<8x128xf32>
    %575 = arith.addf %571, %574 : vector<8x128xf32>
    %576 = vector.extract_strided_slice %556 {offsets = [5, 0], sizes = [8, 128], strides = [1, 1]} : vector<14x128xf32> to vector<8x128xf32>
    %577 = vector.broadcast %48 : f32 to vector<8x128xf32>
    %578 = arith.mulf %577, %576 : vector<8x128xf32>
    %579 = arith.addf %575, %578 : vector<8x128xf32>
    %580 = vector.extract_strided_slice %556 {offsets = [6, 0], sizes = [8, 128], strides = [1, 1]} : vector<14x128xf32> to vector<8x128xf32>
    %581 = vector.broadcast %55 : f32 to vector<8x128xf32>
    %582 = arith.mulf %581, %580 : vector<8x128xf32>
    %583 = arith.addf %579, %582 : vector<8x128xf32>
    %c1_i32_39 = arith.constant 1 : i32
    %584 = tpu.dynamic_rotate %527 by %c1_i32_39 dim 1 : vector<14x128xf32>, i32 -> vector<14x128xf32>
    %585 = vector.extract_strided_slice %584 {offsets = [0, 0], sizes = [8, 128], strides = [1, 1]} : vector<14x128xf32> to vector<8x128xf32>
    %586 = vector.broadcast %14 : f32 to vector<8x128xf32>
    %587 = arith.mulf %586, %585 : vector<8x128xf32>
    %588 = arith.addf %555, %587 : vector<8x128xf32>
    %589 = vector.extract_strided_slice %584 {offsets = [1, 0], sizes = [8, 128], strides = [1, 1]} : vector<14x128xf32> to vector<8x128xf32>
    %590 = vector.broadcast %21 : f32 to vector<8x128xf32>
    %591 = arith.mulf %590, %589 : vector<8x128xf32>
    %592 = arith.addf %588, %591 : vector<8x128xf32>
    %593 = vector.extract_strided_slice %584 {offsets = [2, 0], sizes = [8, 128], strides = [1, 1]} : vector<14x128xf32> to vector<8x128xf32>
    %594 = vector.broadcast %28 : f32 to vector<8x128xf32>
    %595 = arith.mulf %594, %593 : vector<8x128xf32>
    %596 = arith.addf %592, %595 : vector<8x128xf32>
    %597 = vector.extract_strided_slice %584 {offsets = [3, 0], sizes = [8, 128], strides = [1, 1]} : vector<14x128xf32> to vector<8x128xf32>
    %598 = vector.broadcast %35 : f32 to vector<8x128xf32>
    %599 = arith.mulf %598, %597 : vector<8x128xf32>
    %600 = arith.addf %596, %599 : vector<8x128xf32>
    %601 = vector.extract_strided_slice %584 {offsets = [4, 0], sizes = [8, 128], strides = [1, 1]} : vector<14x128xf32> to vector<8x128xf32>
    %602 = vector.broadcast %42 : f32 to vector<8x128xf32>
    %603 = arith.mulf %602, %601 : vector<8x128xf32>
    %604 = arith.addf %600, %603 : vector<8x128xf32>
    %605 = vector.extract_strided_slice %584 {offsets = [5, 0], sizes = [8, 128], strides = [1, 1]} : vector<14x128xf32> to vector<8x128xf32>
    %606 = vector.broadcast %49 : f32 to vector<8x128xf32>
    %607 = arith.mulf %606, %605 : vector<8x128xf32>
    %608 = arith.addf %604, %607 : vector<8x128xf32>
    %609 = vector.extract_strided_slice %584 {offsets = [6, 0], sizes = [8, 128], strides = [1, 1]} : vector<14x128xf32> to vector<8x128xf32>
    %610 = vector.broadcast %56 : f32 to vector<8x128xf32>
    %611 = arith.mulf %610, %609 : vector<8x128xf32>
    %612 = arith.addf %608, %611 : vector<8x128xf32>
    %613 = vector.extract_strided_slice %527 {offsets = [0, 0], sizes = [8, 128], strides = [1, 1]} : vector<14x128xf32> to vector<8x128xf32>
    %614 = vector.broadcast %15 : f32 to vector<8x128xf32>
    %615 = arith.mulf %614, %613 : vector<8x128xf32>
    %616 = arith.addf %583, %615 : vector<8x128xf32>
    %617 = vector.extract_strided_slice %527 {offsets = [1, 0], sizes = [8, 128], strides = [1, 1]} : vector<14x128xf32> to vector<8x128xf32>
    %618 = vector.broadcast %22 : f32 to vector<8x128xf32>
    %619 = arith.mulf %618, %617 : vector<8x128xf32>
    %620 = arith.addf %616, %619 : vector<8x128xf32>
    %621 = vector.extract_strided_slice %527 {offsets = [2, 0], sizes = [8, 128], strides = [1, 1]} : vector<14x128xf32> to vector<8x128xf32>
    %622 = vector.broadcast %29 : f32 to vector<8x128xf32>
    %623 = arith.mulf %622, %621 : vector<8x128xf32>
    %624 = arith.addf %620, %623 : vector<8x128xf32>
    %625 = vector.extract_strided_slice %527 {offsets = [3, 0], sizes = [8, 128], strides = [1, 1]} : vector<14x128xf32> to vector<8x128xf32>
    %626 = vector.broadcast %36 : f32 to vector<8x128xf32>
    %627 = arith.mulf %626, %625 : vector<8x128xf32>
    %628 = arith.addf %624, %627 : vector<8x128xf32>
    %629 = vector.extract_strided_slice %527 {offsets = [4, 0], sizes = [8, 128], strides = [1, 1]} : vector<14x128xf32> to vector<8x128xf32>
    %630 = vector.broadcast %43 : f32 to vector<8x128xf32>
    %631 = arith.mulf %630, %629 : vector<8x128xf32>
    %632 = arith.addf %628, %631 : vector<8x128xf32>
    %633 = vector.extract_strided_slice %527 {offsets = [5, 0], sizes = [8, 128], strides = [1, 1]} : vector<14x128xf32> to vector<8x128xf32>
    %634 = vector.broadcast %50 : f32 to vector<8x128xf32>
    %635 = arith.mulf %634, %633 : vector<8x128xf32>
    %636 = arith.addf %632, %635 : vector<8x128xf32>
    %637 = vector.extract_strided_slice %527 {offsets = [6, 0], sizes = [8, 128], strides = [1, 1]} : vector<14x128xf32> to vector<8x128xf32>
    %638 = vector.broadcast %57 : f32 to vector<8x128xf32>
    %639 = arith.mulf %638, %637 : vector<8x128xf32>
    %640 = arith.addf %636, %639 : vector<8x128xf32>
    %c127_i32_40 = arith.constant 127 : i32
    %641 = tpu.dynamic_rotate %527 by %c127_i32_40 dim 1 : vector<14x128xf32>, i32 -> vector<14x128xf32>
    %642 = vector.extract_strided_slice %641 {offsets = [0, 0], sizes = [8, 128], strides = [1, 1]} : vector<14x128xf32> to vector<8x128xf32>
    %643 = vector.broadcast %16 : f32 to vector<8x128xf32>
    %644 = arith.mulf %643, %642 : vector<8x128xf32>
    %645 = arith.addf %612, %644 : vector<8x128xf32>
    %646 = vector.extract_strided_slice %641 {offsets = [1, 0], sizes = [8, 128], strides = [1, 1]} : vector<14x128xf32> to vector<8x128xf32>
    %647 = vector.broadcast %23 : f32 to vector<8x128xf32>
    %648 = arith.mulf %647, %646 : vector<8x128xf32>
    %649 = arith.addf %645, %648 : vector<8x128xf32>
    %650 = vector.extract_strided_slice %641 {offsets = [2, 0], sizes = [8, 128], strides = [1, 1]} : vector<14x128xf32> to vector<8x128xf32>
    %651 = vector.broadcast %30 : f32 to vector<8x128xf32>
    %652 = arith.mulf %651, %650 : vector<8x128xf32>
    %653 = arith.addf %649, %652 : vector<8x128xf32>
    %654 = vector.extract_strided_slice %641 {offsets = [3, 0], sizes = [8, 128], strides = [1, 1]} : vector<14x128xf32> to vector<8x128xf32>
    %655 = vector.broadcast %37 : f32 to vector<8x128xf32>
    %656 = arith.mulf %655, %654 : vector<8x128xf32>
    %657 = arith.addf %653, %656 : vector<8x128xf32>
    %658 = vector.extract_strided_slice %641 {offsets = [4, 0], sizes = [8, 128], strides = [1, 1]} : vector<14x128xf32> to vector<8x128xf32>
    %659 = vector.broadcast %44 : f32 to vector<8x128xf32>
    %660 = arith.mulf %659, %658 : vector<8x128xf32>
    %661 = arith.addf %657, %660 : vector<8x128xf32>
    %662 = vector.extract_strided_slice %641 {offsets = [5, 0], sizes = [8, 128], strides = [1, 1]} : vector<14x128xf32> to vector<8x128xf32>
    %663 = vector.broadcast %51 : f32 to vector<8x128xf32>
    %664 = arith.mulf %663, %662 : vector<8x128xf32>
    %665 = arith.addf %661, %664 : vector<8x128xf32>
    %666 = vector.extract_strided_slice %641 {offsets = [6, 0], sizes = [8, 128], strides = [1, 1]} : vector<14x128xf32> to vector<8x128xf32>
    %667 = vector.broadcast %58 : f32 to vector<8x128xf32>
    %668 = arith.mulf %667, %666 : vector<8x128xf32>
    %669 = arith.addf %665, %668 : vector<8x128xf32>
    %c126_i32_41 = arith.constant 126 : i32
    %670 = tpu.dynamic_rotate %527 by %c126_i32_41 dim 1 : vector<14x128xf32>, i32 -> vector<14x128xf32>
    %671 = vector.extract_strided_slice %670 {offsets = [0, 0], sizes = [8, 128], strides = [1, 1]} : vector<14x128xf32> to vector<8x128xf32>
    %672 = vector.broadcast %17 : f32 to vector<8x128xf32>
    %673 = arith.mulf %672, %671 : vector<8x128xf32>
    %674 = arith.addf %640, %673 : vector<8x128xf32>
    %675 = vector.extract_strided_slice %670 {offsets = [1, 0], sizes = [8, 128], strides = [1, 1]} : vector<14x128xf32> to vector<8x128xf32>
    %676 = vector.broadcast %24 : f32 to vector<8x128xf32>
    %677 = arith.mulf %676, %675 : vector<8x128xf32>
    %678 = arith.addf %674, %677 : vector<8x128xf32>
    %679 = vector.extract_strided_slice %670 {offsets = [2, 0], sizes = [8, 128], strides = [1, 1]} : vector<14x128xf32> to vector<8x128xf32>
    %680 = vector.broadcast %31 : f32 to vector<8x128xf32>
    %681 = arith.mulf %680, %679 : vector<8x128xf32>
    %682 = arith.addf %678, %681 : vector<8x128xf32>
    %683 = vector.extract_strided_slice %670 {offsets = [3, 0], sizes = [8, 128], strides = [1, 1]} : vector<14x128xf32> to vector<8x128xf32>
    %684 = vector.broadcast %38 : f32 to vector<8x128xf32>
    %685 = arith.mulf %684, %683 : vector<8x128xf32>
    %686 = arith.addf %682, %685 : vector<8x128xf32>
    %687 = vector.extract_strided_slice %670 {offsets = [4, 0], sizes = [8, 128], strides = [1, 1]} : vector<14x128xf32> to vector<8x128xf32>
    %688 = vector.broadcast %45 : f32 to vector<8x128xf32>
    %689 = arith.mulf %688, %687 : vector<8x128xf32>
    %690 = arith.addf %686, %689 : vector<8x128xf32>
    %691 = vector.extract_strided_slice %670 {offsets = [5, 0], sizes = [8, 128], strides = [1, 1]} : vector<14x128xf32> to vector<8x128xf32>
    %692 = vector.broadcast %52 : f32 to vector<8x128xf32>
    %693 = arith.mulf %692, %691 : vector<8x128xf32>
    %694 = arith.addf %690, %693 : vector<8x128xf32>
    %695 = vector.extract_strided_slice %670 {offsets = [6, 0], sizes = [8, 128], strides = [1, 1]} : vector<14x128xf32> to vector<8x128xf32>
    %696 = vector.broadcast %59 : f32 to vector<8x128xf32>
    %697 = arith.mulf %696, %695 : vector<8x128xf32>
    %698 = arith.addf %694, %697 : vector<8x128xf32>
    %c125_i32_42 = arith.constant 125 : i32
    %699 = tpu.dynamic_rotate %527 by %c125_i32_42 dim 1 : vector<14x128xf32>, i32 -> vector<14x128xf32>
    %700 = vector.extract_strided_slice %699 {offsets = [0, 0], sizes = [8, 128], strides = [1, 1]} : vector<14x128xf32> to vector<8x128xf32>
    %701 = vector.broadcast %18 : f32 to vector<8x128xf32>
    %702 = arith.mulf %701, %700 : vector<8x128xf32>
    %703 = arith.addf %669, %702 : vector<8x128xf32>
    %704 = vector.extract_strided_slice %699 {offsets = [1, 0], sizes = [8, 128], strides = [1, 1]} : vector<14x128xf32> to vector<8x128xf32>
    %705 = vector.broadcast %25 : f32 to vector<8x128xf32>
    %706 = arith.mulf %705, %704 : vector<8x128xf32>
    %707 = arith.addf %703, %706 : vector<8x128xf32>
    %708 = vector.extract_strided_slice %699 {offsets = [2, 0], sizes = [8, 128], strides = [1, 1]} : vector<14x128xf32> to vector<8x128xf32>
    %709 = vector.broadcast %32 : f32 to vector<8x128xf32>
    %710 = arith.mulf %709, %708 : vector<8x128xf32>
    %711 = arith.addf %707, %710 : vector<8x128xf32>
    %712 = vector.extract_strided_slice %699 {offsets = [3, 0], sizes = [8, 128], strides = [1, 1]} : vector<14x128xf32> to vector<8x128xf32>
    %713 = vector.broadcast %39 : f32 to vector<8x128xf32>
    %714 = arith.mulf %713, %712 : vector<8x128xf32>
    %715 = arith.addf %711, %714 : vector<8x128xf32>
    %716 = vector.extract_strided_slice %699 {offsets = [4, 0], sizes = [8, 128], strides = [1, 1]} : vector<14x128xf32> to vector<8x128xf32>
    %717 = vector.broadcast %46 : f32 to vector<8x128xf32>
    %718 = arith.mulf %717, %716 : vector<8x128xf32>
    %719 = arith.addf %715, %718 : vector<8x128xf32>
    %720 = vector.extract_strided_slice %699 {offsets = [5, 0], sizes = [8, 128], strides = [1, 1]} : vector<14x128xf32> to vector<8x128xf32>
    %721 = vector.broadcast %53 : f32 to vector<8x128xf32>
    %722 = arith.mulf %721, %720 : vector<8x128xf32>
    %723 = arith.addf %719, %722 : vector<8x128xf32>
    %724 = vector.extract_strided_slice %699 {offsets = [6, 0], sizes = [8, 128], strides = [1, 1]} : vector<14x128xf32> to vector<8x128xf32>
    %725 = vector.broadcast %60 : f32 to vector<8x128xf32>
    %726 = arith.mulf %725, %724 : vector<8x128xf32>
    %727 = arith.addf %723, %726 : vector<8x128xf32>
    %c1_43 = arith.constant 1 : index
    %c8_44 = arith.constant 8 : index
    %c0_45 = arith.constant 0 : index
    %728 = vector.load %arg4[%c1_43, %c8_44, %c0_45] : memref<2x22x128xf32, #tpu.memory_space<vmem>>, vector<1x14x128xf32>
    %729 = vector.shape_cast %728 : vector<1x14x128xf32> to vector<14x128xf32>
    %c3_i32_46 = arith.constant 3 : i32
    %730 = tpu.dynamic_rotate %729 by %c3_i32_46 dim 1 : vector<14x128xf32>, i32 -> vector<14x128xf32>
    %731 = vector.extract_strided_slice %730 {offsets = [0, 0], sizes = [8, 128], strides = [1, 1]} : vector<14x128xf32> to vector<8x128xf32>
    %732 = vector.broadcast %61 : f32 to vector<8x128xf32>
    %733 = arith.mulf %732, %731 : vector<8x128xf32>
    %734 = vector.extract_strided_slice %730 {offsets = [1, 0], sizes = [8, 128], strides = [1, 1]} : vector<14x128xf32> to vector<8x128xf32>
    %735 = vector.broadcast %68 : f32 to vector<8x128xf32>
    %736 = arith.mulf %735, %734 : vector<8x128xf32>
    %737 = arith.addf %733, %736 : vector<8x128xf32>
    %738 = vector.extract_strided_slice %730 {offsets = [2, 0], sizes = [8, 128], strides = [1, 1]} : vector<14x128xf32> to vector<8x128xf32>
    %739 = vector.broadcast %75 : f32 to vector<8x128xf32>
    %740 = arith.mulf %739, %738 : vector<8x128xf32>
    %741 = arith.addf %737, %740 : vector<8x128xf32>
    %742 = vector.extract_strided_slice %730 {offsets = [3, 0], sizes = [8, 128], strides = [1, 1]} : vector<14x128xf32> to vector<8x128xf32>
    %743 = vector.broadcast %82 : f32 to vector<8x128xf32>
    %744 = arith.mulf %743, %742 : vector<8x128xf32>
    %745 = arith.addf %741, %744 : vector<8x128xf32>
    %746 = vector.extract_strided_slice %730 {offsets = [4, 0], sizes = [8, 128], strides = [1, 1]} : vector<14x128xf32> to vector<8x128xf32>
    %747 = vector.broadcast %89 : f32 to vector<8x128xf32>
    %748 = arith.mulf %747, %746 : vector<8x128xf32>
    %749 = arith.addf %745, %748 : vector<8x128xf32>
    %750 = vector.extract_strided_slice %730 {offsets = [5, 0], sizes = [8, 128], strides = [1, 1]} : vector<14x128xf32> to vector<8x128xf32>
    %751 = vector.broadcast %96 : f32 to vector<8x128xf32>
    %752 = arith.mulf %751, %750 : vector<8x128xf32>
    %753 = arith.addf %749, %752 : vector<8x128xf32>
    %754 = vector.extract_strided_slice %730 {offsets = [6, 0], sizes = [8, 128], strides = [1, 1]} : vector<14x128xf32> to vector<8x128xf32>
    %755 = vector.broadcast %103 : f32 to vector<8x128xf32>
    %756 = arith.mulf %755, %754 : vector<8x128xf32>
    %757 = arith.addf %753, %756 : vector<8x128xf32>
    %c2_i32_47 = arith.constant 2 : i32
    %758 = tpu.dynamic_rotate %729 by %c2_i32_47 dim 1 : vector<14x128xf32>, i32 -> vector<14x128xf32>
    %759 = vector.extract_strided_slice %758 {offsets = [0, 0], sizes = [8, 128], strides = [1, 1]} : vector<14x128xf32> to vector<8x128xf32>
    %760 = vector.broadcast %62 : f32 to vector<8x128xf32>
    %761 = arith.mulf %760, %759 : vector<8x128xf32>
    %762 = vector.extract_strided_slice %758 {offsets = [1, 0], sizes = [8, 128], strides = [1, 1]} : vector<14x128xf32> to vector<8x128xf32>
    %763 = vector.broadcast %69 : f32 to vector<8x128xf32>
    %764 = arith.mulf %763, %762 : vector<8x128xf32>
    %765 = arith.addf %761, %764 : vector<8x128xf32>
    %766 = vector.extract_strided_slice %758 {offsets = [2, 0], sizes = [8, 128], strides = [1, 1]} : vector<14x128xf32> to vector<8x128xf32>
    %767 = vector.broadcast %76 : f32 to vector<8x128xf32>
    %768 = arith.mulf %767, %766 : vector<8x128xf32>
    %769 = arith.addf %765, %768 : vector<8x128xf32>
    %770 = vector.extract_strided_slice %758 {offsets = [3, 0], sizes = [8, 128], strides = [1, 1]} : vector<14x128xf32> to vector<8x128xf32>
    %771 = vector.broadcast %83 : f32 to vector<8x128xf32>
    %772 = arith.mulf %771, %770 : vector<8x128xf32>
    %773 = arith.addf %769, %772 : vector<8x128xf32>
    %774 = vector.extract_strided_slice %758 {offsets = [4, 0], sizes = [8, 128], strides = [1, 1]} : vector<14x128xf32> to vector<8x128xf32>
    %775 = vector.broadcast %90 : f32 to vector<8x128xf32>
    %776 = arith.mulf %775, %774 : vector<8x128xf32>
    %777 = arith.addf %773, %776 : vector<8x128xf32>
    %778 = vector.extract_strided_slice %758 {offsets = [5, 0], sizes = [8, 128], strides = [1, 1]} : vector<14x128xf32> to vector<8x128xf32>
    %779 = vector.broadcast %97 : f32 to vector<8x128xf32>
    %780 = arith.mulf %779, %778 : vector<8x128xf32>
    %781 = arith.addf %777, %780 : vector<8x128xf32>
    %782 = vector.extract_strided_slice %758 {offsets = [6, 0], sizes = [8, 128], strides = [1, 1]} : vector<14x128xf32> to vector<8x128xf32>
    %783 = vector.broadcast %104 : f32 to vector<8x128xf32>
    %784 = arith.mulf %783, %782 : vector<8x128xf32>
    %785 = arith.addf %781, %784 : vector<8x128xf32>
    %c1_i32_48 = arith.constant 1 : i32
    %786 = tpu.dynamic_rotate %729 by %c1_i32_48 dim 1 : vector<14x128xf32>, i32 -> vector<14x128xf32>
    %787 = vector.extract_strided_slice %786 {offsets = [0, 0], sizes = [8, 128], strides = [1, 1]} : vector<14x128xf32> to vector<8x128xf32>
    %788 = vector.broadcast %63 : f32 to vector<8x128xf32>
    %789 = arith.mulf %788, %787 : vector<8x128xf32>
    %790 = arith.addf %757, %789 : vector<8x128xf32>
    %791 = vector.extract_strided_slice %786 {offsets = [1, 0], sizes = [8, 128], strides = [1, 1]} : vector<14x128xf32> to vector<8x128xf32>
    %792 = vector.broadcast %70 : f32 to vector<8x128xf32>
    %793 = arith.mulf %792, %791 : vector<8x128xf32>
    %794 = arith.addf %790, %793 : vector<8x128xf32>
    %795 = vector.extract_strided_slice %786 {offsets = [2, 0], sizes = [8, 128], strides = [1, 1]} : vector<14x128xf32> to vector<8x128xf32>
    %796 = vector.broadcast %77 : f32 to vector<8x128xf32>
    %797 = arith.mulf %796, %795 : vector<8x128xf32>
    %798 = arith.addf %794, %797 : vector<8x128xf32>
    %799 = vector.extract_strided_slice %786 {offsets = [3, 0], sizes = [8, 128], strides = [1, 1]} : vector<14x128xf32> to vector<8x128xf32>
    %800 = vector.broadcast %84 : f32 to vector<8x128xf32>
    %801 = arith.mulf %800, %799 : vector<8x128xf32>
    %802 = arith.addf %798, %801 : vector<8x128xf32>
    %803 = vector.extract_strided_slice %786 {offsets = [4, 0], sizes = [8, 128], strides = [1, 1]} : vector<14x128xf32> to vector<8x128xf32>
    %804 = vector.broadcast %91 : f32 to vector<8x128xf32>
    %805 = arith.mulf %804, %803 : vector<8x128xf32>
    %806 = arith.addf %802, %805 : vector<8x128xf32>
    %807 = vector.extract_strided_slice %786 {offsets = [5, 0], sizes = [8, 128], strides = [1, 1]} : vector<14x128xf32> to vector<8x128xf32>
    %808 = vector.broadcast %98 : f32 to vector<8x128xf32>
    %809 = arith.mulf %808, %807 : vector<8x128xf32>
    %810 = arith.addf %806, %809 : vector<8x128xf32>
    %811 = vector.extract_strided_slice %786 {offsets = [6, 0], sizes = [8, 128], strides = [1, 1]} : vector<14x128xf32> to vector<8x128xf32>
    %812 = vector.broadcast %105 : f32 to vector<8x128xf32>
    %813 = arith.mulf %812, %811 : vector<8x128xf32>
    %814 = arith.addf %810, %813 : vector<8x128xf32>
    %815 = vector.extract_strided_slice %729 {offsets = [0, 0], sizes = [8, 128], strides = [1, 1]} : vector<14x128xf32> to vector<8x128xf32>
    %816 = vector.broadcast %64 : f32 to vector<8x128xf32>
    %817 = arith.mulf %816, %815 : vector<8x128xf32>
    %818 = arith.addf %785, %817 : vector<8x128xf32>
    %819 = vector.extract_strided_slice %729 {offsets = [1, 0], sizes = [8, 128], strides = [1, 1]} : vector<14x128xf32> to vector<8x128xf32>
    %820 = vector.broadcast %71 : f32 to vector<8x128xf32>
    %821 = arith.mulf %820, %819 : vector<8x128xf32>
    %822 = arith.addf %818, %821 : vector<8x128xf32>
    %823 = vector.extract_strided_slice %729 {offsets = [2, 0], sizes = [8, 128], strides = [1, 1]} : vector<14x128xf32> to vector<8x128xf32>
    %824 = vector.broadcast %78 : f32 to vector<8x128xf32>
    %825 = arith.mulf %824, %823 : vector<8x128xf32>
    %826 = arith.addf %822, %825 : vector<8x128xf32>
    %827 = vector.extract_strided_slice %729 {offsets = [3, 0], sizes = [8, 128], strides = [1, 1]} : vector<14x128xf32> to vector<8x128xf32>
    %828 = vector.broadcast %85 : f32 to vector<8x128xf32>
    %829 = arith.mulf %828, %827 : vector<8x128xf32>
    %830 = arith.addf %826, %829 : vector<8x128xf32>
    %831 = vector.extract_strided_slice %729 {offsets = [4, 0], sizes = [8, 128], strides = [1, 1]} : vector<14x128xf32> to vector<8x128xf32>
    %832 = vector.broadcast %92 : f32 to vector<8x128xf32>
    %833 = arith.mulf %832, %831 : vector<8x128xf32>
    %834 = arith.addf %830, %833 : vector<8x128xf32>
    %835 = vector.extract_strided_slice %729 {offsets = [5, 0], sizes = [8, 128], strides = [1, 1]} : vector<14x128xf32> to vector<8x128xf32>
    %836 = vector.broadcast %99 : f32 to vector<8x128xf32>
    %837 = arith.mulf %836, %835 : vector<8x128xf32>
    %838 = arith.addf %834, %837 : vector<8x128xf32>
    %839 = vector.extract_strided_slice %729 {offsets = [6, 0], sizes = [8, 128], strides = [1, 1]} : vector<14x128xf32> to vector<8x128xf32>
    %840 = vector.broadcast %106 : f32 to vector<8x128xf32>
    %841 = arith.mulf %840, %839 : vector<8x128xf32>
    %842 = arith.addf %838, %841 : vector<8x128xf32>
    %c127_i32_49 = arith.constant 127 : i32
    %843 = tpu.dynamic_rotate %729 by %c127_i32_49 dim 1 : vector<14x128xf32>, i32 -> vector<14x128xf32>
    %844 = vector.extract_strided_slice %843 {offsets = [0, 0], sizes = [8, 128], strides = [1, 1]} : vector<14x128xf32> to vector<8x128xf32>
    %845 = vector.broadcast %65 : f32 to vector<8x128xf32>
    %846 = arith.mulf %845, %844 : vector<8x128xf32>
    %847 = arith.addf %814, %846 : vector<8x128xf32>
    %848 = vector.extract_strided_slice %843 {offsets = [1, 0], sizes = [8, 128], strides = [1, 1]} : vector<14x128xf32> to vector<8x128xf32>
    %849 = vector.broadcast %72 : f32 to vector<8x128xf32>
    %850 = arith.mulf %849, %848 : vector<8x128xf32>
    %851 = arith.addf %847, %850 : vector<8x128xf32>
    %852 = vector.extract_strided_slice %843 {offsets = [2, 0], sizes = [8, 128], strides = [1, 1]} : vector<14x128xf32> to vector<8x128xf32>
    %853 = vector.broadcast %79 : f32 to vector<8x128xf32>
    %854 = arith.mulf %853, %852 : vector<8x128xf32>
    %855 = arith.addf %851, %854 : vector<8x128xf32>
    %856 = vector.extract_strided_slice %843 {offsets = [3, 0], sizes = [8, 128], strides = [1, 1]} : vector<14x128xf32> to vector<8x128xf32>
    %857 = vector.broadcast %86 : f32 to vector<8x128xf32>
    %858 = arith.mulf %857, %856 : vector<8x128xf32>
    %859 = arith.addf %855, %858 : vector<8x128xf32>
    %860 = vector.extract_strided_slice %843 {offsets = [4, 0], sizes = [8, 128], strides = [1, 1]} : vector<14x128xf32> to vector<8x128xf32>
    %861 = vector.broadcast %93 : f32 to vector<8x128xf32>
    %862 = arith.mulf %861, %860 : vector<8x128xf32>
    %863 = arith.addf %859, %862 : vector<8x128xf32>
    %864 = vector.extract_strided_slice %843 {offsets = [5, 0], sizes = [8, 128], strides = [1, 1]} : vector<14x128xf32> to vector<8x128xf32>
    %865 = vector.broadcast %100 : f32 to vector<8x128xf32>
    %866 = arith.mulf %865, %864 : vector<8x128xf32>
    %867 = arith.addf %863, %866 : vector<8x128xf32>
    %868 = vector.extract_strided_slice %843 {offsets = [6, 0], sizes = [8, 128], strides = [1, 1]} : vector<14x128xf32> to vector<8x128xf32>
    %869 = vector.broadcast %107 : f32 to vector<8x128xf32>
    %870 = arith.mulf %869, %868 : vector<8x128xf32>
    %871 = arith.addf %867, %870 : vector<8x128xf32>
    %c126_i32_50 = arith.constant 126 : i32
    %872 = tpu.dynamic_rotate %729 by %c126_i32_50 dim 1 : vector<14x128xf32>, i32 -> vector<14x128xf32>
    %873 = vector.extract_strided_slice %872 {offsets = [0, 0], sizes = [8, 128], strides = [1, 1]} : vector<14x128xf32> to vector<8x128xf32>
    %874 = vector.broadcast %66 : f32 to vector<8x128xf32>
    %875 = arith.mulf %874, %873 : vector<8x128xf32>
    %876 = arith.addf %842, %875 : vector<8x128xf32>
    %877 = vector.extract_strided_slice %872 {offsets = [1, 0], sizes = [8, 128], strides = [1, 1]} : vector<14x128xf32> to vector<8x128xf32>
    %878 = vector.broadcast %73 : f32 to vector<8x128xf32>
    %879 = arith.mulf %878, %877 : vector<8x128xf32>
    %880 = arith.addf %876, %879 : vector<8x128xf32>
    %881 = vector.extract_strided_slice %872 {offsets = [2, 0], sizes = [8, 128], strides = [1, 1]} : vector<14x128xf32> to vector<8x128xf32>
    %882 = vector.broadcast %80 : f32 to vector<8x128xf32>
    %883 = arith.mulf %882, %881 : vector<8x128xf32>
    %884 = arith.addf %880, %883 : vector<8x128xf32>
    %885 = vector.extract_strided_slice %872 {offsets = [3, 0], sizes = [8, 128], strides = [1, 1]} : vector<14x128xf32> to vector<8x128xf32>
    %886 = vector.broadcast %87 : f32 to vector<8x128xf32>
    %887 = arith.mulf %886, %885 : vector<8x128xf32>
    %888 = arith.addf %884, %887 : vector<8x128xf32>
    %889 = vector.extract_strided_slice %872 {offsets = [4, 0], sizes = [8, 128], strides = [1, 1]} : vector<14x128xf32> to vector<8x128xf32>
    %890 = vector.broadcast %94 : f32 to vector<8x128xf32>
    %891 = arith.mulf %890, %889 : vector<8x128xf32>
    %892 = arith.addf %888, %891 : vector<8x128xf32>
    %893 = vector.extract_strided_slice %872 {offsets = [5, 0], sizes = [8, 128], strides = [1, 1]} : vector<14x128xf32> to vector<8x128xf32>
    %894 = vector.broadcast %101 : f32 to vector<8x128xf32>
    %895 = arith.mulf %894, %893 : vector<8x128xf32>
    %896 = arith.addf %892, %895 : vector<8x128xf32>
    %897 = vector.extract_strided_slice %872 {offsets = [6, 0], sizes = [8, 128], strides = [1, 1]} : vector<14x128xf32> to vector<8x128xf32>
    %898 = vector.broadcast %108 : f32 to vector<8x128xf32>
    %899 = arith.mulf %898, %897 : vector<8x128xf32>
    %900 = arith.addf %896, %899 : vector<8x128xf32>
    %c125_i32_51 = arith.constant 125 : i32
    %901 = tpu.dynamic_rotate %729 by %c125_i32_51 dim 1 : vector<14x128xf32>, i32 -> vector<14x128xf32>
    %902 = vector.extract_strided_slice %901 {offsets = [0, 0], sizes = [8, 128], strides = [1, 1]} : vector<14x128xf32> to vector<8x128xf32>
    %903 = vector.broadcast %67 : f32 to vector<8x128xf32>
    %904 = arith.mulf %903, %902 : vector<8x128xf32>
    %905 = arith.addf %871, %904 : vector<8x128xf32>
    %906 = vector.extract_strided_slice %901 {offsets = [1, 0], sizes = [8, 128], strides = [1, 1]} : vector<14x128xf32> to vector<8x128xf32>
    %907 = vector.broadcast %74 : f32 to vector<8x128xf32>
    %908 = arith.mulf %907, %906 : vector<8x128xf32>
    %909 = arith.addf %905, %908 : vector<8x128xf32>
    %910 = vector.extract_strided_slice %901 {offsets = [2, 0], sizes = [8, 128], strides = [1, 1]} : vector<14x128xf32> to vector<8x128xf32>
    %911 = vector.broadcast %81 : f32 to vector<8x128xf32>
    %912 = arith.mulf %911, %910 : vector<8x128xf32>
    %913 = arith.addf %909, %912 : vector<8x128xf32>
    %914 = vector.extract_strided_slice %901 {offsets = [3, 0], sizes = [8, 128], strides = [1, 1]} : vector<14x128xf32> to vector<8x128xf32>
    %915 = vector.broadcast %88 : f32 to vector<8x128xf32>
    %916 = arith.mulf %915, %914 : vector<8x128xf32>
    %917 = arith.addf %913, %916 : vector<8x128xf32>
    %918 = vector.extract_strided_slice %901 {offsets = [4, 0], sizes = [8, 128], strides = [1, 1]} : vector<14x128xf32> to vector<8x128xf32>
    %919 = vector.broadcast %95 : f32 to vector<8x128xf32>
    %920 = arith.mulf %919, %918 : vector<8x128xf32>
    %921 = arith.addf %917, %920 : vector<8x128xf32>
    %922 = vector.extract_strided_slice %901 {offsets = [5, 0], sizes = [8, 128], strides = [1, 1]} : vector<14x128xf32> to vector<8x128xf32>
    %923 = vector.broadcast %102 : f32 to vector<8x128xf32>
    %924 = arith.mulf %923, %922 : vector<8x128xf32>
    %925 = arith.addf %921, %924 : vector<8x128xf32>
    %926 = vector.extract_strided_slice %901 {offsets = [6, 0], sizes = [8, 128], strides = [1, 1]} : vector<14x128xf32> to vector<8x128xf32>
    %927 = vector.broadcast %109 : f32 to vector<8x128xf32>
    %928 = arith.mulf %927, %926 : vector<8x128xf32>
    %929 = arith.addf %925, %928 : vector<8x128xf32>
    %930 = arith.addf %727, %698 : vector<8x128xf32>
    %931 = arith.addf %929, %900 : vector<8x128xf32>
    %932 = arith.addf %930, %931 : vector<8x128xf32>
    %933 = vector.extract_strided_slice %932 {offsets = [0, 0], sizes = [8, 16], strides = [1, 1]} : vector<8x128xf32> to vector<8x16xf32>
    %934 = arith.negf %933 : vector<8x16xf32>
    %935 = math.exp %934 : vector<8x16xf32>
    %cst_52 = arith.constant 1.000000e+00 : f32
    %936 = vector.broadcast %cst_52 : f32 to vector<8x16xf32>
    %937 = arith.addf %936, %935 : vector<8x16xf32>
    %938 = arith.divf %936, %937 : vector<8x16xf32>
    %c0_53 = arith.constant 0 : index
    %c0_54 = arith.constant 0 : index
    %c8_55 = arith.constant 8 : index
    %c0_56 = arith.constant 0 : index
    %939 = vector.load %arg3[%c0_53, %c0_54, %c8_55, %c0_56] : memref<1x1x16x16xf32, #tpu.memory_space<vmem>>, vector<1x1x8x16xf32>
    %940 = vector.shape_cast %939 : vector<1x1x8x16xf32> to vector<8x16xf32>
    %941 = vector.shape_cast %938 : vector<8x16xf32> to vector<1x1x8x16xf32>
    tpu.vector_store %arg3[%c0_53, %c0_54, %c8_55, %c0_56], %941 {strides = array<i32>} : memref<1x1x16x16xf32, #tpu.memory_space<vmem>>, vector<1x1x8x16xf32>,
    return
  }
  func.func @transform_0(%arg0: i32, %arg1: memref<98xf32, #tpu.memory_space<smem>>) -> (i32, i32, i32, i32) {
    %c0_i32 = arith.constant 0 : i32
    %c0_i32_0 = arith.constant 0 : i32
    %c0_i32_1 = arith.constant 0 : i32
    %c0_i32_2 = arith.constant 0 : i32
    return %arg0, %c0_i32, %c0_i32_0, %c0_i32_1 : i32, i32, i32, i32
  }
  func.func @transform_1(%arg0: i32, %arg1: memref<98xf32, #tpu.memory_space<smem>>) -> (i32, i32, i32, i32) {
    %c0_i32 = arith.constant 0 : i32
    %c0_i32_0 = arith.constant 0 : i32
    %c0_i32_1 = arith.constant 0 : i32
    %c0_i32_2 = arith.constant 0 : i32
    return %arg0, %c0_i32, %c0_i32_0, %c0_i32_1 : i32, i32, i32, i32
  }
}

</mosaic_0001>

<llo_original>
// kernel: spatial_attention.2
$region0: #{spatial_attention.2}
  #allocation0 [shape = 'u32[]', space=smem, size = 0x4, offset = 0x4, fixed_abs, tag = 'smem constant byte address 0x4 - core index']
  #allocation1 [shape = 'u32[144,128]{1,0:T(1,128)}', space=vmem, size = 0x12000, scoped, tag = 'internal scratch']
  %s0 = inlined_call_operand.vmem [shape: f32[2,4,256], index: 0, kind: input, shape index: {}]
  %s1 = inlined_call_operand.vmem [shape: f32[2,2,256], index: 1, kind: output, shape index: {}]
  %s2 = sld [smem:[#allocation0]]
  $region49: #{spatial_attention.2} parent=0
    _
  %s4 = ssub.s32 1, %s2
  %s5 = scalar_select 0, %s4, %s2
  loop: start=0, step=1, limit=4
  $region2: #{spatial_attention.2} parent=0 // loop_pre_header
    _
  $region3: #{spatial_attention.2} parent=0 // loop_header
    %s7 = sphi 0, %s11
    %p8 = scmp.ge.s32.totalorder %s7, 4
    %s14 = sphi 0, %s26
    %s15 = sphi 0, %s22
    %s16 = sphi 0, %s14
    %s17 = sphi 0, %s15
    %s18 = sphi 0, %s16
    %s19 = sphi 0, %s17
    %s31 = sphi 0, %s33
    %s34 = sphi 0, %s31
    %s35 = sphi 0, %s34
    %s51 = sphi 0, %s35
    %s57 = sphi 0, %s59
    %s60 = sphi 0, %s57
    %s61 = sphi 0, %s60
    %s77 = sphi 0, %s61
  $region4: #{spatial_attention.2} parent=0 // loop_header_branch
    %10 = sbr.rel (%p8) target = $region8
  $region5: #{spatial_attention.2} parent=0 // loop_body
    %s12 = ssub.s32 %s7, 1
    %s13 = ssub.s32 %s7, 2
    %s20 = sadd.s32 1, %s15
    %p21 = scmp.ge.s32.totalorder %s20, 1
    %s22 = scalar_select %p21, 0, %s20
    %s23 = sadd.s32 1, %s14
    %s24 = scalar_select %p21, %s23, %s14
    %p25 = scmp.ge.s32.totalorder %s24, 2
    %s26 = scalar_select %p25, 0, %s24
    %s27 = ssub.s32 %s14, %s26
    %s28 = ssub.s32 %s15, %s22
    %s29 = sor.u32 %s27, %s28
    %p30 = scmp.eq.s32.totalorder %s29, 0
    %s32 = sadd.s32 %s31, 1
    %s33 = scalar_select %p30, %s31, %s32
    %p36 = pneg %p30
    %p37 = scmp.eq.s32.totalorder %s7, 1
    %p38 = por %p36, %p37
    %p39 = scmp.ne.s32.totalorder %s31, %s34
    %p40 = scmp.eq.s32.totalorder %s7, 0
    %p41 = por %p39, %p40
    %p42 = scmp.ne.s32.totalorder %s31, %s34
    %p43 = scmp.eq.s32.totalorder %s12, 1
    %p44 = por %p42, %p43
    %p45 = scmp.ne.s32.totalorder %s34, %s35
    %p46 = scmp.eq.s32.totalorder %s12, 0
    %p47 = por %p45, %p46
    %p48 = scmp.ne.s32.totalorder %s34, %s35
    %p49 = scmp.eq.s32.totalorder %s13, 1
    %p50 = por %p48, %p49
    %p52 = scmp.ne.s32.totalorder %s35, %s51
    %p53 = scmp.eq.s32.totalorder %s13, 0
    %p54 = por %p52, %p53
    %s55 = ssub.s32 %s14, %s26
    %p56 = scmp.eq.s32.totalorder %s55, 0
    %s58 = sadd.s32 %s57, 1
    %s59 = scalar_select %p56, %s57, %s58
    %p62 = pneg %p56
    %p63 = scmp.eq.s32.totalorder %s7, 1
    %p64 = por %p62, %p63
    %p65 = scmp.ne.s32.totalorder %s57, %s60
    %p66 = scmp.eq.s32.totalorder %s7, 0
    %p67 = por %p65, %p66
    %p68 = scmp.ne.s32.totalorder %s57, %s60
    %p69 = scmp.eq.s32.totalorder %s12, 1
    %p70 = por %p68, %p69
    %p71 = scmp.ne.s32.totalorder %s60, %s61
    %p72 = scmp.eq.s32.totalorder %s12, 0
    %p73 = por %p71, %p72
    %p74 = scmp.ne.s32.totalorder %s60, %s61
    %p75 = scmp.eq.s32.totalorder %s13, 1
    %p76 = por %p74, %p75
    %p78 = scmp.ne.s32.totalorder %s61, %s77
    %p79 = scmp.eq.s32.totalorder %s13, 0
    %p80 = por %p78, %p79
    %p81 = scmp.le.s32.totalorder 1, %s7
    %p82 = scmp.lt.s32.totalorder %s7, 3
    %p83 = pnand %p81, %p82
    %p84 = pneg %p83
    // Predicated region
    $region9: #{spatial_attention.2} parent=5 // pred_check
      _
    $region10: #{spatial_attention.2} parent=5 // pred_check_branch
      %86 = sbr.rel (%p83) target = $region12
    $region11: #{spatial_attention.2} parent=5 // pred_region
      %s87 = ssub.s32 %s7, 1
    $region12: #{spatial_attention.2} parent=5 // pred_fallthru
      _
    %p88 = scmp.lt.s32.totalorder %s7, 2
    // Predicated region
    $region13: #{spatial_attention.2} parent=5 // pred_check
      %p89 = pneg %p88
    $region14: #{spatial_attention.2} parent=5 // pred_check_branch
      %91 = sbr.rel (%p89) target = $region16
    $region15: #{spatial_attention.2} parent=5 // pred_region
      // Predicated region
      $region17: #{spatial_attention.2} parent=15 // pred_check
        %p92 = pneg %p41
      $region18: #{spatial_attention.2} parent=15 // pred_check_branch
        %94 = sbr.rel (%p92) target = $region20
      $region19: #{spatial_attention.2} parent=15 // pred_region
        %p95 = scmp.lt.s32.totalorder %s14, 1
        %s96 = scalar_select %p95, %s14, 1
        %p97 = scmp.lt.s32.totalorder %s15, 0
        %s98 = scalar_select %p97, %s15, 0
        %s99 = smul.addr %s98, 2
        %s100 = smul.addr %s96, 2
        %s101 = sadd.s32 %s99, %s100
        %s102 = smul.addr %s101, 4
        %s103 = scalar_lea.vmem %s0, %s102
      $region20: #{spatial_attention.2} parent=15 // pred_fallthru
        _
    $region16: #{spatial_attention.2} parent=5 // pred_fallthru
      _
    %p104 = scmp.le.s32.totalorder 1, %s7
    %p105 = scmp.lt.s32.totalorder %s7, 3
    %p106 = pnand %p104, %p105
    %p107 = pneg %p106
    // Predicated region
    $region21: #{spatial_attention.2} parent=5 // pred_check
      _
    $region22: #{spatial_attention.2} parent=5 // pred_check_branch
      %109 = sbr.rel (%p106) target = $region24
    $region23: #{spatial_attention.2} parent=5 // pred_region
      %s110 = ssub.s32 %s7, 1
      %p111 = scmp.lt.s32.totalorder %s16, 1
      %s112 = scalar_select %p111, %s16, 1
      %p113 = scmp.lt.s32.totalorder %s17, 0
      %s114 = scalar_select %p113, %s17, 0
      %s115 = smul.addr %s114, 2
      %s116 = smul.addr %s112, 2
      %s117 = sadd.s32 %s115, %s116
      %s118 = smul.addr %s117, 4
      %s119 = scalar_lea.vmem %s0, %s118
      %p120 = pneg %p47
      %p121 = pneg %p44
      %p122 = pneg %p73
      %p123 = pneg %p70
      %p124 = scmp.lt.s32.totalorder %s16, 1
      %s125 = scalar_select %p124, %s16, 1
      %s126 = smul.addr %s125, 2
      %s127 = smul.addr %s126, 2
      %s128 = scalar_lea.vmem %s1, %s127
      %p129 = scmp.lt.s32.totalorder %s16, 1
      %s130 = scalar_select %p129, %s16, 1
      %p131 = scmp.lt.s32.totalorder %s17, 0
      %s132 = scalar_select %p131, %s17, 0
      %s133 = smul.addr %s132, 2
      %s134 = smul.addr %s130, 2
      %s135 = sadd.s32 %s133, %s134
      %s136 = smul.addr %s135, 4
      %s137 = scalar_lea.vmem %s0, %s136
      %p138 = scmp.lt.s32.totalorder %s16, 1
      %s139 = scalar_select %p138, %s16, 1
      %s140 = smul.addr %s139, 2
      %s141 = smul.addr %s140, 2
      %s142 = scalar_lea.vmem %s1, %s141
      %v143 = vld [vmem:[%s137] sm:$0xff]
      %v145 = vcombine.high %v143, %v143
      %vm147 = vcmask 1043456
      %v148 = vsel %vm147, %v143, 0.0
      %v149 = vrot.slane %v148, 4
      %v150 = vadd.f32 %v148, %v149
      %v151 = vrot.slane %v150, 2
      %v152 = vadd.f32 %v150, %v151
      %v153 = vrot.slane %v152, 1
      %v154 = vadd.f32 %v152, %v153
      %v155 = vsel %vm147, %v145, 0.0
      %v156 = vrot.slane %v155, 4
      %v157 = vadd.f32 %v155, %v156
      %v158 = vrot.slane %v157, 2
      %v159 = vadd.f32 %v157, %v158
      %v160 = vrot.slane %v159, 1
      %v161 = vadd.f32 %v159, %v160
      %v162 = vsel %vm147, %v143, -inf
      %v163 = vrot.slane %v162, 4
      %v164 = vmax.f32 %v162, %v163
      %v165 = vrot.slane %v164, 2
      %v166 = vmax.f32 %v164, %v165
      %v167 = vrot.slane %v166, 1
      %v168 = vmax.f32 %v166, %v167
      %v169 = vsel %vm147, %v145, -inf
      %v170 = vrot.slane %v169, 4
      %v171 = vmax.f32 %v169, %v170
      %v172 = vrot.slane %v171, 2
      %v173 = vmax.f32 %v171, %v172
      %v174 = vrot.slane %v173, 1
      %v175 = vmax.f32 %v173, %v174
      %p176 = scmp.eq.s32.totalorder %s17, 0
      // Predicated region
      $region25: #{spatial_attention.2} parent=23 // pred_check
        %p177 = pneg %p176
      $region26: #{spatial_attention.2} parent=23 // pred_check_branch
        %179 = sbr.rel (%p177) target = $region28
      $region27: #{spatial_attention.2} parent=23 // pred_region
        %v182 = vcombine.low %v154, %v161
        %v184 = vunpack.c.l.s4 1966171168
        %v185 = vunpack.c.0.s8 %v184
        %v186 = vlaneseq
        %v187 = vshrl.u32 %v186, 7
        %v188 = vsub.s32 %v185, %v187
        %v189 = vrot.slane %v182, %v188
        %v191 = vunpack.c.l.s4 1966171168
        %v192 = vunpack.c.0.s8 %v191
        %v193 = vlaneseq
        %v194 = vshrl.u32 %v193, 7
        %v195 = vsub.s32 %v192, %v194
        %v196 = vrot.slane %v189, %v195
        %v198 = vlaneseq
        %vm199 = vcmp.ge.s32.totalorder %v198, 0
        %vm200 = vcmp.lt.s32.totalorder %v198, 256
        %vm201 = vmand %vm199, %vm200
        %202 = vst.msk [vmem:[%s142] ss:$2 sm:$0x3] %vm201, %v196
        %v205 = vcombine.low %v168, %v175
        %v207 = vunpack.c.l.s4 1966171168
        %v208 = vunpack.c.0.s8 %v207
        %v209 = vlaneseq
        %v210 = vshrl.u32 %v209, 7
        %v211 = vsub.s32 %v208, %v210
        %v212 = vrot.slane %v205, %v211
        %v214 = vunpack.c.l.s4 1966171168
        %v215 = vunpack.c.0.s8 %v214
        %v216 = vlaneseq
        %v217 = vshrl.u32 %v216, 7
        %v218 = vsub.s32 %v215, %v217
        %v219 = vrot.slane %v212, %v218
        %s221 = scalar_lea.vmem %s142, 1
        %222 = vst.msk [vmem:[%s221] ss:$2 sm:$0x3] %vm201, %v219
      $region28: #{spatial_attention.2} parent=23 // pred_fallthru
        _
      %p223 = scmp.gt.s32.totalorder %s17, 0
      // Predicated region
      $region29: #{spatial_attention.2} parent=23 // pred_check
        %p224 = pneg %p223
      $region30: #{spatial_attention.2} parent=23 // pred_check_branch
        %226 = sbr.rel (%p224) target = $region32
      $region31: #{spatial_attention.2} parent=23 // pred_region
        %v227 = vld [vmem:[%s142] ss:$2 sm:$0x3]
        %v230 = vcombine.low %v154, %v161
        %v232 = vunpack.c.l.s4 1966171168
        %v233 = vunpack.c.0.s8 %v232
        %v234 = vlaneseq
        %v235 = vshrl.u32 %v234, 7
        %v236 = vsub.s32 %v233, %v235
        %v237 = vrot.slane %v230, %v236
        %v239 = vunpack.c.l.s4 1966171168
        %v240 = vunpack.c.0.s8 %v239
        %v241 = vlaneseq
        %v242 = vshrl.u32 %v241, 7
        %v243 = vsub.s32 %v240, %v242
        %v244 = vrot.slane %v237, %v243
        %v246 = vadd.f32 %v227, %v244
        %v247 = vlaneseq
        %vm248 = vcmp.ge.s32.totalorder %v247, 0
        %vm249 = vcmp.lt.s32.totalorder %v247, 256
        %vm250 = vmand %vm248, %vm249
        %251 = vst.msk [vmem:[%s142] ss:$2 sm:$0x3] %vm250, %v246
        %s252 = scalar_lea.vmem %s142, 1
        %v253 = vld [vmem:[%s252] ss:$2 sm:$0x3]
        %v256 = vcombine.low %v168, %v175
        %v258 = vunpack.c.l.s4 1966171168
        %v259 = vunpack.c.0.s8 %v258
        %v260 = vlaneseq
        %v261 = vshrl.u32 %v260, 7
        %v262 = vsub.s32 %v259, %v261
        %v263 = vrot.slane %v256, %v262
        %v265 = vunpack.c.l.s4 1966171168
        %v266 = vunpack.c.0.s8 %v265
        %v267 = vlaneseq
        %v268 = vshrl.u32 %v267, 7
        %v269 = vsub.s32 %v266, %v268
        %v270 = vrot.slane %v263, %v269
        %v272 = vmax.f32 %v253, %v270
        %273 = vst.msk [vmem:[%s252] ss:$2 sm:$0x3] %vm250, %v272
      $region32: #{spatial_attention.2} parent=23 // pred_fallthru
        _
      // Predicated region
      $region33: #{spatial_attention.2} parent=23 // pred_check
        %p274 = pneg %p176
      $region34: #{spatial_attention.2} parent=23 // pred_check_branch
        %276 = sbr.rel (%p274) target = $region36
      $region35: #{spatial_attention.2} parent=23 // pred_region
        %v277 = vld [vmem:[%s142] ss:$2 sm:$0x3]
        %v278 = vmul.f32 %v277, 0.25
        %v279 = vlaneseq
        %vm280 = vcmp.ge.s32.totalorder %v279, 0
        %vm281 = vcmp.lt.s32.totalorder %v279, 256
        %vm282 = vmand %vm280, %vm281
        %283 = vst.msk [vmem:[%s142] ss:$2 sm:$0x3] %vm282, %v278
      $region36: #{spatial_attention.2} parent=23 // pred_fallthru
        _
      %p284 = scmp.lt.s32.totalorder %s16, 1
      %s285 = scalar_select %p284, %s16, 1
      %s286 = smul.addr %s285, 2
      %s287 = smul.addr %s286, 2
      %s288 = scalar_lea.vmem %s1, %s287
      // Predicated region
      $region37: #{spatial_attention.2} parent=23 // pred_check
        %p289 = pneg %p70
      $region38: #{spatial_attention.2} parent=23 // pred_check_branch
        %291 = sbr.rel (%p289) target = $region40
      $region39: #{spatial_attention.2} parent=23 // pred_region
        _
      $region40: #{spatial_attention.2} parent=23 // pred_fallthru
        _
    $region24: #{spatial_attention.2} parent=5 // pred_fallthru
      _
    %p292 = scmp.le.s32.totalorder 2, %s7
    // Predicated region
    $region41: #{spatial_attention.2} parent=5 // pred_check
      %p293 = pneg %p292
    $region42: #{spatial_attention.2} parent=5 // pred_check_branch
      %295 = sbr.rel (%p293) target = $region44
    $region43: #{spatial_attention.2} parent=5 // pred_region
      %s296 = ssub.s32 %s7, 2
      // Predicated region
      $region45: #{spatial_attention.2} parent=43 // pred_check
        %p297 = pneg %p76
      $region46: #{spatial_attention.2} parent=43 // pred_check_branch
        %299 = sbr.rel (%p297) target = $region48
      $region47: #{spatial_attention.2} parent=43 // pred_region
        %p300 = scmp.lt.s32.totalorder %s18, 1
        %s301 = scalar_select %p300, %s18, 1
        %s302 = smul.addr %s301, 2
        %s303 = smul.addr %s302, 2
        %s304 = scalar_lea.vmem %s1, %s303
      $region48: #{spatial_attention.2} parent=43 // pred_fallthru
        _
    $region44: #{spatial_attention.2} parent=5 // pred_fallthru
      _
  $region6: #{spatial_attention.2} parent=0 // loop_footer
    %s11 = sadd.s32 1, %s7
  $region7: #{spatial_attention.2} parent=0 // loop_footer_branch
    %6 = sbr.rel target = $region3
  $region8: #{spatial_attention.2} parent=0 // loop_exit
    _

// kernel: spatial_attention.3
$region0: #{spatial_attention.3}
  #allocation0 [shape = 'u32[]', space=smem, size = 0x4, offset = 0x4, fixed_abs, tag = 'smem constant byte address 0x4 - core index']
  #allocation1 [shape = 'u32[144,128]{1,0:T(1,128)}', space=vmem, size = 0x12000, scoped, tag = 'internal scratch']
  #allocation2 [shape = 'f32[2,22,128]{2,1,0:T(8,128)}', space=vmem, size = 0x6000, scoped, tag = 'scratch operand']
  #allocation3 [shape = 's32[1]{0}', space=sflag, size = 0x4, scoped, tag = 'scoped memory for spatial_attention.3']
  #allocation4 [shape = 'u8[512]{0}', space=smem, size = 0x200, scoped, tag = 'prefetched SMEM operand 0']
  %s0 = inlined_call_operand.vmem [shape: f32[98], index: 0, kind: input, shape index: {}]
  %s1 = inlined_call_operand.vmem [shape: f32[2,2,16,16], index: 1, kind: input, shape index: {}]
  %s2 = inlined_call_operand.hbm [shape: f32[2,1,16,16], index: 2, kind: output, shape index: {}]
  %s3 = sld [smem:[#allocation0]]
  $region37: #{spatial_attention.3} parent=0
    _
  %s5 = ssub.s32 1, %s3
  %s6 = scalar_select 0, %s5, %s3
  %s7 = sshll.u32 %s0, 4
  %s8 = int_to_ptr.vmem [resolvable:$true] %s7
  %10 = dma.vmem_to_smem %s8, 16, [#allocation4], [#allocation3]
  %11 = dma.done [#allocation3], 16
  %12 = sfence
  $region1: #{spatial_attention.3} parent=0
    #allocation5 [shape = 'u8[16384]{0}', space=vmem, size = 0x4000, scoped, tag = 'output window, operand 0']
    #allocation6 [shape = 's32[2]{0}', space=sflag, size = 0x8, scoped, tag = 'scoped memory for spatial_attention.3']
    %13 = vsyncpa [#allocation6], 0
    %s14 = scalar_lea.sflag [#allocation6], 1
    %15 = vsyncpa %s14, 0
    loop: start=0, step=1, limit=4
    $region2: #{spatial_attention.3} parent=1 // loop_pre_header
      _
    $region3: #{spatial_attention.3} parent=1 // loop_header
      %s17 = sphi 0, %s21
      %p18 = scmp.ge.s32.totalorder %s17, 4
      %s27 = sphi 0, %s29
      %s30 = sphi 0, %s27
      %s31 = sphi 0, %s30
      %s47 = sphi 0, %s31
      %s53 = sphi 0, %s55
      %s56 = sphi 0, %s53
      %s57 = sphi 0, %s56
      %s73 = sphi 0, %s57
    $region4: #{spatial_attention.3} parent=1 // loop_header_branch
      %20 = sbr.rel (%p18) target = $region8
    $region5: #{spatial_attention.3} parent=1 // loop_body
      %s22 = ssub.s32 %s17, 1
      %s23 = ssub.s32 %s17, 2
      %s24 = sadd.s32 %s17, 1
      %s25 = ssub.s32 %s17, %s24
      %p26 = scmp.eq.s32.totalorder %s25, 0
      %s28 = sadd.s32 %s27, 1
      %s29 = scalar_select %p26, %s27, %s28
      %p32 = pneg %p26
      %p33 = scmp.eq.s32.totalorder %s17, 1
      %p34 = por %p32, %p33
      %p35 = scmp.ne.s32.totalorder %s27, %s30
      %p36 = scmp.eq.s32.totalorder %s17, 0
      %p37 = por %p35, %p36
      %p38 = scmp.ne.s32.totalorder %s27, %s30
      %p39 = scmp.eq.s32.totalorder %s22, 1
      %p40 = por %p38, %p39
      %p41 = scmp.ne.s32.totalorder %s30, %s31
      %p42 = scmp.eq.s32.totalorder %s22, 0
      %p43 = por %p41, %p42
      %p44 = scmp.ne.s32.totalorder %s30, %s31
      %p45 = scmp.eq.s32.totalorder %s23, 1
      %p46 = por %p44, %p45
      %p48 = scmp.ne.s32.totalorder %s31, %s47
      %p49 = scmp.eq.s32.totalorder %s23, 0
      %p50 = por %p48, %p49
      %s51 = ssub.s32 %s17, %s24
      %p52 = scmp.eq.s32.totalorder %s51, 0
      %s54 = sadd.s32 %s53, 1
      %s55 = scalar_select %p52, %s53, %s54
      %p58 = pneg %p52
      %p59 = scmp.eq.s32.totalorder %s17, 1
      %p60 = por %p58, %p59
      %p61 = scmp.ne.s32.totalorder %s53, %s56
      %p62 = scmp.eq.s32.totalorder %s17, 0
      %p63 = por %p61, %p62
      %p64 = scmp.ne.s32.totalorder %s53, %s56
      %p65 = scmp.eq.s32.totalorder %s22, 1
      %p66 = por %p64, %p65
      %p67 = scmp.ne.s32.totalorder %s56, %s57
      %p68 = scmp.eq.s32.totalorder %s22, 0
      %p69 = por %p67, %p68
      %p70 = scmp.ne.s32.totalorder %s56, %s57
      %p71 = scmp.eq.s32.totalorder %s23, 1
      %p72 = por %p70, %p71
      %p74 = scmp.ne.s32.totalorder %s57, %s73
      %p75 = scmp.eq.s32.totalorder %s23, 0
      %p76 = por %p74, %p75
      %p77 = scmp.le.s32.totalorder 1, %s17
      %p78 = scmp.lt.s32.totalorder %s17, 3
      %p79 = pnand %p77, %p78
      %p80 = pneg %p79
      // Predicated region
      $region9: #{spatial_attention.3} parent=5 // pred_check
        _
      $region10: #{spatial_attention.3} parent=5 // pred_check_branch
        %82 = sbr.rel (%p79) target = $region12
      $region11: #{spatial_attention.3} parent=5 // pred_region
        %s83 = ssub.s32 %s17, 1
      $region12: #{spatial_attention.3} parent=5 // pred_fallthru
        _
      %p84 = scmp.lt.s32.totalorder %s17, 2
      // Predicated region
      $region13: #{spatial_attention.3} parent=5 // pred_check
        %p85 = pneg %p84
      $region14: #{spatial_attention.3} parent=5 // pred_check_branch
        %87 = sbr.rel (%p85) target = $region16
      $region15: #{spatial_attention.3} parent=5 // pred_region
        // Predicated region
        $region17: #{spatial_attention.3} parent=15 // pred_check
          %p88 = pneg %p37
        $region18: #{spatial_attention.3} parent=15 // pred_check_branch
          %90 = sbr.rel (%p88) target = $region20
        $region19: #{spatial_attention.3} parent=15 // pred_region
          %p91 = scmp.lt.s32.totalorder %s17, 1
          %s92 = scalar_select %p91, %s17, 1
          %s93 = smul.addr %s92, 4
          %s94 = smul.addr %s93, 8
          %s95 = scalar_lea.vmem %s1, %s94
        $region20: #{spatial_attention.3} parent=15 // pred_fallthru
          _
      $region16: #{spatial_attention.3} parent=5 // pred_fallthru
        _
      %p96 = scmp.le.s32.totalorder 1, %s17
      %p97 = scmp.lt.s32.totalorder %s17, 3
      %p98 = pnand %p96, %p97
      %p99 = pneg %p98
      // Predicated region
      $region21: #{spatial_attention.3} parent=5 // pred_check
        _
      $region22: #{spatial_attention.3} parent=5 // pred_check_branch
        %101 = sbr.rel (%p98) target = $region24
      $region23: #{spatial_attention.3} parent=5 // pred_region
        %s102 = ssub.s32 %s17, 1
        %p103 = scmp.lt.s32.totalorder %s22, 1
        %s104 = scalar_select %p103, %s22, 1
        %s105 = smul.addr %s104, 4
        %s106 = smul.addr %s105, 8
        %s107 = scalar_lea.vmem %s1, %s106
        %p108 = pneg %p43
        %p109 = pneg %p40
        %p110 = pneg %p69
        %p111 = pneg %p66
        %s112 = sand.u32 %s56, 1
        %s113 = scalar_lea.sflag [#allocation6], %s112
        %s114 = sand.u32 %s56, 1
        %s115 = smul.addr %s114, 16
        %s116 = scalar_lea.vmem [#allocation5], %s115
        %p117 = scmp.lt.s32.totalorder %s22, 1
        %s118 = scalar_select %p117, %s22, 1
        %s119 = smul.addr %s118, 4
        %s120 = smul.addr %s119, 8
        %s121 = scalar_lea.vmem %s1, %s120
        %122 = vst [vmem:[#allocation2] sm:$0xff] 0.0
        %123 = vst [vmem:[#allocation2 + $0x8] sm:$0xff] 0.0
        %124 = vst [vmem:[#allocation2 + $0x10] sm:$0x3f] 0.0
        %125 = vst [vmem:[#allocation2 + $0x18] sm:$0xff] 0.0
        %126 = vst [vmem:[#allocation2 + $0x20] sm:$0xff] 0.0
        %127 = vst [vmem:[#allocation2 + $0x28] sm:$0x3f] 0.0
        %v128 = vld [vmem:[%s121] sm:$0xff]
        %v129 = vld [vmem:[%s121 + $0x8] sm:$0xff]
        %vm130 = vcmask 130048
        %131 = vst.msk [vmem:[#allocation2 + $0x3] sm:$0xff] %vm130, %v128
        %132 = vst.msk [vmem:[#allocation2 + $0xb] sm:$0xff] %vm130, %v129
        %s133 = scalar_lea.vmem %s121, 16
        %v134 = vld [vmem:[%s133] sm:$0xff]
        %v135 = vld [vmem:[%s133 + $0x8] sm:$0xff]
        %s136 = scalar_lea.vmem [#allocation2], 24
        %137 = vst.msk [vmem:[%s136 + $0x3] sm:$0xff] %vm130, %v134
        %138 = vst.msk [vmem:[%s136 + $0xb] sm:$0xff] %vm130, %v135
        %s139 = sld [smem:[#allocation4]]
        %s140 = sld [smem:[#allocation4 + $0x1]]
        %s141 = sld [smem:[#allocation4 + $0x2]]
        %s142 = sld [smem:[#allocation4 + $0x3]]
        %s143 = sld [smem:[#allocation4 + $0x4]]
        %s144 = sld [smem:[#allocation4 + $0x5]]
        %s145 = sld [smem:[#allocation4 + $0x6]]
        %s146 = sld [smem:[#allocation4 + $0x7]]
        %s147 = sld [smem:[#allocation4 + $0x8]]
        %s148 = sld [smem:[#allocation4 + $0x9]]
        %s149 = sld [smem:[#allocation4 + $0xa]]
        %s150 = sld [smem:[#allocation4 + $0xb]]
        %s151 = sld [smem:[#allocation4 + $0xc]]
        %s152 = sld [smem:[#allocation4 + $0xd]]
        %s153 = sld [smem:[#allocation4 + $0xe]]
        %s154 = sld [smem:[#allocation4 + $0xf]]
        %s155 = sld [smem:[#allocation4 + $0x10]]
        %s156 = sld [smem:[#allocation4 + $0x11]]
        %s157 = sld [smem:[#allocation4 + $0x12]]
        %s158 = sld [smem:[#allocation4 + $0x13]]
        %s159 = sld [smem:[#allocation4 + $0x14]]
        %s160 = sld [smem:[#allocation4 + $0x15]]
        %s161 = sld [smem:[#allocation4 + $0x16]]
        %s162 = sld [smem:[#allocation4 + $0x17]]
        %s163 = sld [smem:[#allocation4 + $0x18]]
        %s164 = sld [smem:[#allocation4 + $0x19]]
        %s165 = sld [smem:[#allocation4 + $0x1a]]
        %s166 = sld [smem:[#allocation4 + $0x1b]]
        %s167 = sld [smem:[#allocation4 + $0x1c]]
        %s168 = sld [smem:[#allocation4 + $0x1d]]
        %s169 = sld [smem:[#allocation4 + $0x1e]]
        %s170 = sld [smem:[#allocation4 + $0x1f]]
        %s171 = sld [smem:[#allocation4 + $0x20]]
        %s172 = sld [smem:[#allocation4 + $0x21]]
        %s173 = sld [smem:[#allocation4 + $0x22]]
        %s174 = sld [smem:[#allocation4 + $0x23]]
        %s175 = sld [smem:[#allocation4 + $0x24]]
        %s176 = sld [smem:[#allocation4 + $0x25]]
        %s177 = sld [smem:[#allocation4 + $0x26]]
        %s178 = sld [smem:[#allocation4 + $0x27]]
        %s179 = sld [smem:[#allocation4 + $0x28]]
        %s180 = sld [smem:[#allocation4 + $0x29]]
        %s181 = sld [smem:[#allocation4 + $0x2a]]
        %s182 = sld [smem:[#allocation4 + $0x2b]]
        %s183 = sld [smem:[#allocation4 + $0x2c]]
        %s184 = sld [smem:[#allocation4 + $0x2d]]
        %s185 = sld [smem:[#allocation4 + $0x2e]]
        %s186 = sld [smem:[#allocation4 + $0x2f]]
        %s187 = sld [smem:[#allocation4 + $0x30]]
        %s188 = sld [smem:[#allocation4 + $0x31]]
        %s189 = sld [smem:[#allocation4 + $0x32]]
        %s190 = sld [smem:[#allocation4 + $0x33]]
        %s191 = sld [smem:[#allocation4 + $0x34]]
        %s192 = sld [smem:[#allocation4 + $0x35]]
        %s193 = sld [smem:[#allocation4 + $0x36]]
        %s194 = sld [smem:[#allocation4 + $0x37]]
        %s195 = sld [smem:[#allocation4 + $0x38]]
        %s196 = sld [smem:[#allocation4 + $0x39]]
        %s197 = sld [smem:[#allocation4 + $0x3a]]
        %s198 = sld [smem:[#allocation4 + $0x3b]]
        %s199 = sld [smem:[#allocation4 + $0x3c]]
        %s200 = sld [smem:[#allocation4 + $0x3d]]
        %s201 = sld [smem:[#allocation4 + $0x3e]]
        %s202 = sld [smem:[#allocation4 + $0x3f]]
        %s203 = sld [smem:[#allocation4 + $0x40]]
        %s204 = sld [smem:[#allocation4 + $0x41]]
        %s205 = sld [smem:[#allocation4 + $0x42]]
        %s206 = sld [smem:[#allocation4 + $0x43]]
        %s207 = sld [smem:[#allocation4 + $0x44]]
        %s208 = sld [smem:[#allocation4 + $0x45]]
        %s209 = sld [smem:[#allocation4 + $0x46]]
        %s210 = sld [smem:[#allocation4 + $0x47]]
        %s211 = sld [smem:[#allocation4 + $0x48]]
        %s212 = sld [smem:[#allocation4 + $0x49]]
        %s213 = sld [smem:[#allocation4 + $0x4a]]
        %s214 = sld [smem:[#allocation4 + $0x4b]]
        %s215 = sld [smem:[#allocation4 + $0x4c]]
        %s216 = sld [smem:[#allocation4 + $0x4d]]
        %s217 = sld [smem:[#allocation4 + $0x4e]]
        %s218 = sld [smem:[#allocation4 + $0x4f]]
        %s219 = sld [smem:[#allocation4 + $0x50]]
        %s220 = sld [smem:[#allocation4 + $0x51]]
        %s221 = sld [smem:[#allocation4 + $0x52]]
        %s222 = sld [smem:[#allocation4 + $0x53]]
        %s223 = sld [smem:[#allocation4 + $0x54]]
        %s224 = sld [smem:[#allocation4 + $0x55]]
        %s225 = sld [smem:[#allocation4 + $0x56]]
        %s226 = sld [smem:[#allocation4 + $0x57]]
        %s227 = sld [smem:[#allocation4 + $0x58]]
        %s228 = sld [smem:[#allocation4 + $0x59]]
        %s229 = sld [smem:[#allocation4 + $0x5a]]
        %s230 = sld [smem:[#allocation4 + $0x5b]]
        %s231 = sld [smem:[#allocation4 + $0x5c]]
        %s232 = sld [smem:[#allocation4 + $0x5d]]
        %s233 = sld [smem:[#allocation4 + $0x5e]]
        %s234 = sld [smem:[#allocation4 + $0x5f]]
        %s235 = sld [smem:[#allocation4 + $0x60]]
        %s236 = sld [smem:[#allocation4 + $0x61]]
        %v237 = vld [vmem:[#allocation2] sm:$0xff]
        %v238 = vld [vmem:[#allocation2 + $0x8] sm:$0x3f]
        %239 = vrot.lane.b32.xlu0 %v237, 3
        %v240 = vpop.permute.xlu0 %239
        %241 = vrot.lane.b32.xlu0 %v238, 3
        %v242 = vpop.permute.xlu0 %241
        %v243 = vstv %s139
        %v244 = vmul.f32 %v243, %v240
        %v245 = vstv %s146
        %v246 = vmul.f32 %v245, %v240
        %v247 = vmul.f32 %v245, %v242
        %vm250 = vcmask 1046528
        %v251 = vrot.slane %v246, 1
        %v252 = vrot.slane %v247, 1
        %v253 = vsel %vm250, %v251, %v252
        %v255 = vadd.f32 %v244, %v253
        %v256 = vstv %s153
        %v257 = vmul.f32 %v256, %v240
        %v258 = vmul.f32 %v256, %v242
        %vm261 = vcmask 1045504
        %v262 = vrot.slane %v257, 2
        %v263 = vrot.slane %v258, 2
        %v264 = vsel %vm261, %v262, %v263
        %v266 = vadd.f32 %v255, %v264
        %v267 = vstv %s160
        %v268 = vmul.f32 %v267, %v240
        %v269 = vmul.f32 %v267, %v242
        %vm272 = vcmask 1044480
        %v273 = vrot.slane %v268, 3
        %v274 = vrot.slane %v269, 3
        %v275 = vsel %vm272, %v273, %v274
        %v277 = vadd.f32 %v266, %v275
        %v278 = vstv %s167
        %v279 = vmul.f32 %v278, %v240
        %v280 = vmul.f32 %v278, %v242
        %vm283 = vcmask 1043456
        %v284 = vrot.slane %v279, 4
        %v285 = vrot.slane %v280, 4
        %v286 = vsel %vm283, %v284, %v285
        %v288 = vadd.f32 %v277, %v286
        %v289 = vstv %s174
        %v290 = vmul.f32 %v289, %v240
        %v291 = vmul.f32 %v289, %v242
        %vm294 = vcmask 1042432
        %v295 = vrot.slane %v290, 5
        %v296 = vrot.slane %v291, 5
        %v297 = vsel %vm294, %v295, %v296
        %v299 = vadd.f32 %v288, %v297
        %v300 = vstv %s181
        %v301 = vmul.f32 %v300, %v240
        %v302 = vmul.f32 %v300, %v242
        %vm305 = vcmask 1041408
        %v306 = vrot.slane %v301, 6
        %v307 = vrot.slane %v302, 6
        %v308 = vsel %vm305, %v306, %v307
        %v310 = vadd.f32 %v299, %v308
        %311 = vrot.lane.b32.xlu0 %v237, 2
        %v312 = vpop.permute.xlu0 %311
        %313 = vrot.lane.b32.xlu0 %v238, 2
        %v314 = vpop.permute.xlu0 %313
        %v315 = vstv %s140
        %v316 = vmul.f32 %v315, %v312
        %v317 = vstv %s147
        %v318 = vmul.f32 %v317, %v312
        %v319 = vmul.f32 %v317, %v314
        %v322 = vrot.slane %v318, 1
        %v323 = vrot.slane %v319, 1
        %v324 = vsel %vm250, %v322, %v323
        %v326 = vadd.f32 %v316, %v324
        %v327 = vstv %s154
        %v328 = vmul.f32 %v327, %v312
        %v329 = vmul.f32 %v327, %v314
        %v332 = vrot.slane %v328, 2
        %v333 = vrot.slane %v329, 2
        %v334 = vsel %vm261, %v332, %v333
        %v336 = vadd.f32 %v326, %v334
        %v337 = vstv %s161
        %v338 = vmul.f32 %v337, %v312
        %v339 = vmul.f32 %v337, %v314
        %v342 = vrot.slane %v338, 3
        %v343 = vrot.slane %v339, 3
        %v344 = vsel %vm272, %v342, %v343
        %v346 = vadd.f32 %v336, %v344
        %v347 = vstv %s168
        %v348 = vmul.f32 %v347, %v312
        %v349 = vmul.f32 %v347, %v314
        %v352 = vrot.slane %v348, 4
        %v353 = vrot.slane %v349, 4
        %v354 = vsel %vm283, %v352, %v353
        %v356 = vadd.f32 %v346, %v354
        %v357 = vstv %s175
        %v358 = vmul.f32 %v357, %v312
        %v359 = vmul.f32 %v357, %v314
        %v362 = vrot.slane %v358, 5
        %v363 = vrot.slane %v359, 5
        %v364 = vsel %vm294, %v362, %v363
        %v366 = vadd.f32 %v356, %v364
        %v367 = vstv %s182
        %v368 = vmul.f32 %v367, %v312
        %v369 = vmul.f32 %v367, %v314
        %v372 = vrot.slane %v368, 6
        %v373 = vrot.slane %v369, 6
        %v374 = vsel %vm305, %v372, %v373
        %v376 = vadd.f32 %v366, %v374
        %377 = vrot.lane.b32.xlu0 %v237, 1
        %v378 = vpop.permute.xlu0 %377
        %379 = vrot.lane.b32.xlu0 %v238, 1
        %v380 = vpop.permute.xlu0 %379
        %v381 = vstv %s141
        %v382 = vmul.f32 %v381, %v378
        %v383 = vadd.f32 %v310, %v382
        %v384 = vstv %s148
        %v385 = vmul.f32 %v384, %v378
        %v386 = vmul.f32 %v384, %v380
        %v389 = vrot.slane %v385, 1
        %v390 = vrot.slane %v386, 1
        %v391 = vsel %vm250, %v389, %v390
        %v393 = vadd.f32 %v383, %v391
        %v394 = vstv %s155
        %v395 = vmul.f32 %v394, %v378
        %v396 = vmul.f32 %v394, %v380
        %v399 = vrot.slane %v395, 2
        %v400 = vrot.slane %v396, 2
        %v401 = vsel %vm261, %v399, %v400
        %v403 = vadd.f32 %v393, %v401
        %v404 = vstv %s162
        %v405 = vmul.f32 %v404, %v378
        %v406 = vmul.f32 %v404, %v380
        %v409 = vrot.slane %v405, 3
        %v410 = vrot.slane %v406, 3
        %v411 = vsel %vm272, %v409, %v410
        %v413 = vadd.f32 %v403, %v411
        %v414 = vstv %s169
        %v415 = vmul.f32 %v414, %v378
        %v416 = vmul.f32 %v414, %v380
        %v419 = vrot.slane %v415, 4
        %v420 = vrot.slane %v416, 4
        %v421 = vsel %vm283, %v419, %v420
        %v423 = vadd.f32 %v413, %v421
        %v424 = vstv %s176
        %v425 = vmul.f32 %v424, %v378
        %v426 = vmul.f32 %v424, %v380
        %v429 = vrot.slane %v425, 5
        %v430 = vrot.slane %v426, 5
        %v431 = vsel %vm294, %v429, %v430
        %v433 = vadd.f32 %v423, %v431
        %v434 = vstv %s183
        %v435 = vmul.f32 %v434, %v378
        %v436 = vmul.f32 %v434, %v380
        %v439 = vrot.slane %v435, 6
        %v440 = vrot.slane %v436, 6
        %v441 = vsel %vm305, %v439, %v440
        %v443 = vadd.f32 %v433, %v441
        %v444 = vstv %s142
        %v445 = vmul.f32 %v444, %v237
        %v446 = vadd.f32 %v376, %v445
        %v447 = vstv %s149
        %v448 = vmul.f32 %v447, %v237
        %v449 = vmul.f32 %v447, %v238
        %v452 = vrot.slane %v448, 1
        %v453 = vrot.slane %v449, 1
        %v454 = vsel %vm250, %v452, %v453
        %v456 = vadd.f32 %v446, %v454
        %v457 = vstv %s156
        %v458 = vmul.f32 %v457, %v237
        %v459 = vmul.f32 %v457, %v238
        %v462 = vrot.slane %v458, 2
        %v463 = vrot.slane %v459, 2
        %v464 = vsel %vm261, %v462, %v463
        %v466 = vadd.f32 %v456, %v464
        %v467 = vstv %s163
        %v468 = vmul.f32 %v467, %v237
        %v469 = vmul.f32 %v467, %v238
        %v472 = vrot.slane %v468, 3
        %v473 = vrot.slane %v469, 3
        %v474 = vsel %vm272, %v472, %v473
        %v476 = vadd.f32 %v466, %v474
        %v477 = vstv %s170
        %v478 = vmul.f32 %v477, %v237
        %v479 = vmul.f32 %v477, %v238
        %v482 = vrot.slane %v478, 4
        %v483 = vrot.slane %v479, 4
        %v484 = vsel %vm283, %v482, %v483
        %v486 = vadd.f32 %v476, %v484
        %v487 = vstv %s177
        %v488 = vmul.f32 %v487, %v237
        %v489 = vmul.f32 %v487, %v238
        %v492 = vrot.slane %v488, 5
        %v493 = vrot.slane %v489, 5
        %v494 = vsel %vm294, %v492, %v493
        %v496 = vadd.f32 %v486, %v494
        %v497 = vstv %s184
        %v498 = vmul.f32 %v497, %v237
        %v499 = vmul.f32 %v497, %v238
        %v502 = vrot.slane %v498, 6
        %v503 = vrot.slane %v499, 6
        %v504 = vsel %vm305, %v502, %v503
        %v506 = vadd.f32 %v496, %v504
        %507 = vrot.lane.b32.xlu0 %v237, 127
        %v508 = vpop.permute.xlu0 %507
        %509 = vrot.lane.b32.xlu0 %v238, 127
        %v510 = vpop.permute.xlu0 %509
        %v511 = vstv %s143
        %v512 = vmul.f32 %v511, %v508
        %v513 = vadd.f32 %v443, %v512
        %v514 = vstv %s150
        %v515 = vmul.f32 %v514, %v508
        %v516 = vmul.f32 %v514, %v510
        %v519 = vrot.slane %v515, 1
        %v520 = vrot.slane %v516, 1
        %v521 = vsel %vm250, %v519, %v520
        %v523 = vadd.f32 %v513, %v521
        %v524 = vstv %s157
        %v525 = vmul.f32 %v524, %v508
        %v526 = vmul.f32 %v524, %v510
        %v529 = vrot.slane %v525, 2
        %v530 = vrot.slane %v526, 2
        %v531 = vsel %vm261, %v529, %v530
        %v533 = vadd.f32 %v523, %v531
        %v534 = vstv %s164
        %v535 = vmul.f32 %v534, %v508
        %v536 = vmul.f32 %v534, %v510
        %v539 = vrot.slane %v535, 3
        %v540 = vrot.slane %v536, 3
        %v541 = vsel %vm272, %v539, %v540
        %v543 = vadd.f32 %v533, %v541
        %v544 = vstv %s171
        %v545 = vmul.f32 %v544, %v508
        %v546 = vmul.f32 %v544, %v510
        %v549 = vrot.slane %v545, 4
        %v550 = vrot.slane %v546, 4
        %v551 = vsel %vm283, %v549, %v550
        %v553 = vadd.f32 %v543, %v551
        %v554 = vstv %s178
        %v555 = vmul.f32 %v554, %v508
        %v556 = vmul.f32 %v554, %v510
        %v559 = vrot.slane %v555, 5
        %v560 = vrot.slane %v556, 5
        %v561 = vsel %vm294, %v559, %v560
        %v563 = vadd.f32 %v553, %v561
        %v564 = vstv %s185
        %v565 = vmul.f32 %v564, %v508
        %v566 = vmul.f32 %v564, %v510
        %v569 = vrot.slane %v565, 6
        %v570 = vrot.slane %v566, 6
        %v571 = vsel %vm305, %v569, %v570
        %v573 = vadd.f32 %v563, %v571
        %574 = vrot.lane.b32.xlu0 %v237, 126
        %v575 = vpop.permute.xlu0 %574
        %576 = vrot.lane.b32.xlu0 %v238, 126
        %v577 = vpop.permute.xlu0 %576
        %v578 = vstv %s144
        %v579 = vmul.f32 %v578, %v575
        %v580 = vadd.f32 %v506, %v579
        %v581 = vstv %s151
        %v582 = vmul.f32 %v581, %v575
        %v583 = vmul.f32 %v581, %v577
        %v586 = vrot.slane %v582, 1
        %v587 = vrot.slane %v583, 1
        %v588 = vsel %vm250, %v586, %v587
        %v590 = vadd.f32 %v580, %v588
        %v591 = vstv %s158
        %v592 = vmul.f32 %v591, %v575
        %v593 = vmul.f32 %v591, %v577
        %v596 = vrot.slane %v592, 2
        %v597 = vrot.slane %v593, 2
        %v598 = vsel %vm261, %v596, %v597
        %v600 = vadd.f32 %v590, %v598
        %v601 = vstv %s165
        %v602 = vmul.f32 %v601, %v575
        %v603 = vmul.f32 %v601, %v577
        %v606 = vrot.slane %v602, 3
        %v607 = vrot.slane %v603, 3
        %v608 = vsel %vm272, %v606, %v607
        %v610 = vadd.f32 %v600, %v608
        %v611 = vstv %s172
        %v612 = vmul.f32 %v611, %v575
        %v613 = vmul.f32 %v611, %v577
        %v616 = vrot.slane %v612, 4
        %v617 = vrot.slane %v613, 4
        %v618 = vsel %vm283, %v616, %v617
        %v620 = vadd.f32 %v610, %v618
        %v621 = vstv %s179
        %v622 = vmul.f32 %v621, %v575
        %v623 = vmul.f32 %v621, %v577
        %v626 = vrot.slane %v622, 5
        %v627 = vrot.slane %v623, 5
        %v628 = vsel %vm294, %v626, %v627
        %v630 = vadd.f32 %v620, %v628
        %v631 = vstv %s186
        %v632 = vmul.f32 %v631, %v575
        %v633 = vmul.f32 %v631, %v577
        %v636 = vrot.slane %v632, 6
        %v637 = vrot.slane %v633, 6
        %v638 = vsel %vm305, %v636, %v637
        %v640 = vadd.f32 %v630, %v638
        %641 = vrot.lane.b32.xlu0 %v237, 125
        %v642 = vpop.permute.xlu0 %641
        %643 = vrot.lane.b32.xlu0 %v238, 125
        %v644 = vpop.permute.xlu0 %643
        %v645 = vstv %s145
        %v646 = vmul.f32 %v645, %v642
        %v647 = vadd.f32 %v573, %v646
        %v648 = vstv %s152
        %v649 = vmul.f32 %v648, %v642
        %v650 = vmul.f32 %v648, %v644
        %v653 = vrot.slane %v649, 1
        %v654 = vrot.slane %v650, 1
        %v655 = vsel %vm250, %v653, %v654
        %v657 = vadd.f32 %v647, %v655
        %v658 = vstv %s159
        %v659 = vmul.f32 %v658, %v642
        %v660 = vmul.f32 %v658, %v644
        %v663 = vrot.slane %v659, 2
        %v664 = vrot.slane %v660, 2
        %v665 = vsel %vm261, %v663, %v664
        %v667 = vadd.f32 %v657, %v665
        %v668 = vstv %s166
        %v669 = vmul.f32 %v668, %v642
        %v670 = vmul.f32 %v668, %v644
        %v673 = vrot.slane %v669, 3
        %v674 = vrot.slane %v670, 3
        %v675 = vsel %vm272, %v673, %v674
        %v677 = vadd.f32 %v667, %v675
        %v678 = vstv %s173
        %v679 = vmul.f32 %v678, %v642
        %v680 = vmul.f32 %v678, %v644
        %v683 = vrot.slane %v679, 4
        %v684 = vrot.slane %v680, 4
        %v685 = vsel %vm283, %v683, %v684
        %v687 = vadd.f32 %v677, %v685
        %v688 = vstv %s180
        %v689 = vmul.f32 %v688, %v642
        %v690 = vmul.f32 %v688, %v644
        %v693 = vrot.slane %v689, 5
        %v694 = vrot.slane %v690, 5
        %v695 = vsel %vm294, %v693, %v694
        %v697 = vadd.f32 %v687, %v695
        %v698 = vstv %s187
        %v699 = vmul.f32 %v698, %v642
        %v700 = vmul.f32 %v698, %v644
        %v703 = vrot.slane %v699, 6
        %v704 = vrot.slane %v700, 6
        %v705 = vsel %vm305, %v703, %v704
        %v707 = vadd.f32 %v697, %v705
        %v708 = vld [vmem:[%s136] sm:$0xff]
        %v709 = vld [vmem:[%s136 + $0x8] sm:$0x3f]
        %710 = vrot.lane.b32.xlu0 %v708, 3
        %v711 = vpop.permute.xlu0 %710
        %712 = vrot.lane.b32.xlu0 %v709, 3
        %v713 = vpop.permute.xlu0 %712
        %v714 = vstv %s188
        %v715 = vmul.f32 %v714, %v711
        %v716 = vstv %s195
        %v717 = vmul.f32 %v716, %v711
        %v718 = vmul.f32 %v716, %v713
        %v721 = vrot.slane %v717, 1
        %v722 = vrot.slane %v718, 1
        %v723 = vsel %vm250, %v721, %v722
        %v725 = vadd.f32 %v715, %v723
        %v726 = vstv %s202
        %v727 = vmul.f32 %v726, %v711
        %v728 = vmul.f32 %v726, %v713
        %v731 = vrot.slane %v727, 2
        %v732 = vrot.slane %v728, 2
        %v733 = vsel %vm261, %v731, %v732
        %v735 = vadd.f32 %v725, %v733
        %v736 = vstv %s209
        %v737 = vmul.f32 %v736, %v711
        %v738 = vmul.f32 %v736, %v713
        %v741 = vrot.slane %v737, 3
        %v742 = vrot.slane %v738, 3
        %v743 = vsel %vm272, %v741, %v742
        %v745 = vadd.f32 %v735, %v743
        %v746 = vstv %s216
        %v747 = vmul.f32 %v746, %v711
        %v748 = vmul.f32 %v746, %v713
        %v751 = vrot.slane %v747, 4
        %v752 = vrot.slane %v748, 4
        %v753 = vsel %vm283, %v751, %v752
        %v755 = vadd.f32 %v745, %v753
        %v756 = vstv %s223
        %v757 = vmul.f32 %v756, %v711
        %v758 = vmul.f32 %v756, %v713
        %v761 = vrot.slane %v757, 5
        %v762 = vrot.slane %v758, 5
        %v763 = vsel %vm294, %v761, %v762
        %v765 = vadd.f32 %v755, %v763
        %v766 = vstv %s230
        %v767 = vmul.f32 %v766, %v711
        %v768 = vmul.f32 %v766, %v713
        %v771 = vrot.slane %v767, 6
        %v772 = vrot.slane %v768, 6
        %v773 = vsel %vm305, %v771, %v772
        %v775 = vadd.f32 %v765, %v773
        %776 = vrot.lane.b32.xlu0 %v708, 2
        %v777 = vpop.permute.xlu0 %776
        %778 = vrot.lane.b32.xlu0 %v709, 2
        %v779 = vpop.permute.xlu0 %778
        %v780 = vstv %s189
        %v781 = vmul.f32 %v780, %v777
        %v782 = vstv %s196
        %v783 = vmul.f32 %v782, %v777
        %v784 = vmul.f32 %v782, %v779
        %v787 = vrot.slane %v783, 1
        %v788 = vrot.slane %v784, 1
        %v789 = vsel %vm250, %v787, %v788
        %v791 = vadd.f32 %v781, %v789
        %v792 = vstv %s203
        %v793 = vmul.f32 %v792, %v777
        %v794 = vmul.f32 %v792, %v779
        %v797 = vrot.slane %v793, 2
        %v798 = vrot.slane %v794, 2
        %v799 = vsel %vm261, %v797, %v798
        %v801 = vadd.f32 %v791, %v799
        %v802 = vstv %s210
        %v803 = vmul.f32 %v802, %v777
        %v804 = vmul.f32 %v802, %v779
        %v807 = vrot.slane %v803, 3
        %v808 = vrot.slane %v804, 3
        %v809 = vsel %vm272, %v807, %v808
        %v811 = vadd.f32 %v801, %v809
        %v812 = vstv %s217
        %v813 = vmul.f32 %v812, %v777
        %v814 = vmul.f32 %v812, %v779
        %v817 = vrot.slane %v813, 4
        %v818 = vrot.slane %v814, 4
        %v819 = vsel %vm283, %v817, %v818
        %v821 = vadd.f32 %v811, %v819
        %v822 = vstv %s224
        %v823 = vmul.f32 %v822, %v777
        %v824 = vmul.f32 %v822, %v779
        %v827 = vrot.slane %v823, 5
        %v828 = vrot.slane %v824, 5
        %v829 = vsel %vm294, %v827, %v828
        %v831 = vadd.f32 %v821, %v829
        %v832 = vstv %s231
        %v833 = vmul.f32 %v832, %v777
        %v834 = vmul.f32 %v832, %v779
        %v837 = vrot.slane %v833, 6
        %v838 = vrot.slane %v834, 6
        %v839 = vsel %vm305, %v837, %v838
        %v841 = vadd.f32 %v831, %v839
        %842 = vrot.lane.b32.xlu0 %v708, 1
        %v843 = vpop.permute.xlu0 %842
        %844 = vrot.lane.b32.xlu0 %v709, 1
        %v845 = vpop.permute.xlu0 %844
        %v846 = vstv %s190
        %v847 = vmul.f32 %v846, %v843
        %v848 = vadd.f32 %v775, %v847
        %v849 = vstv %s197
        %v850 = vmul.f32 %v849, %v843
        %v851 = vmul.f32 %v849, %v845
        %v854 = vrot.slane %v850, 1
        %v855 = vrot.slane %v851, 1
        %v856 = vsel %vm250, %v854, %v855
        %v858 = vadd.f32 %v848, %v856
        %v859 = vstv %s204
        %v860 = vmul.f32 %v859, %v843
        %v861 = vmul.f32 %v859, %v845
        %v864 = vrot.slane %v860, 2
        %v865 = vrot.slane %v861, 2
        %v866 = vsel %vm261, %v864, %v865
        %v868 = vadd.f32 %v858, %v866
        %v869 = vstv %s211
        %v870 = vmul.f32 %v869, %v843
        %v871 = vmul.f32 %v869, %v845
        %v874 = vrot.slane %v870, 3
        %v875 = vrot.slane %v871, 3
        %v876 = vsel %vm272, %v874, %v875
        %v878 = vadd.f32 %v868, %v876
        %v879 = vstv %s218
        %v880 = vmul.f32 %v879, %v843
        %v881 = vmul.f32 %v879, %v845
        %v884 = vrot.slane %v880, 4
        %v885 = vrot.slane %v881, 4
        %v886 = vsel %vm283, %v884, %v885
        %v888 = vadd.f32 %v878, %v886
        %v889 = vstv %s225
        %v890 = vmul.f32 %v889, %v843
        %v891 = vmul.f32 %v889, %v845
        %v894 = vrot.slane %v890, 5
        %v895 = vrot.slane %v891, 5
        %v896 = vsel %vm294, %v894, %v895
        %v898 = vadd.f32 %v888, %v896
        %v899 = vstv %s232
        %v900 = vmul.f32 %v899, %v843
        %v901 = vmul.f32 %v899, %v845
        %v904 = vrot.slane %v900, 6
        %v905 = vrot.slane %v901, 6
        %v906 = vsel %vm305, %v904, %v905
        %v908 = vadd.f32 %v898, %v906
        %v909 = vstv %s191
        %v910 = vmul.f32 %v909, %v708
        %v911 = vadd.f32 %v841, %v910
        %v912 = vstv %s198
        %v913 = vmul.f32 %v912, %v708
        %v914 = vmul.f32 %v912, %v709
        %v917 = vrot.slane %v913, 1
        %v918 = vrot.slane %v914, 1
        %v919 = vsel %vm250, %v917, %v918
        %v921 = vadd.f32 %v911, %v919
        %v922 = vstv %s205
        %v923 = vmul.f32 %v922, %v708
        %v924 = vmul.f32 %v922, %v709
        %v927 = vrot.slane %v923, 2
        %v928 = vrot.slane %v924, 2
        %v929 = vsel %vm261, %v927, %v928
        %v931 = vadd.f32 %v921, %v929
        %v932 = vstv %s212
        %v933 = vmul.f32 %v932, %v708
        %v934 = vmul.f32 %v932, %v709
        %v937 = vrot.slane %v933, 3
        %v938 = vrot.slane %v934, 3
        %v939 = vsel %vm272, %v937, %v938
        %v941 = vadd.f32 %v931, %v939
        %v942 = vstv %s219
        %v943 = vmul.f32 %v942, %v708
        %v944 = vmul.f32 %v942, %v709
        %v947 = vrot.slane %v943, 4
        %v948 = vrot.slane %v944, 4
        %v949 = vsel %vm283, %v947, %v948
        %v951 = vadd.f32 %v941, %v949
        %v952 = vstv %s226
        %v953 = vmul.f32 %v952, %v708
        %v954 = vmul.f32 %v952, %v709
        %v957 = vrot.slane %v953, 5
        %v958 = vrot.slane %v954, 5
        %v959 = vsel %vm294, %v957, %v958
        %v961 = vadd.f32 %v951, %v959
        %v962 = vstv %s233
        %v963 = vmul.f32 %v962, %v708
        %v964 = vmul.f32 %v962, %v709
        %v967 = vrot.slane %v963, 6
        %v968 = vrot.slane %v964, 6
        %v969 = vsel %vm305, %v967, %v968
        %v971 = vadd.f32 %v961, %v969
        %972 = vrot.lane.b32.xlu0 %v708, 127
        %v973 = vpop.permute.xlu0 %972
        %974 = vrot.lane.b32.xlu0 %v709, 127
        %v975 = vpop.permute.xlu0 %974
        %v976 = vstv %s192
        %v977 = vmul.f32 %v976, %v973
        %v978 = vadd.f32 %v908, %v977
        %v979 = vstv %s199
        %v980 = vmul.f32 %v979, %v973
        %v981 = vmul.f32 %v979, %v975
        %v984 = vrot.slane %v980, 1
        %v985 = vrot.slane %v981, 1
        %v986 = vsel %vm250, %v984, %v985
        %v988 = vadd.f32 %v978, %v986
        %v989 = vstv %s206
        %v990 = vmul.f32 %v989, %v973
        %v991 = vmul.f32 %v989, %v975
        %v994 = vrot.slane %v990, 2
        %v995 = vrot.slane %v991, 2
        %v996 = vsel %vm261, %v994, %v995
        %v998 = vadd.f32 %v988, %v996
        %v999 = vstv %s213
        %v1000 = vmul.f32 %v999, %v973
        %v1001 = vmul.f32 %v999, %v975
        %v1004 = vrot.slane %v1000, 3
        %v1005 = vrot.slane %v1001, 3
        %v1006 = vsel %vm272, %v1004, %v1005
        %v1008 = vadd.f32 %v998, %v1006
        %v1009 = vstv %s220
        %v1010 = vmul.f32 %v1009, %v973
        %v1011 = vmul.f32 %v1009, %v975
        %v1014 = vrot.slane %v1010, 4
        %v1015 = vrot.slane %v1011, 4
        %v1016 = vsel %vm283, %v1014, %v1015
        %v1018 = vadd.f32 %v1008, %v1016
        %v1019 = vstv %s227
        %v1020 = vmul.f32 %v1019, %v973
        %v1021 = vmul.f32 %v1019, %v975
        %v1024 = vrot.slane %v1020, 5
        %v1025 = vrot.slane %v1021, 5
        %v1026 = vsel %vm294, %v1024, %v1025
        %v1028 = vadd.f32 %v1018, %v1026
        %v1029 = vstv %s234
        %v1030 = vmul.f32 %v1029, %v973
        %v1031 = vmul.f32 %v1029, %v975
        %v1034 = vrot.slane %v1030, 6
        %v1035 = vrot.slane %v1031, 6
        %v1036 = vsel %vm305, %v1034, %v1035
        %v1038 = vadd.f32 %v1028, %v1036
        %1039 = vrot.lane.b32.xlu0 %v708, 126
        %v1040 = vpop.permute.xlu0 %1039
        %1041 = vrot.lane.b32.xlu0 %v709, 126
        %v1042 = vpop.permute.xlu0 %1041
        %v1043 = vstv %s193
        %v1044 = vmul.f32 %v1043, %v1040
        %v1045 = vadd.f32 %v971, %v1044
        %v1046 = vstv %s200
        %v1047 = vmul.f32 %v1046, %v1040
        %v1048 = vmul.f32 %v1046, %v1042
        %v1051 = vrot.slane %v1047, 1
        %v1052 = vrot.slane %v1048, 1
        %v1053 = vsel %vm250, %v1051, %v1052
        %v1055 = vadd.f32 %v1045, %v1053
        %v1056 = vstv %s207
        %v1057 = vmul.f32 %v1056, %v1040
        %v1058 = vmul.f32 %v1056, %v1042
        %v1061 = vrot.slane %v1057, 2
        %v1062 = vrot.slane %v1058, 2
        %v1063 = vsel %vm261, %v1061, %v1062
        %v1065 = vadd.f32 %v1055, %v1063
        %v1066 = vstv %s214
        %v1067 = vmul.f32 %v1066, %v1040
        %v1068 = vmul.f32 %v1066, %v1042
        %v1071 = vrot.slane %v1067, 3
        %v1072 = vrot.slane %v1068, 3
        %v1073 = vsel %vm272, %v1071, %v1072
        %v1075 = vadd.f32 %v1065, %v1073
        %v1076 = vstv %s221
        %v1077 = vmul.f32 %v1076, %v1040
        %v1078 = vmul.f32 %v1076, %v1042
        %v1081 = vrot.slane %v1077, 4
        %v1082 = vrot.slane %v1078, 4
        %v1083 = vsel %vm283, %v1081, %v1082
        %v1085 = vadd.f32 %v1075, %v1083
        %v1086 = vstv %s228
        %v1087 = vmul.f32 %v1086, %v1040
        %v1088 = vmul.f32 %v1086, %v1042
        %v1091 = vrot.slane %v1087, 5
        %v1092 = vrot.slane %v1088, 5
        %v1093 = vsel %vm294, %v1091, %v1092
        %v1095 = vadd.f32 %v1085, %v1093
        %v1096 = vstv %s235
        %v1097 = vmul.f32 %v1096, %v1040
        %v1098 = vmul.f32 %v1096, %v1042
        %v1101 = vrot.slane %v1097, 6
        %v1102 = vrot.slane %v1098, 6
        %v1103 = vsel %vm305, %v1101, %v1102
        %v1105 = vadd.f32 %v1095, %v1103
        %1106 = vrot.lane.b32.xlu0 %v708, 125
        %v1107 = vpop.permute.xlu0 %1106
        %1108 = vrot.lane.b32.xlu0 %v709, 125
        %v1109 = vpop.permute.xlu0 %1108
        %v1110 = vstv %s194
        %v1111 = vmul.f32 %v1110, %v1107
        %v1112 = vadd.f32 %v1038, %v1111
        %v1113 = vstv %s201
        %v1114 = vmul.f32 %v1113, %v1107
        %v1115 = vmul.f32 %v1113, %v1109
        %v1118 = vrot.slane %v1114, 1
        %v1119 = vrot.slane %v1115, 1
        %v1120 = vsel %vm250, %v1118, %v1119
        %v1122 = vadd.f32 %v1112, %v1120
        %v1123 = vstv %s208
        %v1124 = vmul.f32 %v1123, %v1107
        %v1125 = vmul.f32 %v1123, %v1109
        %v1128 = vrot.slane %v1124, 2
        %v1129 = vrot.slane %v1125, 2
        %v1130 = vsel %vm261, %v1128, %v1129
        %v1132 = vadd.f32 %v1122, %v1130
        %v1133 = vstv %s215
        %v1134 = vmul.f32 %v1133, %v1107
        %v1135 = vmul.f32 %v1133, %v1109
        %v1138 = vrot.slane %v1134, 3
        %v1139 = vrot.slane %v1135, 3
        %v1140 = vsel %vm272, %v1138, %v1139
        %v1142 = vadd.f32 %v1132, %v1140
        %v1143 = vstv %s222
        %v1144 = vmul.f32 %v1143, %v1107
        %v1145 = vmul.f32 %v1143, %v1109
        %v1148 = vrot.slane %v1144, 4
        %v1149 = vrot.slane %v1145, 4
        %v1150 = vsel %vm283, %v1148, %v1149
        %v1152 = vadd.f32 %v1142, %v1150
        %v1153 = vstv %s229
        %v1154 = vmul.f32 %v1153, %v1107
        %v1155 = vmul.f32 %v1153, %v1109
        %v1158 = vrot.slane %v1154, 5
        %v1159 = vrot.slane %v1155, 5
        %v1160 = vsel %vm294, %v1158, %v1159
        %v1162 = vadd.f32 %v1152, %v1160
        %v1163 = vstv %s236
        %v1164 = vmul.f32 %v1163, %v1107
        %v1165 = vmul.f32 %v1163, %v1109
        %v1168 = vrot.slane %v1164, 6
        %v1169 = vrot.slane %v1165, 6
        %v1170 = vsel %vm305, %v1168, %v1169
        %v1172 = vadd.f32 %v1162, %v1170
        %v1173 = vadd.f32 %v707, %v640
        %v1174 = vadd.f32 %v1172, %v1105
        %v1175 = vadd.f32 %v1173, %v1174
        %v1176 = vxor.u32 %v1175, 2147483648
        %v1177 = vmul.f32 %v1176, 1.442695
        %v1178 = vpow.pop %v1177
        %v1179 = vadd.f32 %v1178, 1.0
        %v1180 = vrcp.pop %v1179
        %v1181 = vmul.f32 1.0, %v1180
        %1182 = vst.msk [vmem:[%s116] sm:$0xff] %vm130, %v1181
        %v1183 = vld [vmem:[#allocation2 + $0x8] sm:$0xff]
        %v1184 = vld [vmem:[#allocation2 + $0x10] sm:$0x3f]
        %1185 = vrot.lane.b32.xlu0 %v1183, 3
        %v1186 = vpop.permute.xlu0 %1185
        %1187 = vrot.lane.b32.xlu0 %v1184, 3
        %v1188 = vpop.permute.xlu0 %1187
        %v1189 = vmul.f32 %v243, %v1186
        %v1190 = vmul.f32 %v245, %v1186
        %v1191 = vmul.f32 %v245, %v1188
        %v1194 = vrot.slane %v1190, 1
        %v1195 = vrot.slane %v1191, 1
        %v1196 = vsel %vm250, %v1194, %v1195
        %v1198 = vadd.f32 %v1189, %v1196
        %v1199 = vmul.f32 %v256, %v1186
        %v1200 = vmul.f32 %v256, %v1188
        %v1203 = vrot.slane %v1199, 2
        %v1204 = vrot.slane %v1200, 2
        %v1205 = vsel %vm261, %v1203, %v1204
        %v1207 = vadd.f32 %v1198, %v1205
        %v1208 = vmul.f32 %v267, %v1186
        %v1209 = vmul.f32 %v267, %v1188
        %v1212 = vrot.slane %v1208, 3
        %v1213 = vrot.slane %v1209, 3
        %v1214 = vsel %vm272, %v1212, %v1213
        %v1216 = vadd.f32 %v1207, %v1214
        %v1217 = vmul.f32 %v278, %v1186
        %v1218 = vmul.f32 %v278, %v1188
        %v1221 = vrot.slane %v1217, 4
        %v1222 = vrot.slane %v1218, 4
        %v1223 = vsel %vm283, %v1221, %v1222
        %v1225 = vadd.f32 %v1216, %v1223
        %v1226 = vmul.f32 %v289, %v1186
        %v1227 = vmul.f32 %v289, %v1188
        %v1230 = vrot.slane %v1226, 5
        %v1231 = vrot.slane %v1227, 5
        %v1232 = vsel %vm294, %v1230, %v1231
        %v1234 = vadd.f32 %v1225, %v1232
        %v1235 = vmul.f32 %v300, %v1186
        %v1236 = vmul.f32 %v300, %v1188
        %v1239 = vrot.slane %v1235, 6
        %v1240 = vrot.slane %v1236, 6
        %v1241 = vsel %vm305, %v1239, %v1240
        %v1243 = vadd.f32 %v1234, %v1241
        %1244 = vrot.lane.b32.xlu0 %v1183, 2
        %v1245 = vpop.permute.xlu0 %1244
        %1246 = vrot.lane.b32.xlu0 %v1184, 2
        %v1247 = vpop.permute.xlu0 %1246
        %v1248 = vmul.f32 %v315, %v1245
        %v1249 = vmul.f32 %v317, %v1245
        %v1250 = vmul.f32 %v317, %v1247
        %v1253 = vrot.slane %v1249, 1
        %v1254 = vrot.slane %v1250, 1
        %v1255 = vsel %vm250, %v1253, %v1254
        %v1257 = vadd.f32 %v1248, %v1255
        %v1258 = vmul.f32 %v327, %v1245
        %v1259 = vmul.f32 %v327, %v1247
        %v1262 = vrot.slane %v1258, 2
        %v1263 = vrot.slane %v1259, 2
        %v1264 = vsel %vm261, %v1262, %v1263
        %v1266 = vadd.f32 %v1257, %v1264
        %v1267 = vmul.f32 %v337, %v1245
        %v1268 = vmul.f32 %v337, %v1247
        %v1271 = vrot.slane %v1267, 3
        %v1272 = vrot.slane %v1268, 3
        %v1273 = vsel %vm272, %v1271, %v1272
        %v1275 = vadd.f32 %v1266, %v1273
        %v1276 = vmul.f32 %v347, %v1245
        %v1277 = vmul.f32 %v347, %v1247
        %v1280 = vrot.slane %v1276, 4
        %v1281 = vrot.slane %v1277, 4
        %v1282 = vsel %vm283, %v1280, %v1281
        %v1284 = vadd.f32 %v1275, %v1282
        %v1285 = vmul.f32 %v357, %v1245
        %v1286 = vmul.f32 %v357, %v1247
        %v1289 = vrot.slane %v1285, 5
        %v1290 = vrot.slane %v1286, 5
        %v1291 = vsel %vm294, %v1289, %v1290
        %v1293 = vadd.f32 %v1284, %v1291
        %v1294 = vmul.f32 %v367, %v1245
        %v1295 = vmul.f32 %v367, %v1247
        %v1298 = vrot.slane %v1294, 6
        %v1299 = vrot.slane %v1295, 6
        %v1300 = vsel %vm305, %v1298, %v1299
        %v1302 = vadd.f32 %v1293, %v1300
        %1303 = vrot.lane.b32.xlu0 %v1183, 1
        %v1304 = vpop.permute.xlu0 %1303
        %1305 = vrot.lane.b32.xlu0 %v1184, 1
        %v1306 = vpop.permute.xlu0 %1305
        %v1307 = vmul.f32 %v381, %v1304
        %v1308 = vadd.f32 %v1243, %v1307
        %v1309 = vmul.f32 %v384, %v1304
        %v1310 = vmul.f32 %v384, %v1306
        %v1313 = vrot.slane %v1309, 1
        %v1314 = vrot.slane %v1310, 1
        %v1315 = vsel %vm250, %v1313, %v1314
        %v1317 = vadd.f32 %v1308, %v1315
        %v1318 = vmul.f32 %v394, %v1304
        %v1319 = vmul.f32 %v394, %v1306
        %v1322 = vrot.slane %v1318, 2
        %v1323 = vrot.slane %v1319, 2
        %v1324 = vsel %vm261, %v1322, %v1323
        %v1326 = vadd.f32 %v1317, %v1324
        %v1327 = vmul.f32 %v404, %v1304
        %v1328 = vmul.f32 %v404, %v1306
        %v1331 = vrot.slane %v1327, 3
        %v1332 = vrot.slane %v1328, 3
        %v1333 = vsel %vm272, %v1331, %v1332
        %v1335 = vadd.f32 %v1326, %v1333
        %v1336 = vmul.f32 %v414, %v1304
        %v1337 = vmul.f32 %v414, %v1306
        %v1340 = vrot.slane %v1336, 4
        %v1341 = vrot.slane %v1337, 4
        %v1342 = vsel %vm283, %v1340, %v1341
        %v1344 = vadd.f32 %v1335, %v1342
        %v1345 = vmul.f32 %v424, %v1304
        %v1346 = vmul.f32 %v424, %v1306
        %v1349 = vrot.slane %v1345, 5
        %v1350 = vrot.slane %v1346, 5
        %v1351 = vsel %vm294, %v1349, %v1350
        %v1353 = vadd.f32 %v1344, %v1351
        %v1354 = vmul.f32 %v434, %v1304
        %v1355 = vmul.f32 %v434, %v1306
        %v1358 = vrot.slane %v1354, 6
        %v1359 = vrot.slane %v1355, 6
        %v1360 = vsel %vm305, %v1358, %v1359
        %v1362 = vadd.f32 %v1353, %v1360
        %v1363 = vmul.f32 %v444, %v1183
        %v1364 = vadd.f32 %v1302, %v1363
        %v1365 = vmul.f32 %v447, %v1183
        %v1366 = vmul.f32 %v447, %v1184
        %v1369 = vrot.slane %v1365, 1
        %v1370 = vrot.slane %v1366, 1
        %v1371 = vsel %vm250, %v1369, %v1370
        %v1373 = vadd.f32 %v1364, %v1371
        %v1374 = vmul.f32 %v457, %v1183
        %v1375 = vmul.f32 %v457, %v1184
        %v1378 = vrot.slane %v1374, 2
        %v1379 = vrot.slane %v1375, 2
        %v1380 = vsel %vm261, %v1378, %v1379
        %v1382 = vadd.f32 %v1373, %v1380
        %v1383 = vmul.f32 %v467, %v1183
        %v1384 = vmul.f32 %v467, %v1184
        %v1387 = vrot.slane %v1383, 3
        %v1388 = vrot.slane %v1384, 3
        %v1389 = vsel %vm272, %v1387, %v1388
        %v1391 = vadd.f32 %v1382, %v1389
        %v1392 = vmul.f32 %v477, %v1183
        %v1393 = vmul.f32 %v477, %v1184
        %v1396 = vrot.slane %v1392, 4
        %v1397 = vrot.slane %v1393, 4
        %v1398 = vsel %vm283, %v1396, %v1397
        %v1400 = vadd.f32 %v1391, %v1398
        %v1401 = vmul.f32 %v487, %v1183
        %v1402 = vmul.f32 %v487, %v1184
        %v1405 = vrot.slane %v1401, 5
        %v1406 = vrot.slane %v1402, 5
        %v1407 = vsel %vm294, %v1405, %v1406
        %v1409 = vadd.f32 %v1400, %v1407
        %v1410 = vmul.f32 %v497, %v1183
        %v1411 = vmul.f32 %v497, %v1184
        %v1414 = vrot.slane %v1410, 6
        %v1415 = vrot.slane %v1411, 6
        %v1416 = vsel %vm305, %v1414, %v1415
        %v1418 = vadd.f32 %v1409, %v1416
        %1419 = vrot.lane.b32.xlu0 %v1183, 127
        %v1420 = vpop.permute.xlu0 %1419
        %1421 = vrot.lane.b32.xlu0 %v1184, 127
        %v1422 = vpop.permute.xlu0 %1421
        %v1423 = vmul.f32 %v511, %v1420
        %v1424 = vadd.f32 %v1362, %v1423
        %v1425 = vmul.f32 %v514, %v1420
        %v1426 = vmul.f32 %v514, %v1422
        %v1429 = vrot.slane %v1425, 1
        %v1430 = vrot.slane %v1426, 1
        %v1431 = vsel %vm250, %v1429, %v1430
        %v1433 = vadd.f32 %v1424, %v1431
        %v1434 = vmul.f32 %v524, %v1420
        %v1435 = vmul.f32 %v524, %v1422
        %v1438 = vrot.slane %v1434, 2
        %v1439 = vrot.slane %v1435, 2
        %v1440 = vsel %vm261, %v1438, %v1439
        %v1442 = vadd.f32 %v1433, %v1440
        %v1443 = vmul.f32 %v534, %v1420
        %v1444 = vmul.f32 %v534, %v1422
        %v1447 = vrot.slane %v1443, 3
        %v1448 = vrot.slane %v1444, 3
        %v1449 = vsel %vm272, %v1447, %v1448
        %v1451 = vadd.f32 %v1442, %v1449
        %v1452 = vmul.f32 %v544, %v1420
        %v1453 = vmul.f32 %v544, %v1422
        %v1456 = vrot.slane %v1452, 4
        %v1457 = vrot.slane %v1453, 4
        %v1458 = vsel %vm283, %v1456, %v1457
        %v1460 = vadd.f32 %v1451, %v1458
        %v1461 = vmul.f32 %v554, %v1420
        %v1462 = vmul.f32 %v554, %v1422
        %v1465 = vrot.slane %v1461, 5
        %v1466 = vrot.slane %v1462, 5
        %v1467 = vsel %vm294, %v1465, %v1466
        %v1469 = vadd.f32 %v1460, %v1467
        %v1470 = vmul.f32 %v564, %v1420
        %v1471 = vmul.f32 %v564, %v1422
        %v1474 = vrot.slane %v1470, 6
        %v1475 = vrot.slane %v1471, 6
        %v1476 = vsel %vm305, %v1474, %v1475
        %v1478 = vadd.f32 %v1469, %v1476
        %1479 = vrot.lane.b32.xlu0 %v1183, 126
        %v1480 = vpop.permute.xlu0 %1479
        %1481 = vrot.lane.b32.xlu0 %v1184, 126
        %v1482 = vpop.permute.xlu0 %1481
        %v1483 = vmul.f32 %v578, %v1480
        %v1484 = vadd.f32 %v1418, %v1483
        %v1485 = vmul.f32 %v581, %v1480
        %v1486 = vmul.f32 %v581, %v1482
        %v1489 = vrot.slane %v1485, 1
        %v1490 = vrot.slane %v1486, 1
        %v1491 = vsel %vm250, %v1489, %v1490
        %v1493 = vadd.f32 %v1484, %v1491
        %v1494 = vmul.f32 %v591, %v1480
        %v1495 = vmul.f32 %v591, %v1482
        %v1498 = vrot.slane %v1494, 2
        %v1499 = vrot.slane %v1495, 2
        %v1500 = vsel %vm261, %v1498, %v1499
        %v1502 = vadd.f32 %v1493, %v1500
        %v1503 = vmul.f32 %v601, %v1480
        %v1504 = vmul.f32 %v601, %v1482
        %v1507 = vrot.slane %v1503, 3
        %v1508 = vrot.slane %v1504, 3
        %v1509 = vsel %vm272, %v1507, %v1508
        %v1511 = vadd.f32 %v1502, %v1509
        %v1512 = vmul.f32 %v611, %v1480
        %v1513 = vmul.f32 %v611, %v1482
        %v1516 = vrot.slane %v1512, 4
        %v1517 = vrot.slane %v1513, 4
        %v1518 = vsel %vm283, %v1516, %v1517
        %v1520 = vadd.f32 %v1511, %v1518
        %v1521 = vmul.f32 %v621, %v1480
        %v1522 = vmul.f32 %v621, %v1482
        %v1525 = vrot.slane %v1521, 5
        %v1526 = vrot.slane %v1522, 5
        %v1527 = vsel %vm294, %v1525, %v1526
        %v1529 = vadd.f32 %v1520, %v1527
        %v1530 = vmul.f32 %v631, %v1480
        %v1531 = vmul.f32 %v631, %v1482
        %v1534 = vrot.slane %v1530, 6
        %v1535 = vrot.slane %v1531, 6
        %v1536 = vsel %vm305, %v1534, %v1535
        %v1538 = vadd.f32 %v1529, %v1536
        %1539 = vrot.lane.b32.xlu0 %v1183, 125
        %v1540 = vpop.permute.xlu0 %1539
        %1541 = vrot.lane.b32.xlu0 %v1184, 125
        %v1542 = vpop.permute.xlu0 %1541
        %v1543 = vmul.f32 %v645, %v1540
        %v1544 = vadd.f32 %v1478, %v1543
        %v1545 = vmul.f32 %v648, %v1540
        %v1546 = vmul.f32 %v648, %v1542
        %v1549 = vrot.slane %v1545, 1
        %v1550 = vrot.slane %v1546, 1
        %v1551 = vsel %vm250, %v1549, %v1550
        %v1553 = vadd.f32 %v1544, %v1551
        %v1554 = vmul.f32 %v658, %v1540
        %v1555 = vmul.f32 %v658, %v1542
        %v1558 = vrot.slane %v1554, 2
        %v1559 = vrot.slane %v1555, 2
        %v1560 = vsel %vm261, %v1558, %v1559
        %v1562 = vadd.f32 %v1553, %v1560
        %v1563 = vmul.f32 %v668, %v1540
        %v1564 = vmul.f32 %v668, %v1542
        %v1567 = vrot.slane %v1563, 3
        %v1568 = vrot.slane %v1564, 3
        %v1569 = vsel %vm272, %v1567, %v1568
        %v1571 = vadd.f32 %v1562, %v1569
        %v1572 = vmul.f32 %v678, %v1540
        %v1573 = vmul.f32 %v678, %v1542
        %v1576 = vrot.slane %v1572, 4
        %v1577 = vrot.slane %v1573, 4
        %v1578 = vsel %vm283, %v1576, %v1577
        %v1580 = vadd.f32 %v1571, %v1578
        %v1581 = vmul.f32 %v688, %v1540
        %v1582 = vmul.f32 %v688, %v1542
        %v1585 = vrot.slane %v1581, 5
        %v1586 = vrot.slane %v1582, 5
        %v1587 = vsel %vm294, %v1585, %v1586
        %v1589 = vadd.f32 %v1580, %v1587
        %v1590 = vmul.f32 %v698, %v1540
        %v1591 = vmul.f32 %v698, %v1542
        %v1594 = vrot.slane %v1590, 6
        %v1595 = vrot.slane %v1591, 6
        %v1596 = vsel %vm305, %v1594, %v1595
        %v1598 = vadd.f32 %v1589, %v1596
        %v1599 = vld [vmem:[%s136 + $0x8] sm:$0xff]
        %v1600 = vld [vmem:[%s136 + $0x10] sm:$0x3f]
        %1601 = vrot.lane.b32.xlu0 %v1599, 3
        %v1602 = vpop.permute.xlu0 %1601
        %1603 = vrot.lane.b32.xlu0 %v1600, 3
        %v1604 = vpop.permute.xlu0 %1603
        %v1605 = vmul.f32 %v714, %v1602
        %v1606 = vmul.f32 %v716, %v1602
        %v1607 = vmul.f32 %v716, %v1604
        %v1610 = vrot.slane %v1606, 1
        %v1611 = vrot.slane %v1607, 1
        %v1612 = vsel %vm250, %v1610, %v1611
        %v1614 = vadd.f32 %v1605, %v1612
        %v1615 = vmul.f32 %v726, %v1602
        %v1616 = vmul.f32 %v726, %v1604
        %v1619 = vrot.slane %v1615, 2
        %v1620 = vrot.slane %v1616, 2
        %v1621 = vsel %vm261, %v1619, %v1620
        %v1623 = vadd.f32 %v1614, %v1621
        %v1624 = vmul.f32 %v736, %v1602
        %v1625 = vmul.f32 %v736, %v1604
        %v1628 = vrot.slane %v1624, 3
        %v1629 = vrot.slane %v1625, 3
        %v1630 = vsel %vm272, %v1628, %v1629
        %v1632 = vadd.f32 %v1623, %v1630
        %v1633 = vmul.f32 %v746, %v1602
        %v1634 = vmul.f32 %v746, %v1604
        %v1637 = vrot.slane %v1633, 4
        %v1638 = vrot.slane %v1634, 4
        %v1639 = vsel %vm283, %v1637, %v1638
        %v1641 = vadd.f32 %v1632, %v1639
        %v1642 = vmul.f32 %v756, %v1602
        %v1643 = vmul.f32 %v756, %v1604
        %v1646 = vrot.slane %v1642, 5
        %v1647 = vrot.slane %v1643, 5
        %v1648 = vsel %vm294, %v1646, %v1647
        %v1650 = vadd.f32 %v1641, %v1648
        %v1651 = vmul.f32 %v766, %v1602
        %v1652 = vmul.f32 %v766, %v1604
        %v1655 = vrot.slane %v1651, 6
        %v1656 = vrot.slane %v1652, 6
        %v1657 = vsel %vm305, %v1655, %v1656
        %v1659 = vadd.f32 %v1650, %v1657
        %1660 = vrot.lane.b32.xlu0 %v1599, 2
        %v1661 = vpop.permute.xlu0 %1660
        %1662 = vrot.lane.b32.xlu0 %v1600, 2
        %v1663 = vpop.permute.xlu0 %1662
        %v1664 = vmul.f32 %v780, %v1661
        %v1665 = vmul.f32 %v782, %v1661
        %v1666 = vmul.f32 %v782, %v1663
        %v1669 = vrot.slane %v1665, 1
        %v1670 = vrot.slane %v1666, 1
        %v1671 = vsel %vm250, %v1669, %v1670
        %v1673 = vadd.f32 %v1664, %v1671
        %v1674 = vmul.f32 %v792, %v1661
        %v1675 = vmul.f32 %v792, %v1663
        %v1678 = vrot.slane %v1674, 2
        %v1679 = vrot.slane %v1675, 2
        %v1680 = vsel %vm261, %v1678, %v1679
        %v1682 = vadd.f32 %v1673, %v1680
        %v1683 = vmul.f32 %v802, %v1661
        %v1684 = vmul.f32 %v802, %v1663
        %v1687 = vrot.slane %v1683, 3
        %v1688 = vrot.slane %v1684, 3
        %v1689 = vsel %vm272, %v1687, %v1688
        %v1691 = vadd.f32 %v1682, %v1689
        %v1692 = vmul.f32 %v812, %v1661
        %v1693 = vmul.f32 %v812, %v1663
        %v1696 = vrot.slane %v1692, 4
        %v1697 = vrot.slane %v1693, 4
        %v1698 = vsel %vm283, %v1696, %v1697
        %v1700 = vadd.f32 %v1691, %v1698
        %v1701 = vmul.f32 %v822, %v1661
        %v1702 = vmul.f32 %v822, %v1663
        %v1705 = vrot.slane %v1701, 5
        %v1706 = vrot.slane %v1702, 5
        %v1707 = vsel %vm294, %v1705, %v1706
        %v1709 = vadd.f32 %v1700, %v1707
        %v1710 = vmul.f32 %v832, %v1661
        %v1711 = vmul.f32 %v832, %v1663
        %v1714 = vrot.slane %v1710, 6
        %v1715 = vrot.slane %v1711, 6
        %v1716 = vsel %vm305, %v1714, %v1715
        %v1718 = vadd.f32 %v1709, %v1716
        %1719 = vrot.lane.b32.xlu0 %v1599, 1
        %v1720 = vpop.permute.xlu0 %1719
        %1721 = vrot.lane.b32.xlu0 %v1600, 1
        %v1722 = vpop.permute.xlu0 %1721
        %v1723 = vmul.f32 %v846, %v1720
        %v1724 = vadd.f32 %v1659, %v1723
        %v1725 = vmul.f32 %v849, %v1720
        %v1726 = vmul.f32 %v849, %v1722
        %v1729 = vrot.slane %v1725, 1
        %v1730 = vrot.slane %v1726, 1
        %v1731 = vsel %vm250, %v1729, %v1730
        %v1733 = vadd.f32 %v1724, %v1731
        %v1734 = vmul.f32 %v859, %v1720
        %v1735 = vmul.f32 %v859, %v1722
        %v1738 = vrot.slane %v1734, 2
        %v1739 = vrot.slane %v1735, 2
        %v1740 = vsel %vm261, %v1738, %v1739
        %v1742 = vadd.f32 %v1733, %v1740
        %v1743 = vmul.f32 %v869, %v1720
        %v1744 = vmul.f32 %v869, %v1722
        %v1747 = vrot.slane %v1743, 3
        %v1748 = vrot.slane %v1744, 3
        %v1749 = vsel %vm272, %v1747, %v1748
        %v1751 = vadd.f32 %v1742, %v1749
        %v1752 = vmul.f32 %v879, %v1720
        %v1753 = vmul.f32 %v879, %v1722
        %v1756 = vrot.slane %v1752, 4
        %v1757 = vrot.slane %v1753, 4
        %v1758 = vsel %vm283, %v1756, %v1757
        %v1760 = vadd.f32 %v1751, %v1758
        %v1761 = vmul.f32 %v889, %v1720
        %v1762 = vmul.f32 %v889, %v1722
        %v1765 = vrot.slane %v1761, 5
        %v1766 = vrot.slane %v1762, 5
        %v1767 = vsel %vm294, %v1765, %v1766
        %v1769 = vadd.f32 %v1760, %v1767
        %v1770 = vmul.f32 %v899, %v1720
        %v1771 = vmul.f32 %v899, %v1722
        %v1774 = vrot.slane %v1770, 6
        %v1775 = vrot.slane %v1771, 6
        %v1776 = vsel %vm305, %v1774, %v1775
        %v1778 = vadd.f32 %v1769, %v1776
        %v1779 = vmul.f32 %v909, %v1599
        %v1780 = vadd.f32 %v1718, %v1779
        %v1781 = vmul.f32 %v912, %v1599
        %v1782 = vmul.f32 %v912, %v1600
        %v1785 = vrot.slane %v1781, 1
        %v1786 = vrot.slane %v1782, 1
        %v1787 = vsel %vm250, %v1785, %v1786
        %v1789 = vadd.f32 %v1780, %v1787
        %v1790 = vmul.f32 %v922, %v1599
        %v1791 = vmul.f32 %v922, %v1600
        %v1794 = vrot.slane %v1790, 2
        %v1795 = vrot.slane %v1791, 2
        %v1796 = vsel %vm261, %v1794, %v1795
        %v1798 = vadd.f32 %v1789, %v1796
        %v1799 = vmul.f32 %v932, %v1599
        %v1800 = vmul.f32 %v932, %v1600
        %v1803 = vrot.slane %v1799, 3
        %v1804 = vrot.slane %v1800, 3
        %v1805 = vsel %vm272, %v1803, %v1804
        %v1807 = vadd.f32 %v1798, %v1805
        %v1808 = vmul.f32 %v942, %v1599
        %v1809 = vmul.f32 %v942, %v1600
        %v1812 = vrot.slane %v1808, 4
        %v1813 = vrot.slane %v1809, 4
        %v1814 = vsel %vm283, %v1812, %v1813
        %v1816 = vadd.f32 %v1807, %v1814
        %v1817 = vmul.f32 %v952, %v1599
        %v1818 = vmul.f32 %v952, %v1600
        %v1821 = vrot.slane %v1817, 5
        %v1822 = vrot.slane %v1818, 5
        %v1823 = vsel %vm294, %v1821, %v1822
        %v1825 = vadd.f32 %v1816, %v1823
        %v1826 = vmul.f32 %v962, %v1599
        %v1827 = vmul.f32 %v962, %v1600
        %v1830 = vrot.slane %v1826, 6
        %v1831 = vrot.slane %v1827, 6
        %v1832 = vsel %vm305, %v1830, %v1831
        %v1834 = vadd.f32 %v1825, %v1832
        %1835 = vrot.lane.b32.xlu0 %v1599, 127
        %v1836 = vpop.permute.xlu0 %1835
        %1837 = vrot.lane.b32.xlu0 %v1600, 127
        %v1838 = vpop.permute.xlu0 %1837
        %v1839 = vmul.f32 %v976, %v1836
        %v1840 = vadd.f32 %v1778, %v1839
        %v1841 = vmul.f32 %v979, %v1836
        %v1842 = vmul.f32 %v979, %v1838
        %v1845 = vrot.slane %v1841, 1
        %v1846 = vrot.slane %v1842, 1
        %v1847 = vsel %vm250, %v1845, %v1846
        %v1849 = vadd.f32 %v1840, %v1847
        %v1850 = vmul.f32 %v989, %v1836
        %v1851 = vmul.f32 %v989, %v1838
        %v1854 = vrot.slane %v1850, 2
        %v1855 = vrot.slane %v1851, 2
        %v1856 = vsel %vm261, %v1854, %v1855
        %v1858 = vadd.f32 %v1849, %v1856
        %v1859 = vmul.f32 %v999, %v1836
        %v1860 = vmul.f32 %v999, %v1838
        %v1863 = vrot.slane %v1859, 3
        %v1864 = vrot.slane %v1860, 3
        %v1865 = vsel %vm272, %v1863, %v1864
        %v1867 = vadd.f32 %v1858, %v1865
        %v1868 = vmul.f32 %v1009, %v1836
        %v1869 = vmul.f32 %v1009, %v1838
        %v1872 = vrot.slane %v1868, 4
        %v1873 = vrot.slane %v1869, 4
        %v1874 = vsel %vm283, %v1872, %v1873
        %v1876 = vadd.f32 %v1867, %v1874
        %v1877 = vmul.f32 %v1019, %v1836
        %v1878 = vmul.f32 %v1019, %v1838
        %v1881 = vrot.slane %v1877, 5
        %v1882 = vrot.slane %v1878, 5
        %v1883 = vsel %vm294, %v1881, %v1882
        %v1885 = vadd.f32 %v1876, %v1883
        %v1886 = vmul.f32 %v1029, %v1836
        %v1887 = vmul.f32 %v1029, %v1838
        %v1890 = vrot.slane %v1886, 6
        %v1891 = vrot.slane %v1887, 6
        %v1892 = vsel %vm305, %v1890, %v1891
        %v1894 = vadd.f32 %v1885, %v1892
        %1895 = vrot.lane.b32.xlu0 %v1599, 126
        %v1896 = vpop.permute.xlu0 %1895
        %1897 = vrot.lane.b32.xlu0 %v1600, 126
        %v1898 = vpop.permute.xlu0 %1897
        %v1899 = vmul.f32 %v1043, %v1896
        %v1900 = vadd.f32 %v1834, %v1899
        %v1901 = vmul.f32 %v1046, %v1896
        %v1902 = vmul.f32 %v1046, %v1898
        %v1905 = vrot.slane %v1901, 1
        %v1906 = vrot.slane %v1902, 1
        %v1907 = vsel %vm250, %v1905, %v1906
        %v1909 = vadd.f32 %v1900, %v1907
        %v1910 = vmul.f32 %v1056, %v1896
        %v1911 = vmul.f32 %v1056, %v1898
        %v1914 = vrot.slane %v1910, 2
        %v1915 = vrot.slane %v1911, 2
        %v1916 = vsel %vm261, %v1914, %v1915
        %v1918 = vadd.f32 %v1909, %v1916
        %v1919 = vmul.f32 %v1066, %v1896
        %v1920 = vmul.f32 %v1066, %v1898
        %v1923 = vrot.slane %v1919, 3
        %v1924 = vrot.slane %v1920, 3
        %v1925 = vsel %vm272, %v1923, %v1924
        %v1927 = vadd.f32 %v1918, %v1925
        %v1928 = vmul.f32 %v1076, %v1896
        %v1929 = vmul.f32 %v1076, %v1898
        %v1932 = vrot.slane %v1928, 4
        %v1933 = vrot.slane %v1929, 4
        %v1934 = vsel %vm283, %v1932, %v1933
        %v1936 = vadd.f32 %v1927, %v1934
        %v1937 = vmul.f32 %v1086, %v1896
        %v1938 = vmul.f32 %v1086, %v1898
        %v1941 = vrot.slane %v1937, 5
        %v1942 = vrot.slane %v1938, 5
        %v1943 = vsel %vm294, %v1941, %v1942
        %v1945 = vadd.f32 %v1936, %v1943
        %v1946 = vmul.f32 %v1096, %v1896
        %v1947 = vmul.f32 %v1096, %v1898
        %v1950 = vrot.slane %v1946, 6
        %v1951 = vrot.slane %v1947, 6
        %v1952 = vsel %vm305, %v1950, %v1951
        %v1954 = vadd.f32 %v1945, %v1952
        %1955 = vrot.lane.b32.xlu0 %v1599, 125
        %v1956 = vpop.permute.xlu0 %1955
        %1957 = vrot.lane.b32.xlu0 %v1600, 125
        %v1958 = vpop.permute.xlu0 %1957
        %v1959 = vmul.f32 %v1110, %v1956
        %v1960 = vadd.f32 %v1894, %v1959
        %v1961 = vmul.f32 %v1113, %v1956
        %v1962 = vmul.f32 %v1113, %v1958
        %v1965 = vrot.slane %v1961, 1
        %v1966 = vrot.slane %v1962, 1
        %v1967 = vsel %vm250, %v1965, %v1966
        %v1969 = vadd.f32 %v1960, %v1967
        %v1970 = vmul.f32 %v1123, %v1956
        %v1971 = vmul.f32 %v1123, %v1958
        %v1974 = vrot.slane %v1970, 2
        %v1975 = vrot.slane %v1971, 2
        %v1976 = vsel %vm261, %v1974, %v1975
        %v1978 = vadd.f32 %v1969, %v1976
        %v1979 = vmul.f32 %v1133, %v1956
        %v1980 = vmul.f32 %v1133, %v1958
        %v1983 = vrot.slane %v1979, 3
        %v1984 = vrot.slane %v1980, 3
        %v1985 = vsel %vm272, %v1983, %v1984
        %v1987 = vadd.f32 %v1978, %v1985
        %v1988 = vmul.f32 %v1143, %v1956
        %v1989 = vmul.f32 %v1143, %v1958
        %v1992 = vrot.slane %v1988, 4
        %v1993 = vrot.slane %v1989, 4
        %v1994 = vsel %vm283, %v1992, %v1993
        %v1996 = vadd.f32 %v1987, %v1994
        %v1997 = vmul.f32 %v1153, %v1956
        %v1998 = vmul.f32 %v1153, %v1958
        %v2001 = vrot.slane %v1997, 5
        %v2002 = vrot.slane %v1998, 5
        %v2003 = vsel %vm294, %v2001, %v2002
        %v2005 = vadd.f32 %v1996, %v2003
        %v2006 = vmul.f32 %v1163, %v1956
        %v2007 = vmul.f32 %v1163, %v1958
        %v2010 = vrot.slane %v2006, 6
        %v2011 = vrot.slane %v2007, 6
        %v2012 = vsel %vm305, %v2010, %v2011
        %v2014 = vadd.f32 %v2005, %v2012
        %v2015 = vadd.f32 %v1598, %v1538
        %v2016 = vadd.f32 %v2014, %v1954
        %v2017 = vadd.f32 %v2015, %v2016
        %v2018 = vxor.u32 %v2017, 2147483648
        %v2019 = vmul.f32 %v2018, 1.442695
        %v2020 = vpow.pop %v2019
        %v2021 = vadd.f32 %v2020, 1.0
        %v2022 = vrcp.pop %v2021
        %v2023 = vmul.f32 1.0, %v2022
        %2024 = vst.msk [vmem:[%s116 + $0x8] sm:$0xff] %vm130, %v2023
        %s2025 = sand.u32 %s56, 1
        %s2026 = scalar_lea.sflag [#allocation6], %s2025
        %s2027 = sand.u32 %s56, 1
        %s2028 = smul.addr %s2027, 16
        %s2029 = scalar_lea.vmem [#allocation5], %s2028
        // Predicated region
        $region25: #{spatial_attention.3} parent=23 // pred_check
          %p2030 = pneg %p66
        $region26: #{spatial_attention.3} parent=23 // pred_check_branch
          %2032 = sbr.rel (%p2030) target = $region28
        $region27: #{spatial_attention.3} parent=23 // pred_region
          %s2034 = ssub.s32 256, 256
          %2035 = vsyncadd %s2026, %s2034
          %s2036 = smul.addr %s22, 2
          %s2037 = smul.addr %s2036, 128
          %s2038 = scalar_lea.hbm %s2, %s2037
          %s2039 = sshll.u32 %s2029, 4
          %s2040 = int_to_ptr.vmem [resolvable:$true] %s2039
          %2045 = dma.vmem_to_hbm [thread:$0]  %s2040, 256, %s2038, %s2026, 128, 128, 8
        $region28: #{spatial_attention.3} parent=23 // pred_fallthru
          _
      $region24: #{spatial_attention.3} parent=5 // pred_fallthru
        _
      %p2046 = scmp.le.s32.totalorder 2, %s17
      // Predicated region
      $region29: #{spatial_attention.3} parent=5 // pred_check
        %p2047 = pneg %p2046
      $region30: #{spatial_attention.3} parent=5 // pred_check_branch
        %2049 = sbr.rel (%p2047) target = $region32
      $region31: #{spatial_attention.3} parent=5 // pred_region
        %s2050 = ssub.s32 %s17, 2
        // Predicated region
        $region33: #{spatial_attention.3} parent=31 // pred_check
          %p2051 = pneg %p72
        $region34: #{spatial_attention.3} parent=31 // pred_check_branch
          %2053 = sbr.rel (%p2051) target = $region36
        $region35: #{spatial_attention.3} parent=31 // pred_region
          %s2054 = sand.u32 %s57, 1
          %s2055 = scalar_lea.sflag [#allocation6], %s2054
          %s2056 = sand.u32 %s57, 1
          %s2057 = smul.addr %s2056, 16
          %s2058 = scalar_lea.vmem [#allocation5], %s2057
          %2059 = dma.done %s2055, 256
        $region36: #{spatial_attention.3} parent=31 // pred_fallthru
          _
      $region32: #{spatial_attention.3} parent=5 // pred_fallthru
        _
    $region6: #{spatial_attention.3} parent=1 // loop_footer
      %s21 = sadd.s32 1, %s17
    $region7: #{spatial_attention.3} parent=1 // loop_footer_branch
      %16 = sbr.rel target = $region3
    $region8: #{spatial_attention.3} parent=1 // loop_exit
      _
    %2060 = vsyncpa [#allocation6], 1
    %s2061 = scalar_lea.sflag [#allocation6], 1
    %2062 = vsyncpa %s2061, 1

</llo_original>
